<compile_context>
chip_gen: v7x
topology: tpu7x:2x2x1
jax: 0.10.0
libtpu: 0.0.40
codegen_flags: <defaults>
</compile_context>

<pallas_src>
import jax
import jax.numpy as jnp
from jax.experimental import pallas as pl
from jax.experimental.pallas import tpu as pltpu


def add_conv1x1_kernel(a_ref, b_ref, w_ref, o_ref):
    # a_ref, b_ref: (C_in, HW)      f32 activations of the current batch element
    # w_ref:        (tile_co, C_in) bf16 weight tile (VMEM-resident across the inner N loop)
    # o_ref:        (tile_co, HW)   f32 output tile
    # Fused: x = a + b (VPU), out = W @ x (MXU, bf16 operands, f32 accumulation).
    x = (a_ref[...] + b_ref[...]).astype(jnp.bfloat16)
    o_ref[...] = jnp.dot(
        w_ref[...], x, preferred_element_type=jnp.float32
    ).astype(o_ref.dtype)


def prepare_weight(weight):
    """[C_out, C_in, 1, 1] conv weight -> (C_out, C_in) bf16.

    Done ONCE outside the hot path (the weight is a constant; under jit this is
    hoisted/constant-folded).  bf16 halves the dominant HBM traffic (the weight DMA,
    2.2 MB -> 1.1 MB) and keeps the MXU on its native single-pass bf16 path;
    accumulation stays f32 inside the kernel.
    """
    C_out, C_in = weight.shape[0], weight.shape[1]
    return weight.reshape(C_out, C_in).astype(jnp.bfloat16)


def _tensorcores_per_chip() -> int:
    """Best-effort per-chip TensorCore count.

    Defaults to 1 (v5e / v6e, or whenever the query is unavailable), which matches the
    perf guidance: a C_out split only pays when it is sharded across multiple TCs (v7x).
    Clamped to 2 (current max TCs per chip).
    """
    try:
        info = pltpu.get_tpu_info()
        for attr in ("num_cores", "num_cores_per_chip", "core_count",
                     "num_tensorcores", "tensorcores_per_chip"):
            v = getattr(info, attr, None)
            if isinstance(v, int) and v > 0:
                return min(int(v), 2)
    except Exception:
        pass
    return 1


def add_conv1x1(x589, x574, w):
    """x589, x574: [N, C_in, H, W] (NCHW) f32.  w: (C_out, C_in) bf16 from prepare_weight().
    Returns [N, C_out, H, W] (NCHW) f32, matching Conv2d(C_in, C_out, 1, bias=False)(x589+x574).
    """
    N, C_in, H, W = x589.shape
    C_out = w.shape[0]
    HW = H * W

    # Contiguous -> zero-copy reshapes (no transpose kernels launched).
    a = x589.reshape(N, C_in, HW)
    b = x574.reshape(N, C_in, HW)

    cores = _tensorcores_per_chip()
    n_co = cores if (cores > 1 and C_out % cores == 0 and (C_out // cores) % 8 == 0) else 1

    def run(n_co, semantics):
        tile_co = C_out // n_co
        return pl.pallas_call(
            add_conv1x1_kernel,
            out_shape=jax.ShapeDtypeStruct((N, C_out, HW), x589.dtype),
            grid_spec=pltpu.PrefetchScalarGridSpec(
                num_scalar_prefetch=0,
                # Weight-block axis (j) OUTERMOST so its block index varies slowest:
                # the weight tile is fetched once and reused across the inner N loop.
                grid=(n_co, N),
                in_specs=[
                    pl.BlockSpec((None, C_in, HW), lambda j, n: (n, 0, 0)),
                    pl.BlockSpec((None, C_in, HW), lambda j, n: (n, 0, 0)),
                    pl.BlockSpec((tile_co, C_in), lambda j, n: (j, 0)),
                ],
                out_specs=pl.BlockSpec((None, tile_co, HW), lambda j, n: (n, j, 0)),
            ),
            compiler_params=pltpu.CompilerParams(dimension_semantics=semantics),
        )(a, b, w)

    if n_co > 1:
        # Multi-TC chip (v7x): make the C_out split explicitly land on both TensorCores.
        try:
            out = run(n_co, (pltpu.CORE_PARALLEL, pltpu.ARBITRARY))
        except Exception:
            # Fall back to the portable single-tile path if core-parallel lowering is
            # unsupported on this chip/runtime (same math, one grid step per batch elem).
            out = run(1, ("arbitrary", "arbitrary"))
    else:
        # Single-TC (v5e / v6e): one grid step per batch element, no redundant work.
        out = run(1, ("arbitrary", "arbitrary"))

    # (N, C_out, H*W) -> NCHW, contiguous reshape (zero-copy).
    return out.reshape(N, C_out, H, W)


if __name__ == "__main__":
    key = jax.random.PRNGKey(0)
    k1, k2, k3 = jax.random.split(key, 3)

    # Shapes implied by the module: Conv2d(304, 1824, 1, bias=False) on [1, 304, 7, 7].
    N, C_in, H, W = 1, 304, 7, 7
    C_out = 1824

    x589 = jax.random.normal(k1, (N, C_in, H, W), dtype=jnp.float32)
    x574 = jax.random.normal(k2, (N, C_in, H, W), dtype=jnp.float32)
    weight = jax.random.normal(k3, (C_out, C_in, 1, 1), dtype=jnp.float32) * 0.05

    w = prepare_weight(weight)          # one-time reshape + bf16 cast (constant)
    out = add_conv1x1(x589, x574, w)
    jax.block_until_ready(out)

    assert out.shape == (N, C_out, H, W)

    x = x589 + x574

    # Matched-precision reference (bf16 operands, f32 accumulation): validates the
    # kernel's math/indexing exactly.
    x_bf = x.astype(jnp.bfloat16).astype(jnp.float32)
    w_bf = w.astype(jnp.float32)
    ref_bf16 = jnp.einsum("nchw,oc->nohw", x_bf, w_bf)
    assert jnp.allclose(out, ref_bf16, atol=1e-3, rtol=1e-3)

    # Sanity check against the full f32 reference (same math path as the PyTorch module);
    # tolerance relaxed for the bf16-weight/activation optimization.
    ref_f32 = jnp.einsum("nchw,oc->nohw", x, weight.reshape(C_out, C_in))
    assert jnp.allclose(out, ref_f32, atol=5e-2, rtol=5e-2)

    print("KERNEL_OK")
</pallas_src>

<mosaic_0001>
module attributes {stable_mosaic.version = 11 : i64} {
  func.func @add_conv1x1_kernel(%arg0: i32, %arg1: i32, %arg2: memref<1x304x49xf32, #tpu.memory_space<vmem>>, %arg3: memref<1x304x49xf32, #tpu.memory_space<vmem>>, %arg4: memref<1824x304xbf16, #tpu.memory_space<vmem>>, %arg5: memref<1x1824x49xf32, #tpu.memory_space<vmem>>) attributes {dimension_semantics = [#tpu.dimension_semantics<arbitrary>, #tpu.dimension_semantics<arbitrary>], iteration_bounds = array<i64: 1, 1>, scalar_prefetch = 0 : i64, scratch_operands = 0 : i64, tpu.core_type = #tpu.core_type<tc>, window_params = [{transform_indices = @transform_0, window_bounds = array<i64: 1, 304, 49>}, {transform_indices = @transform_1, window_bounds = array<i64: 1, 304, 49>}, {transform_indices = @transform_2, window_bounds = array<i64: 1824, 304>}, {transform_indices = @transform_3, window_bounds = array<i64: 1, 1824, 49>}]} {
    %c0 = arith.constant 0 : index
    %c0_0 = arith.constant 0 : index
    %c0_1 = arith.constant 0 : index
    %0 = vector.load %arg2[%c0, %c0_0, %c0_1] : memref<1x304x49xf32, #tpu.memory_space<vmem>>, vector<1x304x49xf32>
    %1 = vector.shape_cast %0 : vector<1x304x49xf32> to vector<304x49xf32>
    %c0_2 = arith.constant 0 : index
    %c0_3 = arith.constant 0 : index
    %c0_4 = arith.constant 0 : index
    %2 = vector.load %arg3[%c0_2, %c0_3, %c0_4] : memref<1x304x49xf32, #tpu.memory_space<vmem>>, vector<1x304x49xf32>
    %3 = vector.shape_cast %2 : vector<1x304x49xf32> to vector<304x49xf32>
    %4 = arith.addf %1, %3 : vector<304x49xf32>
    %5 = arith.truncf %4 : vector<304x49xf32> to vector<304x49xbf16>
    %c0_5 = arith.constant 0 : index
    %c0_6 = arith.constant 0 : index
    %6 = vector.load %arg4[%c0_5, %c0_6] : memref<1824x304xbf16, #tpu.memory_space<vmem>>, vector<1824x304xbf16>
    %cst = arith.constant dense<0.000000e+00> : vector<1824x49xf32>
    %7 = tpu.matmul %6, %5, %cst {dimension_numbers = #tpu.dot_dimension_numbers<[1], [0], [0], [1], [0, 0, 1, 1], [], []>} : vector<1824x304xbf16>, vector<304x49xbf16>, vector<1824x49xf32> -> vector<1824x49xf32>
    %c0_7 = arith.constant 0 : index
    %c0_8 = arith.constant 0 : index
    %c0_9 = arith.constant 0 : index
    %8 = vector.load %arg5[%c0_7, %c0_8, %c0_9] : memref<1x1824x49xf32, #tpu.memory_space<vmem>>, vector<1x1824x49xf32>
    %9 = vector.shape_cast %8 : vector<1x1824x49xf32> to vector<1824x49xf32>
    %10 = vector.shape_cast %7 : vector<1824x49xf32> to vector<1x1824x49xf32>
    tpu.vector_store %arg5[%c0_7, %c0_8, %c0_9], %10 {strides = array<i32>} : memref<1x1824x49xf32, #tpu.memory_space<vmem>>, vector<1x1824x49xf32>,
    return
  }
  func.func @transform_0(%arg0: i32, %arg1: i32) -> (i32, i32, i32) {
    %c0_i32 = arith.constant 0 : i32
    %c0_i32_0 = arith.constant 0 : i32
    %c0_i32_1 = arith.constant 0 : i32
    return %arg1, %c0_i32, %c0_i32_0 : i32, i32, i32
  }
  func.func @transform_1(%arg0: i32, %arg1: i32) -> (i32, i32, i32) {
    %c0_i32 = arith.constant 0 : i32
    %c0_i32_0 = arith.constant 0 : i32
    %c0_i32_1 = arith.constant 0 : i32
    return %arg1, %c0_i32, %c0_i32_0 : i32, i32, i32
  }
  func.func @transform_2(%arg0: i32, %arg1: i32) -> (i32, i32) {
    %c0_i32 = arith.constant 0 : i32
    %c0_i32_0 = arith.constant 0 : i32
    return %arg0, %c0_i32 : i32, i32
  }
  func.func @transform_3(%arg0: i32, %arg1: i32) -> (i32, i32, i32) {
    %c0_i32 = arith.constant 0 : i32
    %c0_i32_0 = arith.constant 0 : i32
    return %arg1, %arg0, %c0_i32 : i32, i32, i32
  }
}

</mosaic_0001>

<llo_original>
// kernel: tpu_custom_call.1
$region0: #{tpu_custom_call.1}
  #allocation0 [shape = 'u32[]', space=smem, size = 0x4, offset = 0x4, fixed_abs, tag = 'smem constant byte address 0x4 - core index']
  #allocation1 [shape = 'u32[144,128]{1,0:T(1,128)}', space=vmem, size = 0x12000, scoped, tag = 'internal scratch']
  %s0 = inlined_call_operand.vmem [shape: f32[1,304,49], index: 0, kind: input, shape index: {}]
  %s1 = inlined_call_operand.vmem [shape: f32[1,304,49], index: 1, kind: input, shape index: {}]
  %s2 = inlined_call_operand.vmem [shape: bf16[1824,304], index: 2, kind: input, shape index: {}]
  %s3 = inlined_call_operand.vmem [shape: f32[1,1824,49], index: 3, kind: output, shape index: {}]
  %s4 = sld [smem:[#allocation0]]
  $region22: #{tpu_custom_call.1} parent=0
    _
  %s6 = ssub.s32 1, %s4
  %s7 = scalar_select 0, %s6, %s4
  // Predicated region
  $region2: #{tpu_custom_call.1} parent=0 // pred_check
    _
  $region3: #{tpu_custom_call.1} parent=0 // pred_check_branch
    %9 = sbr.rel (0) target = $region5
  $region4: #{tpu_custom_call.1} parent=0 // pred_region
    _
  $region5: #{tpu_custom_call.1} parent=0 // pred_fallthru
    _
  // Predicated region
  $region6: #{tpu_custom_call.1} parent=0 // pred_check
    _
  $region7: #{tpu_custom_call.1} parent=0 // pred_check_branch
    %11 = sbr.rel (0) target = $region9
  $region8: #{tpu_custom_call.1} parent=0 // pred_region
    _
  $region9: #{tpu_custom_call.1} parent=0 // pred_fallthru
    _
  // Predicated region
  $region10: #{tpu_custom_call.1} parent=0 // pred_check
    _
  $region11: #{tpu_custom_call.1} parent=0 // pred_check_branch
    %13 = sbr.rel (0) target = $region13
  $region12: #{tpu_custom_call.1} parent=0 // pred_region
    _
  $region13: #{tpu_custom_call.1} parent=0 // pred_fallthru
    _
  %v15 = vld [vmem:[%s0] sm:$0xff]
  %v16 = vld [vmem:[%s0 + $0x8] sm:$0xff]
  %v17 = vld [vmem:[%s0 + $0x10] sm:$0xff]
  %v18 = vld [vmem:[%s0 + $0x18] sm:$0xff]
  %v19 = vld [vmem:[%s0 + $0x20] sm:$0xff]
  %v20 = vld [vmem:[%s0 + $0x28] sm:$0xff]
  %v21 = vld [vmem:[%s0 + $0x30] sm:$0xff]
  %v22 = vld [vmem:[%s0 + $0x38] sm:$0xff]
  %v23 = vld [vmem:[%s0 + $0x40] sm:$0xff]
  %v24 = vld [vmem:[%s0 + $0x48] sm:$0xff]
  %v25 = vld [vmem:[%s0 + $0x50] sm:$0xff]
  %v26 = vld [vmem:[%s0 + $0x58] sm:$0xff]
  %v27 = vld [vmem:[%s0 + $0x60] sm:$0xff]
  %v28 = vld [vmem:[%s0 + $0x68] sm:$0xff]
  %v29 = vld [vmem:[%s0 + $0x70] sm:$0xff]
  %v30 = vld [vmem:[%s0 + $0x78] sm:$0xff]
  %v31 = vld [vmem:[%s0 + $0x80] sm:$0xff]
  %v32 = vld [vmem:[%s0 + $0x88] sm:$0xff]
  %v33 = vld [vmem:[%s0 + $0x90] sm:$0xff]
  %v34 = vld [vmem:[%s0 + $0x98] sm:$0xff]
  %v35 = vld [vmem:[%s0 + $0xa0] sm:$0xff]
  %v36 = vld [vmem:[%s0 + $0xa8] sm:$0xff]
  %v37 = vld [vmem:[%s0 + $0xb0] sm:$0xff]
  %v38 = vld [vmem:[%s0 + $0xb8] sm:$0xff]
  %v39 = vld [vmem:[%s0 + $0xc0] sm:$0xff]
  %v40 = vld [vmem:[%s0 + $0xc8] sm:$0xff]
  %v41 = vld [vmem:[%s0 + $0xd0] sm:$0xff]
  %v42 = vld [vmem:[%s0 + $0xd8] sm:$0xff]
  %v43 = vld [vmem:[%s0 + $0xe0] sm:$0xff]
  %v44 = vld [vmem:[%s0 + $0xe8] sm:$0xff]
  %v45 = vld [vmem:[%s0 + $0xf0] sm:$0xff]
  %v46 = vld [vmem:[%s0 + $0xf8] sm:$0xff]
  %v47 = vld [vmem:[%s0 + $0x100] sm:$0xff]
  %v48 = vld [vmem:[%s0 + $0x108] sm:$0xff]
  %v49 = vld [vmem:[%s0 + $0x110] sm:$0xff]
  %v50 = vld [vmem:[%s0 + $0x118] sm:$0xff]
  %v51 = vld [vmem:[%s0 + $0x120] sm:$0xff]
  %v52 = vld [vmem:[%s0 + $0x128] sm:$0xff]
  %v53 = vld [vmem:[%s1] sm:$0xff]
  %v54 = vld [vmem:[%s1 + $0x8] sm:$0xff]
  %v55 = vld [vmem:[%s1 + $0x10] sm:$0xff]
  %v56 = vld [vmem:[%s1 + $0x18] sm:$0xff]
  %v57 = vld [vmem:[%s1 + $0x20] sm:$0xff]
  %v58 = vld [vmem:[%s1 + $0x28] sm:$0xff]
  %v59 = vld [vmem:[%s1 + $0x30] sm:$0xff]
  %v60 = vld [vmem:[%s1 + $0x38] sm:$0xff]
  %v61 = vld [vmem:[%s1 + $0x40] sm:$0xff]
  %v62 = vld [vmem:[%s1 + $0x48] sm:$0xff]
  %v63 = vld [vmem:[%s1 + $0x50] sm:$0xff]
  %v64 = vld [vmem:[%s1 + $0x58] sm:$0xff]
  %v65 = vld [vmem:[%s1 + $0x60] sm:$0xff]
  %v66 = vld [vmem:[%s1 + $0x68] sm:$0xff]
  %v67 = vld [vmem:[%s1 + $0x70] sm:$0xff]
  %v68 = vld [vmem:[%s1 + $0x78] sm:$0xff]
  %v69 = vld [vmem:[%s1 + $0x80] sm:$0xff]
  %v70 = vld [vmem:[%s1 + $0x88] sm:$0xff]
  %v71 = vld [vmem:[%s1 + $0x90] sm:$0xff]
  %v72 = vld [vmem:[%s1 + $0x98] sm:$0xff]
  %v73 = vld [vmem:[%s1 + $0xa0] sm:$0xff]
  %v74 = vld [vmem:[%s1 + $0xa8] sm:$0xff]
  %v75 = vld [vmem:[%s1 + $0xb0] sm:$0xff]
  %v76 = vld [vmem:[%s1 + $0xb8] sm:$0xff]
  %v77 = vld [vmem:[%s1 + $0xc0] sm:$0xff]
  %v78 = vld [vmem:[%s1 + $0xc8] sm:$0xff]
  %v79 = vld [vmem:[%s1 + $0xd0] sm:$0xff]
  %v80 = vld [vmem:[%s1 + $0xd8] sm:$0xff]
  %v81 = vld [vmem:[%s1 + $0xe0] sm:$0xff]
  %v82 = vld [vmem:[%s1 + $0xe8] sm:$0xff]
  %v83 = vld [vmem:[%s1 + $0xf0] sm:$0xff]
  %v84 = vld [vmem:[%s1 + $0xf8] sm:$0xff]
  %v85 = vld [vmem:[%s1 + $0x100] sm:$0xff]
  %v86 = vld [vmem:[%s1 + $0x108] sm:$0xff]
  %v87 = vld [vmem:[%s1 + $0x110] sm:$0xff]
  %v88 = vld [vmem:[%s1 + $0x118] sm:$0xff]
  %v89 = vld [vmem:[%s1 + $0x120] sm:$0xff]
  %v90 = vld [vmem:[%s1 + $0x128] sm:$0xff]
  %v91 = vadd.f32 %v15, %v53
  %v92 = vadd.f32 %v16, %v54
  %v93 = vadd.f32 %v17, %v55
  %v94 = vadd.f32 %v18, %v56
  %v95 = vadd.f32 %v19, %v57
  %v96 = vadd.f32 %v20, %v58
  %v97 = vadd.f32 %v21, %v59
  %v98 = vadd.f32 %v22, %v60
  %v99 = vadd.f32 %v23, %v61
  %v100 = vadd.f32 %v24, %v62
  %v101 = vadd.f32 %v25, %v63
  %v102 = vadd.f32 %v26, %v64
  %v103 = vadd.f32 %v27, %v65
  %v104 = vadd.f32 %v28, %v66
  %v105 = vadd.f32 %v29, %v67
  %v106 = vadd.f32 %v30, %v68
  %v107 = vadd.f32 %v31, %v69
  %v108 = vadd.f32 %v32, %v70
  %v109 = vadd.f32 %v33, %v71
  %v110 = vadd.f32 %v34, %v72
  %v111 = vadd.f32 %v35, %v73
  %v112 = vadd.f32 %v36, %v74
  %v113 = vadd.f32 %v37, %v75
  %v114 = vadd.f32 %v38, %v76
  %v115 = vadd.f32 %v39, %v77
  %v116 = vadd.f32 %v40, %v78
  %v117 = vadd.f32 %v41, %v79
  %v118 = vadd.f32 %v42, %v80
  %v119 = vadd.f32 %v43, %v81
  %v120 = vadd.f32 %v44, %v82
  %v121 = vadd.f32 %v45, %v83
  %v122 = vadd.f32 %v46, %v84
  %v123 = vadd.f32 %v47, %v85
  %v124 = vadd.f32 %v48, %v86
  %v125 = vadd.f32 %v49, %v87
  %v126 = vadd.f32 %v50, %v88
  %v127 = vadd.f32 %v51, %v89
  %v128 = vadd.f32 %v52, %v90
  %v129 = vpack.c.bf16 %v92, %v91
  %v130 = vpack.c.bf16 %v94, %v93
  %v131 = vpack.c.bf16 %v96, %v95
  %v132 = vpack.c.bf16 %v98, %v97
  %v133 = vpack.c.bf16 %v100, %v99
  %v134 = vpack.c.bf16 %v102, %v101
  %v135 = vpack.c.bf16 %v104, %v103
  %v136 = vpack.c.bf16 %v106, %v105
  %v137 = vpack.c.bf16 %v108, %v107
  %v138 = vpack.c.bf16 %v110, %v109
  %v139 = vpack.c.bf16 %v112, %v111
  %v140 = vpack.c.bf16 %v114, %v113
  %v141 = vpack.c.bf16 %v116, %v115
  %v142 = vpack.c.bf16 %v118, %v117
  %v143 = vpack.c.bf16 %v120, %v119
  %v144 = vpack.c.bf16 %v122, %v121
  %v145 = vpack.c.bf16 %v124, %v123
  %v146 = vpack.c.bf16 %v126, %v125
  %v147 = vpack.c.bf16 %v128, %v127
  %v148 = vld [vmem:[%s2] sm:$0xff]
  %v149 = vld [vmem:[%s2 + $0x8] sm:$0xf]
  %v150 = vld [vmem:[%s2 + $0xc] sm:$0xff]
  %v151 = vld [vmem:[%s2 + $0x14] sm:$0xf]
  %v152 = vld [vmem:[%s2 + $0x18] sm:$0xff]
  %v153 = vld [vmem:[%s2 + $0x20] sm:$0xf]
  %v154 = vld [vmem:[%s2 + $0x24] sm:$0xff]
  %v155 = vld [vmem:[%s2 + $0x2c] sm:$0xf]
  %v156 = vld [vmem:[%s2 + $0x30] sm:$0xff]
  %v157 = vld [vmem:[%s2 + $0x38] sm:$0xf]
  %v158 = vld [vmem:[%s2 + $0x3c] sm:$0xff]
  %v159 = vld [vmem:[%s2 + $0x44] sm:$0xf]
  %v160 = vld [vmem:[%s2 + $0x48] sm:$0xff]
  %v161 = vld [vmem:[%s2 + $0x50] sm:$0xf]
  %v162 = vld [vmem:[%s2 + $0x54] sm:$0xff]
  %v163 = vld [vmem:[%s2 + $0x5c] sm:$0xf]
  %v164 = vld [vmem:[%s2 + $0x60] sm:$0xff]
  %v165 = vld [vmem:[%s2 + $0x68] sm:$0xf]
  %v166 = vld [vmem:[%s2 + $0x6c] sm:$0xff]
  %v167 = vld [vmem:[%s2 + $0x74] sm:$0xf]
  %v168 = vld [vmem:[%s2 + $0x78] sm:$0xff]
  %v169 = vld [vmem:[%s2 + $0x80] sm:$0xf]
  %v170 = vld [vmem:[%s2 + $0x84] sm:$0xff]
  %v171 = vld [vmem:[%s2 + $0x8c] sm:$0xf]
  %v172 = vld [vmem:[%s2 + $0x90] sm:$0xff]
  %v173 = vld [vmem:[%s2 + $0x98] sm:$0xf]
  %v174 = vld [vmem:[%s2 + $0x9c] sm:$0xff]
  %v175 = vld [vmem:[%s2 + $0xa4] sm:$0xf]
  %v176 = vld [vmem:[%s2 + $0xa8] sm:$0xff]
  %v177 = vld [vmem:[%s2 + $0xb0] sm:$0xf]
  %v178 = vld [vmem:[%s2 + $0xb4] sm:$0xff]
  %v179 = vld [vmem:[%s2 + $0xbc] sm:$0xf]
  %v180 = vld [vmem:[%s2 + $0xc0] sm:$0xff]
  %v181 = vld [vmem:[%s2 + $0xc8] sm:$0xf]
  %v182 = vld [vmem:[%s2 + $0xcc] sm:$0xff]
  %v183 = vld [vmem:[%s2 + $0xd4] sm:$0xf]
  %v184 = vld [vmem:[%s2 + $0xd8] sm:$0xff]
  %v185 = vld [vmem:[%s2 + $0xe0] sm:$0xf]
  %v186 = vld [vmem:[%s2 + $0xe4] sm:$0xff]
  %v187 = vld [vmem:[%s2 + $0xec] sm:$0xf]
  %v188 = vld [vmem:[%s2 + $0xf0] sm:$0xff]
  %v189 = vld [vmem:[%s2 + $0xf8] sm:$0xf]
  %v190 = vld [vmem:[%s2 + $0xfc] sm:$0xff]
  %v191 = vld [vmem:[%s2 + $0x104] sm:$0xf]
  %v192 = vld [vmem:[%s2 + $0x108] sm:$0xff]
  %v193 = vld [vmem:[%s2 + $0x110] sm:$0xf]
  %v194 = vld [vmem:[%s2 + $0x114] sm:$0xff]
  %v195 = vld [vmem:[%s2 + $0x11c] sm:$0xf]
  %v196 = vld [vmem:[%s2 + $0x120] sm:$0xff]
  %v197 = vld [vmem:[%s2 + $0x128] sm:$0xf]
  %v198 = vld [vmem:[%s2 + $0x12c] sm:$0xff]
  %v199 = vld [vmem:[%s2 + $0x134] sm:$0xf]
  %v200 = vld [vmem:[%s2 + $0x138] sm:$0xff]
  %v201 = vld [vmem:[%s2 + $0x140] sm:$0xf]
  %v202 = vld [vmem:[%s2 + $0x144] sm:$0xff]
  %v203 = vld [vmem:[%s2 + $0x14c] sm:$0xf]
  %v204 = vld [vmem:[%s2 + $0x150] sm:$0xff]
  %v205 = vld [vmem:[%s2 + $0x158] sm:$0xf]
  %v206 = vld [vmem:[%s2 + $0x15c] sm:$0xff]
  %v207 = vld [vmem:[%s2 + $0x164] sm:$0xf]
  %v208 = vld [vmem:[%s2 + $0x168] sm:$0xff]
  %v209 = vld [vmem:[%s2 + $0x170] sm:$0xf]
  %v210 = vld [vmem:[%s2 + $0x174] sm:$0xff]
  %v211 = vld [vmem:[%s2 + $0x17c] sm:$0xf]
  %v212 = vld [vmem:[%s2 + $0x180] sm:$0xff]
  %v213 = vld [vmem:[%s2 + $0x188] sm:$0xf]
  %v214 = vld [vmem:[%s2 + $0x18c] sm:$0xff]
  %v215 = vld [vmem:[%s2 + $0x194] sm:$0xf]
  %v216 = vld [vmem:[%s2 + $0x198] sm:$0xff]
  %v217 = vld [vmem:[%s2 + $0x1a0] sm:$0xf]
  %v218 = vld [vmem:[%s2 + $0x1a4] sm:$0xff]
  %v219 = vld [vmem:[%s2 + $0x1ac] sm:$0xf]
  %v220 = vld [vmem:[%s2 + $0x1b0] sm:$0xff]
  %v221 = vld [vmem:[%s2 + $0x1b8] sm:$0xf]
  %v222 = vld [vmem:[%s2 + $0x1bc] sm:$0xff]
  %v223 = vld [vmem:[%s2 + $0x1c4] sm:$0xf]
  %v224 = vld [vmem:[%s2 + $0x1c8] sm:$0xff]
  %v225 = vld [vmem:[%s2 + $0x1d0] sm:$0xf]
  %v226 = vld [vmem:[%s2 + $0x1d4] sm:$0xff]
  %v227 = vld [vmem:[%s2 + $0x1dc] sm:$0xf]
  %v228 = vld [vmem:[%s2 + $0x1e0] sm:$0xff]
  %v229 = vld [vmem:[%s2 + $0x1e8] sm:$0xf]
  %v230 = vld [vmem:[%s2 + $0x1ec] sm:$0xff]
  %v231 = vld [vmem:[%s2 + $0x1f4] sm:$0xf]
  %v232 = vld [vmem:[%s2 + $0x1f8] sm:$0xff]
  %v233 = vld [vmem:[%s2 + $0x200] sm:$0xf]
  %v234 = vld [vmem:[%s2 + $0x204] sm:$0xff]
  %v235 = vld [vmem:[%s2 + $0x20c] sm:$0xf]
  %v236 = vld [vmem:[%s2 + $0x210] sm:$0xff]
  %v237 = vld [vmem:[%s2 + $0x218] sm:$0xf]
  %v238 = vld [vmem:[%s2 + $0x21c] sm:$0xff]
  %v239 = vld [vmem:[%s2 + $0x224] sm:$0xf]
  %v240 = vld [vmem:[%s2 + $0x228] sm:$0xff]
  %v241 = vld [vmem:[%s2 + $0x230] sm:$0xf]
  %v242 = vld [vmem:[%s2 + $0x234] sm:$0xff]
  %v243 = vld [vmem:[%s2 + $0x23c] sm:$0xf]
  %v244 = vld [vmem:[%s2 + $0x240] sm:$0xff]
  %v245 = vld [vmem:[%s2 + $0x248] sm:$0xf]
  %v246 = vld [vmem:[%s2 + $0x24c] sm:$0xff]
  %v247 = vld [vmem:[%s2 + $0x254] sm:$0xf]
  %v248 = vld [vmem:[%s2 + $0x258] sm:$0xff]
  %v249 = vld [vmem:[%s2 + $0x260] sm:$0xf]
  %v250 = vld [vmem:[%s2 + $0x264] sm:$0xff]
  %v251 = vld [vmem:[%s2 + $0x26c] sm:$0xf]
  %v252 = vld [vmem:[%s2 + $0x270] sm:$0xff]
  %v253 = vld [vmem:[%s2 + $0x278] sm:$0xf]
  %v254 = vld [vmem:[%s2 + $0x27c] sm:$0xff]
  %v255 = vld [vmem:[%s2 + $0x284] sm:$0xf]
  %v256 = vld [vmem:[%s2 + $0x288] sm:$0xff]
  %v257 = vld [vmem:[%s2 + $0x290] sm:$0xf]
  %v258 = vld [vmem:[%s2 + $0x294] sm:$0xff]
  %v259 = vld [vmem:[%s2 + $0x29c] sm:$0xf]
  %v260 = vld [vmem:[%s2 + $0x2a0] sm:$0xff]
  %v261 = vld [vmem:[%s2 + $0x2a8] sm:$0xf]
  %v262 = vld [vmem:[%s2 + $0x2ac] sm:$0xff]
  %v263 = vld [vmem:[%s2 + $0x2b4] sm:$0xf]
  %v264 = vld [vmem:[%s2 + $0x2b8] sm:$0xff]
  %v265 = vld [vmem:[%s2 + $0x2c0] sm:$0xf]
  %v266 = vld [vmem:[%s2 + $0x2c4] sm:$0xff]
  %v267 = vld [vmem:[%s2 + $0x2cc] sm:$0xf]
  %v268 = vld [vmem:[%s2 + $0x2d0] sm:$0xff]
  %v269 = vld [vmem:[%s2 + $0x2d8] sm:$0xf]
  %v270 = vld [vmem:[%s2 + $0x2dc] sm:$0xff]
  %v271 = vld [vmem:[%s2 + $0x2e4] sm:$0xf]
  %v272 = vld [vmem:[%s2 + $0x2e8] sm:$0xff]
  %v273 = vld [vmem:[%s2 + $0x2f0] sm:$0xf]
  %v274 = vld [vmem:[%s2 + $0x2f4] sm:$0xff]
  %v275 = vld [vmem:[%s2 + $0x2fc] sm:$0xf]
  %v276 = vld [vmem:[%s2 + $0x300] sm:$0xff]
  %v277 = vld [vmem:[%s2 + $0x308] sm:$0xf]
  %v278 = vld [vmem:[%s2 + $0x30c] sm:$0xff]
  %v279 = vld [vmem:[%s2 + $0x314] sm:$0xf]
  %v280 = vld [vmem:[%s2 + $0x318] sm:$0xff]
  %v281 = vld [vmem:[%s2 + $0x320] sm:$0xf]
  %v282 = vld [vmem:[%s2 + $0x324] sm:$0xff]
  %v283 = vld [vmem:[%s2 + $0x32c] sm:$0xf]
  %v284 = vld [vmem:[%s2 + $0x330] sm:$0xff]
  %v285 = vld [vmem:[%s2 + $0x338] sm:$0xf]
  %v286 = vld [vmem:[%s2 + $0x33c] sm:$0xff]
  %v287 = vld [vmem:[%s2 + $0x344] sm:$0xf]
  %v288 = vld [vmem:[%s2 + $0x348] sm:$0xff]
  %v289 = vld [vmem:[%s2 + $0x350] sm:$0xf]
  %v290 = vld [vmem:[%s2 + $0x354] sm:$0xff]
  %v291 = vld [vmem:[%s2 + $0x35c] sm:$0xf]
  %v292 = vld [vmem:[%s2 + $0x360] sm:$0xff]
  %v293 = vld [vmem:[%s2 + $0x368] sm:$0xf]
  %v294 = vld [vmem:[%s2 + $0x36c] sm:$0xff]
  %v295 = vld [vmem:[%s2 + $0x374] sm:$0xf]
  %v296 = vld [vmem:[%s2 + $0x378] sm:$0xff]
  %v297 = vld [vmem:[%s2 + $0x380] sm:$0xf]
  %v298 = vld [vmem:[%s2 + $0x384] sm:$0xff]
  %v299 = vld [vmem:[%s2 + $0x38c] sm:$0xf]
  %v300 = vld [vmem:[%s2 + $0x390] sm:$0xff]
  %v301 = vld [vmem:[%s2 + $0x398] sm:$0xf]
  %v302 = vld [vmem:[%s2 + $0x39c] sm:$0xff]
  %v303 = vld [vmem:[%s2 + $0x3a4] sm:$0xf]
  %v304 = vld [vmem:[%s2 + $0x3a8] sm:$0xff]
  %v305 = vld [vmem:[%s2 + $0x3b0] sm:$0xf]
  %v306 = vld [vmem:[%s2 + $0x3b4] sm:$0xff]
  %v307 = vld [vmem:[%s2 + $0x3bc] sm:$0xf]
  %v308 = vld [vmem:[%s2 + $0x3c0] sm:$0xff]
  %v309 = vld [vmem:[%s2 + $0x3c8] sm:$0xf]
  %v310 = vld [vmem:[%s2 + $0x3cc] sm:$0xff]
  %v311 = vld [vmem:[%s2 + $0x3d4] sm:$0xf]
  %v312 = vld [vmem:[%s2 + $0x3d8] sm:$0xff]
  %v313 = vld [vmem:[%s2 + $0x3e0] sm:$0xf]
  %v314 = vld [vmem:[%s2 + $0x3e4] sm:$0xff]
  %v315 = vld [vmem:[%s2 + $0x3ec] sm:$0xf]
  %v316 = vld [vmem:[%s2 + $0x3f0] sm:$0xff]
  %v317 = vld [vmem:[%s2 + $0x3f8] sm:$0xf]
  %v318 = vld [vmem:[%s2 + $0x3fc] sm:$0xff]
  %v319 = vld [vmem:[%s2 + $0x404] sm:$0xf]
  %v320 = vld [vmem:[%s2 + $0x408] sm:$0xff]
  %v321 = vld [vmem:[%s2 + $0x410] sm:$0xf]
  %v322 = vld [vmem:[%s2 + $0x414] sm:$0xff]
  %v323 = vld [vmem:[%s2 + $0x41c] sm:$0xf]
  %v324 = vld [vmem:[%s2 + $0x420] sm:$0xff]
  %v325 = vld [vmem:[%s2 + $0x428] sm:$0xf]
  %v326 = vld [vmem:[%s2 + $0x42c] sm:$0xff]
  %v327 = vld [vmem:[%s2 + $0x434] sm:$0xf]
  %v328 = vld [vmem:[%s2 + $0x438] sm:$0xff]
  %v329 = vld [vmem:[%s2 + $0x440] sm:$0xf]
  %v330 = vld [vmem:[%s2 + $0x444] sm:$0xff]
  %v331 = vld [vmem:[%s2 + $0x44c] sm:$0xf]
  %v332 = vld [vmem:[%s2 + $0x450] sm:$0xff]
  %v333 = vld [vmem:[%s2 + $0x458] sm:$0xf]
  %v334 = vld [vmem:[%s2 + $0x45c] sm:$0xff]
  %v335 = vld [vmem:[%s2 + $0x464] sm:$0xf]
  %v336 = vld [vmem:[%s2 + $0x468] sm:$0xff]
  %v337 = vld [vmem:[%s2 + $0x470] sm:$0xf]
  %v338 = vld [vmem:[%s2 + $0x474] sm:$0xff]
  %v339 = vld [vmem:[%s2 + $0x47c] sm:$0xf]
  %v340 = vld [vmem:[%s2 + $0x480] sm:$0xff]
  %v341 = vld [vmem:[%s2 + $0x488] sm:$0xf]
  %v342 = vld [vmem:[%s2 + $0x48c] sm:$0xff]
  %v343 = vld [vmem:[%s2 + $0x494] sm:$0xf]
  %v344 = vld [vmem:[%s2 + $0x498] sm:$0xff]
  %v345 = vld [vmem:[%s2 + $0x4a0] sm:$0xf]
  %v346 = vld [vmem:[%s2 + $0x4a4] sm:$0xff]
  %v347 = vld [vmem:[%s2 + $0x4ac] sm:$0xf]
  %v348 = vld [vmem:[%s2 + $0x4b0] sm:$0xff]
  %v349 = vld [vmem:[%s2 + $0x4b8] sm:$0xf]
  %v350 = vld [vmem:[%s2 + $0x4bc] sm:$0xff]
  %v351 = vld [vmem:[%s2 + $0x4c4] sm:$0xf]
  %v352 = vld [vmem:[%s2 + $0x4c8] sm:$0xff]
  %v353 = vld [vmem:[%s2 + $0x4d0] sm:$0xf]
  %v354 = vld [vmem:[%s2 + $0x4d4] sm:$0xff]
  %v355 = vld [vmem:[%s2 + $0x4dc] sm:$0xf]
  %v356 = vld [vmem:[%s2 + $0x4e0] sm:$0xff]
  %v357 = vld [vmem:[%s2 + $0x4e8] sm:$0xf]
  %v358 = vld [vmem:[%s2 + $0x4ec] sm:$0xff]
  %v359 = vld [vmem:[%s2 + $0x4f4] sm:$0xf]
  %v360 = vld [vmem:[%s2 + $0x4f8] sm:$0xff]
  %v361 = vld [vmem:[%s2 + $0x500] sm:$0xf]
  %v362 = vld [vmem:[%s2 + $0x504] sm:$0xff]
  %v363 = vld [vmem:[%s2 + $0x50c] sm:$0xf]
  %v364 = vld [vmem:[%s2 + $0x510] sm:$0xff]
  %v365 = vld [vmem:[%s2 + $0x518] sm:$0xf]
  %v366 = vld [vmem:[%s2 + $0x51c] sm:$0xff]
  %v367 = vld [vmem:[%s2 + $0x524] sm:$0xf]
  %v368 = vld [vmem:[%s2 + $0x528] sm:$0xff]
  %v369 = vld [vmem:[%s2 + $0x530] sm:$0xf]
  %v370 = vld [vmem:[%s2 + $0x534] sm:$0xff]
  %v371 = vld [vmem:[%s2 + $0x53c] sm:$0xf]
  %v372 = vld [vmem:[%s2 + $0x540] sm:$0xff]
  %v373 = vld [vmem:[%s2 + $0x548] sm:$0xf]
  %v374 = vld [vmem:[%s2 + $0x54c] sm:$0xff]
  %v375 = vld [vmem:[%s2 + $0x554] sm:$0xf]
  %v376 = vld [vmem:[%s2 + $0x558] sm:$0xff]
  %v377 = vld [vmem:[%s2 + $0x560] sm:$0xf]
  %v378 = vld [vmem:[%s2 + $0x564] sm:$0xff]
  %v379 = vld [vmem:[%s2 + $0x56c] sm:$0xf]
  %v380 = vld [vmem:[%s2 + $0x570] sm:$0xff]
  %v381 = vld [vmem:[%s2 + $0x578] sm:$0xf]
  %v382 = vld [vmem:[%s2 + $0x57c] sm:$0xff]
  %v383 = vld [vmem:[%s2 + $0x584] sm:$0xf]
  %v384 = vld [vmem:[%s2 + $0x588] sm:$0xff]
  %v385 = vld [vmem:[%s2 + $0x590] sm:$0xf]
  %v386 = vld [vmem:[%s2 + $0x594] sm:$0xff]
  %v387 = vld [vmem:[%s2 + $0x59c] sm:$0xf]
  %v388 = vld [vmem:[%s2 + $0x5a0] sm:$0xff]
  %v389 = vld [vmem:[%s2 + $0x5a8] sm:$0xf]
  %v390 = vld [vmem:[%s2 + $0x5ac] sm:$0xff]
  %v391 = vld [vmem:[%s2 + $0x5b4] sm:$0xf]
  %v392 = vld [vmem:[%s2 + $0x5b8] sm:$0xff]
  %v393 = vld [vmem:[%s2 + $0x5c0] sm:$0xf]
  %v394 = vld [vmem:[%s2 + $0x5c4] sm:$0xff]
  %v395 = vld [vmem:[%s2 + $0x5cc] sm:$0xf]
  %v396 = vld [vmem:[%s2 + $0x5d0] sm:$0xff]
  %v397 = vld [vmem:[%s2 + $0x5d8] sm:$0xf]
  %v398 = vld [vmem:[%s2 + $0x5dc] sm:$0xff]
  %v399 = vld [vmem:[%s2 + $0x5e4] sm:$0xf]
  %v400 = vld [vmem:[%s2 + $0x5e8] sm:$0xff]
  %v401 = vld [vmem:[%s2 + $0x5f0] sm:$0xf]
  %v402 = vld [vmem:[%s2 + $0x5f4] sm:$0xff]
  %v403 = vld [vmem:[%s2 + $0x5fc] sm:$0xf]
  %v404 = vld [vmem:[%s2 + $0x600] sm:$0xff]
  %v405 = vld [vmem:[%s2 + $0x608] sm:$0xf]
  %v406 = vld [vmem:[%s2 + $0x60c] sm:$0xff]
  %v407 = vld [vmem:[%s2 + $0x614] sm:$0xf]
  %v408 = vld [vmem:[%s2 + $0x618] sm:$0xff]
  %v409 = vld [vmem:[%s2 + $0x620] sm:$0xf]
  %v410 = vld [vmem:[%s2 + $0x624] sm:$0xff]
  %v411 = vld [vmem:[%s2 + $0x62c] sm:$0xf]
  %v412 = vld [vmem:[%s2 + $0x630] sm:$0xff]
  %v413 = vld [vmem:[%s2 + $0x638] sm:$0xf]
  %v414 = vld [vmem:[%s2 + $0x63c] sm:$0xff]
  %v415 = vld [vmem:[%s2 + $0x644] sm:$0xf]
  %v416 = vld [vmem:[%s2 + $0x648] sm:$0xff]
  %v417 = vld [vmem:[%s2 + $0x650] sm:$0xf]
  %v418 = vld [vmem:[%s2 + $0x654] sm:$0xff]
  %v419 = vld [vmem:[%s2 + $0x65c] sm:$0xf]
  %v420 = vld [vmem:[%s2 + $0x660] sm:$0xff]
  %v421 = vld [vmem:[%s2 + $0x668] sm:$0xf]
  %v422 = vld [vmem:[%s2 + $0x66c] sm:$0xff]
  %v423 = vld [vmem:[%s2 + $0x674] sm:$0xf]
  %v424 = vld [vmem:[%s2 + $0x678] sm:$0xff]
  %v425 = vld [vmem:[%s2 + $0x680] sm:$0xf]
  %v426 = vld [vmem:[%s2 + $0x684] sm:$0xff]
  %v427 = vld [vmem:[%s2 + $0x68c] sm:$0xf]
  %v428 = vld [vmem:[%s2 + $0x690] sm:$0xff]
  %v429 = vld [vmem:[%s2 + $0x698] sm:$0xf]
  %v430 = vld [vmem:[%s2 + $0x69c] sm:$0xff]
  %v431 = vld [vmem:[%s2 + $0x6a4] sm:$0xf]
  %v432 = vld [vmem:[%s2 + $0x6a8] sm:$0xff]
  %v433 = vld [vmem:[%s2 + $0x6b0] sm:$0xf]
  %v434 = vld [vmem:[%s2 + $0x6b4] sm:$0xff]
  %v435 = vld [vmem:[%s2 + $0x6bc] sm:$0xf]
  %v436 = vld [vmem:[%s2 + $0x6c0] sm:$0xff]
  %v437 = vld [vmem:[%s2 + $0x6c8] sm:$0xf]
  %v438 = vld [vmem:[%s2 + $0x6cc] sm:$0xff]
  %v439 = vld [vmem:[%s2 + $0x6d4] sm:$0xf]
  %v440 = vld [vmem:[%s2 + $0x6d8] sm:$0xff]
  %v441 = vld [vmem:[%s2 + $0x6e0] sm:$0xf]
  %v442 = vld [vmem:[%s2 + $0x6e4] sm:$0xff]
  %v443 = vld [vmem:[%s2 + $0x6ec] sm:$0xf]
  %v444 = vld [vmem:[%s2 + $0x6f0] sm:$0xff]
  %v445 = vld [vmem:[%s2 + $0x6f8] sm:$0xf]
  %v446 = vld [vmem:[%s2 + $0x6fc] sm:$0xff]
  %v447 = vld [vmem:[%s2 + $0x704] sm:$0xf]
  %v448 = vld [vmem:[%s2 + $0x708] sm:$0xff]
  %v449 = vld [vmem:[%s2 + $0x710] sm:$0xf]
  %v450 = vld [vmem:[%s2 + $0x714] sm:$0xff]
  %v451 = vld [vmem:[%s2 + $0x71c] sm:$0xf]
  %v452 = vld [vmem:[%s2 + $0x720] sm:$0xff]
  %v453 = vld [vmem:[%s2 + $0x728] sm:$0xf]
  %v454 = vld [vmem:[%s2 + $0x72c] sm:$0xff]
  %v455 = vld [vmem:[%s2 + $0x734] sm:$0xf]
  %v456 = vld [vmem:[%s2 + $0x738] sm:$0xff]
  %v457 = vld [vmem:[%s2 + $0x740] sm:$0xf]
  %v458 = vld [vmem:[%s2 + $0x744] sm:$0xff]
  %v459 = vld [vmem:[%s2 + $0x74c] sm:$0xf]
  %v460 = vld [vmem:[%s2 + $0x750] sm:$0xff]
  %v461 = vld [vmem:[%s2 + $0x758] sm:$0xf]
  %v462 = vld [vmem:[%s2 + $0x75c] sm:$0xff]
  %v463 = vld [vmem:[%s2 + $0x764] sm:$0xf]
  %v464 = vld [vmem:[%s2 + $0x768] sm:$0xff]
  %v465 = vld [vmem:[%s2 + $0x770] sm:$0xf]
  %v466 = vld [vmem:[%s2 + $0x774] sm:$0xff]
  %v467 = vld [vmem:[%s2 + $0x77c] sm:$0xf]
  %v468 = vld [vmem:[%s2 + $0x780] sm:$0xff]
  %v469 = vld [vmem:[%s2 + $0x788] sm:$0xf]
  %v470 = vld [vmem:[%s2 + $0x78c] sm:$0xff]
  %v471 = vld [vmem:[%s2 + $0x794] sm:$0xf]
  %v472 = vld [vmem:[%s2 + $0x798] sm:$0xff]
  %v473 = vld [vmem:[%s2 + $0x7a0] sm:$0xf]
  %v474 = vld [vmem:[%s2 + $0x7a4] sm:$0xff]
  %v475 = vld [vmem:[%s2 + $0x7ac] sm:$0xf]
  %v476 = vld [vmem:[%s2 + $0x7b0] sm:$0xff]
  %v477 = vld [vmem:[%s2 + $0x7b8] sm:$0xf]
  %v478 = vld [vmem:[%s2 + $0x7bc] sm:$0xff]
  %v479 = vld [vmem:[%s2 + $0x7c4] sm:$0xf]
  %v480 = vld [vmem:[%s2 + $0x7c8] sm:$0xff]
  %v481 = vld [vmem:[%s2 + $0x7d0] sm:$0xf]
  %v482 = vld [vmem:[%s2 + $0x7d4] sm:$0xff]
  %v483 = vld [vmem:[%s2 + $0x7dc] sm:$0xf]
  %v484 = vld [vmem:[%s2 + $0x7e0] sm:$0xff]
  %v485 = vld [vmem:[%s2 + $0x7e8] sm:$0xf]
  %v486 = vld [vmem:[%s2 + $0x7ec] sm:$0xff]
  %v487 = vld [vmem:[%s2 + $0x7f4] sm:$0xf]
  %v488 = vld [vmem:[%s2 + $0x7f8] sm:$0xff]
  %v489 = vld [vmem:[%s2 + $0x800] sm:$0xf]
  %v490 = vld [vmem:[%s2 + $0x804] sm:$0xff]
  %v491 = vld [vmem:[%s2 + $0x80c] sm:$0xf]
  %v492 = vld [vmem:[%s2 + $0x810] sm:$0xff]
  %v493 = vld [vmem:[%s2 + $0x818] sm:$0xf]
  %v494 = vld [vmem:[%s2 + $0x81c] sm:$0xff]
  %v495 = vld [vmem:[%s2 + $0x824] sm:$0xf]
  %v496 = vld [vmem:[%s2 + $0x828] sm:$0xff]
  %v497 = vld [vmem:[%s2 + $0x830] sm:$0xf]
  %v498 = vld [vmem:[%s2 + $0x834] sm:$0xff]
  %v499 = vld [vmem:[%s2 + $0x83c] sm:$0xf]
  %v500 = vld [vmem:[%s2 + $0x840] sm:$0xff]
  %v501 = vld [vmem:[%s2 + $0x848] sm:$0xf]
  %v502 = vld [vmem:[%s2 + $0x84c] sm:$0xff]
  %v503 = vld [vmem:[%s2 + $0x854] sm:$0xf]
  %v504 = vld [vmem:[%s2 + $0x858] sm:$0xff]
  %v505 = vld [vmem:[%s2 + $0x860] sm:$0xf]
  %v506 = vld [vmem:[%s2 + $0x864] sm:$0xff]
  %v507 = vld [vmem:[%s2 + $0x86c] sm:$0xf]
  %v508 = vld [vmem:[%s2 + $0x870] sm:$0xff]
  %v509 = vld [vmem:[%s2 + $0x878] sm:$0xf]
  %v510 = vld [vmem:[%s2 + $0x87c] sm:$0xff]
  %v511 = vld [vmem:[%s2 + $0x884] sm:$0xf]
  %v512 = vld [vmem:[%s2 + $0x888] sm:$0xff]
  %v513 = vld [vmem:[%s2 + $0x890] sm:$0xf]
  %v514 = vld [vmem:[%s2 + $0x894] sm:$0xff]
  %v515 = vld [vmem:[%s2 + $0x89c] sm:$0xf]
  %v516 = vld [vmem:[%s2 + $0x8a0] sm:$0xff]
  %v517 = vld [vmem:[%s2 + $0x8a8] sm:$0xf]
  %v518 = vld [vmem:[%s2 + $0x8ac] sm:$0xff]
  %v519 = vld [vmem:[%s2 + $0x8b4] sm:$0xf]
  %v520 = vld [vmem:[%s2 + $0x8b8] sm:$0xff]
  %v521 = vld [vmem:[%s2 + $0x8c0] sm:$0xf]
  %v522 = vld [vmem:[%s2 + $0x8c4] sm:$0xff]
  %v523 = vld [vmem:[%s2 + $0x8cc] sm:$0xf]
  %v524 = vld [vmem:[%s2 + $0x8d0] sm:$0xff]
  %v525 = vld [vmem:[%s2 + $0x8d8] sm:$0xf]
  %v526 = vld [vmem:[%s2 + $0x8dc] sm:$0xff]
  %v527 = vld [vmem:[%s2 + $0x8e4] sm:$0xf]
  %v528 = vld [vmem:[%s2 + $0x8e8] sm:$0xff]
  %v529 = vld [vmem:[%s2 + $0x8f0] sm:$0xf]
  %v530 = vld [vmem:[%s2 + $0x8f4] sm:$0xff]
  %v531 = vld [vmem:[%s2 + $0x8fc] sm:$0xf]
  %v532 = vld [vmem:[%s2 + $0x900] sm:$0xff]
  %v533 = vld [vmem:[%s2 + $0x908] sm:$0xf]
  %v534 = vld [vmem:[%s2 + $0x90c] sm:$0xff]
  %v535 = vld [vmem:[%s2 + $0x914] sm:$0xf]
  %v536 = vld [vmem:[%s2 + $0x918] sm:$0xff]
  %v537 = vld [vmem:[%s2 + $0x920] sm:$0xf]
  %v538 = vld [vmem:[%s2 + $0x924] sm:$0xff]
  %v539 = vld [vmem:[%s2 + $0x92c] sm:$0xf]
  %v540 = vld [vmem:[%s2 + $0x930] sm:$0xff]
  %v541 = vld [vmem:[%s2 + $0x938] sm:$0xf]
  %v542 = vld [vmem:[%s2 + $0x93c] sm:$0xff]
  %v543 = vld [vmem:[%s2 + $0x944] sm:$0xf]
  %v544 = vld [vmem:[%s2 + $0x948] sm:$0xff]
  %v545 = vld [vmem:[%s2 + $0x950] sm:$0xf]
  %v546 = vld [vmem:[%s2 + $0x954] sm:$0xff]
  %v547 = vld [vmem:[%s2 + $0x95c] sm:$0xf]
  %v548 = vld [vmem:[%s2 + $0x960] sm:$0xff]
  %v549 = vld [vmem:[%s2 + $0x968] sm:$0xf]
  %v550 = vld [vmem:[%s2 + $0x96c] sm:$0xff]
  %v551 = vld [vmem:[%s2 + $0x974] sm:$0xf]
  %v552 = vld [vmem:[%s2 + $0x978] sm:$0xff]
  %v553 = vld [vmem:[%s2 + $0x980] sm:$0xf]
  %v554 = vld [vmem:[%s2 + $0x984] sm:$0xff]
  %v555 = vld [vmem:[%s2 + $0x98c] sm:$0xf]
  %v556 = vld [vmem:[%s2 + $0x990] sm:$0xff]
  %v557 = vld [vmem:[%s2 + $0x998] sm:$0xf]
  %v558 = vld [vmem:[%s2 + $0x99c] sm:$0xff]
  %v559 = vld [vmem:[%s2 + $0x9a4] sm:$0xf]
  %v560 = vld [vmem:[%s2 + $0x9a8] sm:$0xff]
  %v561 = vld [vmem:[%s2 + $0x9b0] sm:$0xf]
  %v562 = vld [vmem:[%s2 + $0x9b4] sm:$0xff]
  %v563 = vld [vmem:[%s2 + $0x9bc] sm:$0xf]
  %v564 = vld [vmem:[%s2 + $0x9c0] sm:$0xff]
  %v565 = vld [vmem:[%s2 + $0x9c8] sm:$0xf]
  %v566 = vld [vmem:[%s2 + $0x9cc] sm:$0xff]
  %v567 = vld [vmem:[%s2 + $0x9d4] sm:$0xf]
  %v568 = vld [vmem:[%s2 + $0x9d8] sm:$0xff]
  %v569 = vld [vmem:[%s2 + $0x9e0] sm:$0xf]
  %v570 = vld [vmem:[%s2 + $0x9e4] sm:$0xff]
  %v571 = vld [vmem:[%s2 + $0x9ec] sm:$0xf]
  %v572 = vld [vmem:[%s2 + $0x9f0] sm:$0xff]
  %v573 = vld [vmem:[%s2 + $0x9f8] sm:$0xf]
  %v574 = vld [vmem:[%s2 + $0x9fc] sm:$0xff]
  %v575 = vld [vmem:[%s2 + $0xa04] sm:$0xf]
  %v576 = vld [vmem:[%s2 + $0xa08] sm:$0xff]
  %v577 = vld [vmem:[%s2 + $0xa10] sm:$0xf]
  %v578 = vld [vmem:[%s2 + $0xa14] sm:$0xff]
  %v579 = vld [vmem:[%s2 + $0xa1c] sm:$0xf]
  %v580 = vld [vmem:[%s2 + $0xa20] sm:$0xff]
  %v581 = vld [vmem:[%s2 + $0xa28] sm:$0xf]
  %v582 = vld [vmem:[%s2 + $0xa2c] sm:$0xff]
  %v583 = vld [vmem:[%s2 + $0xa34] sm:$0xf]
  %v584 = vld [vmem:[%s2 + $0xa38] sm:$0xff]
  %v585 = vld [vmem:[%s2 + $0xa40] sm:$0xf]
  %v586 = vld [vmem:[%s2 + $0xa44] sm:$0xff]
  %v587 = vld [vmem:[%s2 + $0xa4c] sm:$0xf]
  %v588 = vld [vmem:[%s2 + $0xa50] sm:$0xff]
  %v589 = vld [vmem:[%s2 + $0xa58] sm:$0xf]
  %v590 = vld [vmem:[%s2 + $0xa5c] sm:$0xff]
  %v591 = vld [vmem:[%s2 + $0xa64] sm:$0xf]
  %v592 = vld [vmem:[%s2 + $0xa68] sm:$0xff]
  %v593 = vld [vmem:[%s2 + $0xa70] sm:$0xf]
  %v594 = vld [vmem:[%s2 + $0xa74] sm:$0xff]
  %v595 = vld [vmem:[%s2 + $0xa7c] sm:$0xf]
  %v596 = vld [vmem:[%s2 + $0xa80] sm:$0xff]
  %v597 = vld [vmem:[%s2 + $0xa88] sm:$0xf]
  %v598 = vld [vmem:[%s2 + $0xa8c] sm:$0xff]
  %v599 = vld [vmem:[%s2 + $0xa94] sm:$0xf]
  %v600 = vld [vmem:[%s2 + $0xa98] sm:$0xff]
  %v601 = vld [vmem:[%s2 + $0xaa0] sm:$0xf]
  %v602 = vld [vmem:[%s2 + $0xaa4] sm:$0xff]
  %v603 = vld [vmem:[%s2 + $0xaac] sm:$0xf]
  %v1060 = vunpack.c.l.b16 %v148
  %v1061 = vunpack.c.h.b16 %v148
  %v1062 = vunpack.c.l.b16 %v149
  %v1063 = vunpack.c.l.b16 %v150
  %v1064 = vunpack.c.h.b16 %v150
  %v1065 = vunpack.c.l.b16 %v151
  %v1066 = vunpack.c.l.b16 %v152
  %v1067 = vunpack.c.h.b16 %v152
  %v1068 = vunpack.c.l.b16 %v153
  %v1069 = vunpack.c.l.b16 %v154
  %v1070 = vunpack.c.h.b16 %v154
  %v1071 = vunpack.c.l.b16 %v155
  %v1072 = vunpack.c.l.b16 %v156
  %v1073 = vunpack.c.h.b16 %v156
  %v1074 = vunpack.c.l.b16 %v157
  %v1075 = vunpack.c.l.b16 %v158
  %v1076 = vunpack.c.h.b16 %v158
  %v1077 = vunpack.c.l.b16 %v159
  %v1078 = vunpack.c.l.b16 %v160
  %v1079 = vunpack.c.h.b16 %v160
  %v1080 = vunpack.c.l.b16 %v161
  %v1081 = vunpack.c.l.b16 %v162
  %v1082 = vunpack.c.h.b16 %v162
  %v1083 = vunpack.c.l.b16 %v163
  %v1084 = vunpack.c.l.b16 %v164
  %v1085 = vunpack.c.h.b16 %v164
  %v1086 = vunpack.c.l.b16 %v165
  %v1087 = vunpack.c.l.b16 %v166
  %v1088 = vunpack.c.h.b16 %v166
  %v1089 = vunpack.c.l.b16 %v167
  %v1090 = vunpack.c.l.b16 %v168
  %v1091 = vunpack.c.h.b16 %v168
  %v1092 = vunpack.c.l.b16 %v169
  %v1093 = vunpack.c.l.b16 %v170
  %v1094 = vunpack.c.h.b16 %v170
  %v1095 = vunpack.c.l.b16 %v171
  %v1096 = vunpack.c.l.b16 %v172
  %v1097 = vunpack.c.h.b16 %v172
  %v1098 = vunpack.c.l.b16 %v173
  %v1099 = vunpack.c.l.b16 %v174
  %v1100 = vunpack.c.h.b16 %v174
  %v1101 = vunpack.c.l.b16 %v175
  %v1102 = vunpack.c.l.b16 %v176
  %v1103 = vunpack.c.h.b16 %v176
  %v1104 = vunpack.c.l.b16 %v177
  %v1105 = vunpack.c.l.b16 %v178
  %v1106 = vunpack.c.h.b16 %v178
  %v1107 = vunpack.c.l.b16 %v179
  %v1108 = vunpack.c.l.b16 %v180
  %v1109 = vunpack.c.h.b16 %v180
  %v1110 = vunpack.c.l.b16 %v181
  %v1111 = vunpack.c.l.b16 %v182
  %v1112 = vunpack.c.h.b16 %v182
  %v1113 = vunpack.c.l.b16 %v183
  %v1114 = vunpack.c.l.b16 %v184
  %v1115 = vunpack.c.h.b16 %v184
  %v1116 = vunpack.c.l.b16 %v185
  %v1117 = vunpack.c.l.b16 %v186
  %v1118 = vunpack.c.h.b16 %v186
  %v1119 = vunpack.c.l.b16 %v187
  %v1120 = vunpack.c.l.b16 %v188
  %v1121 = vunpack.c.h.b16 %v188
  %v1122 = vunpack.c.l.b16 %v189
  %v1123 = vunpack.c.l.b16 %v190
  %v1124 = vunpack.c.h.b16 %v190
  %v1125 = vunpack.c.l.b16 %v191
  %v1126 = vunpack.c.l.b16 %v192
  %v1127 = vunpack.c.h.b16 %v192
  %v1128 = vunpack.c.l.b16 %v193
  %v1129 = vunpack.c.l.b16 %v194
  %v1130 = vunpack.c.h.b16 %v194
  %v1131 = vunpack.c.l.b16 %v195
  %v1132 = vunpack.c.l.b16 %v196
  %v1133 = vunpack.c.h.b16 %v196
  %v1134 = vunpack.c.l.b16 %v197
  %v1135 = vunpack.c.l.b16 %v198
  %v1136 = vunpack.c.h.b16 %v198
  %v1137 = vunpack.c.l.b16 %v199
  %v1138 = vunpack.c.l.b16 %v200
  %v1139 = vunpack.c.h.b16 %v200
  %v1140 = vunpack.c.l.b16 %v201
  %v1141 = vunpack.c.l.b16 %v202
  %v1142 = vunpack.c.h.b16 %v202
  %v1143 = vunpack.c.l.b16 %v203
  %v1144 = vunpack.c.l.b16 %v204
  %v1145 = vunpack.c.h.b16 %v204
  %v1146 = vunpack.c.l.b16 %v205
  %v1147 = vunpack.c.l.b16 %v206
  %v1148 = vunpack.c.h.b16 %v206
  %v1149 = vunpack.c.l.b16 %v207
  %v1150 = vunpack.c.l.b16 %v208
  %v1151 = vunpack.c.h.b16 %v208
  %v1152 = vunpack.c.l.b16 %v209
  %v1153 = vunpack.c.l.b16 %v210
  %v1154 = vunpack.c.h.b16 %v210
  %v1155 = vunpack.c.l.b16 %v211
  %v1156 = vunpack.c.l.b16 %v212
  %v1157 = vunpack.c.h.b16 %v212
  %v1158 = vunpack.c.l.b16 %v213
  %v1159 = vunpack.c.l.b16 %v214
  %v1160 = vunpack.c.h.b16 %v214
  %v1161 = vunpack.c.l.b16 %v215
  %v1162 = vunpack.c.l.b16 %v216
  %v1163 = vunpack.c.h.b16 %v216
  %v1164 = vunpack.c.l.b16 %v217
  %v1165 = vunpack.c.l.b16 %v218
  %v1166 = vunpack.c.h.b16 %v218
  %v1167 = vunpack.c.l.b16 %v219
  %v1168 = vunpack.c.l.b16 %v220
  %v1169 = vunpack.c.h.b16 %v220
  %v1170 = vunpack.c.l.b16 %v221
  %v1171 = vunpack.c.l.b16 %v222
  %v1172 = vunpack.c.h.b16 %v222
  %v1173 = vunpack.c.l.b16 %v223
  %v1174 = vunpack.c.l.b16 %v224
  %v1175 = vunpack.c.h.b16 %v224
  %v1176 = vunpack.c.l.b16 %v225
  %v1177 = vunpack.c.l.b16 %v226
  %v1178 = vunpack.c.h.b16 %v226
  %v1179 = vunpack.c.l.b16 %v227
  %v1180 = vunpack.c.l.b16 %v228
  %v1181 = vunpack.c.h.b16 %v228
  %v1182 = vunpack.c.l.b16 %v229
  %v1183 = vunpack.c.l.b16 %v230
  %v1184 = vunpack.c.h.b16 %v230
  %v1185 = vunpack.c.l.b16 %v231
  %v1186 = vunpack.c.l.b16 %v232
  %v1187 = vunpack.c.h.b16 %v232
  %v1188 = vunpack.c.l.b16 %v233
  %v1189 = vunpack.c.l.b16 %v234
  %v1190 = vunpack.c.h.b16 %v234
  %v1191 = vunpack.c.l.b16 %v235
  %v1192 = vunpack.c.l.b16 %v236
  %v1193 = vunpack.c.h.b16 %v236
  %v1194 = vunpack.c.l.b16 %v237
  %v1195 = vunpack.c.l.b16 %v238
  %v1196 = vunpack.c.h.b16 %v238
  %v1197 = vunpack.c.l.b16 %v239
  %v1198 = vunpack.c.l.b16 %v240
  %v1199 = vunpack.c.h.b16 %v240
  %v1200 = vunpack.c.l.b16 %v241
  %v1201 = vunpack.c.l.b16 %v242
  %v1202 = vunpack.c.h.b16 %v242
  %v1203 = vunpack.c.l.b16 %v243
  %v1204 = vunpack.c.l.b16 %v244
  %v1205 = vunpack.c.h.b16 %v244
  %v1206 = vunpack.c.l.b16 %v245
  %v1207 = vunpack.c.l.b16 %v246
  %v1208 = vunpack.c.h.b16 %v246
  %v1209 = vunpack.c.l.b16 %v247
  %v1210 = vunpack.c.l.b16 %v248
  %v1211 = vunpack.c.h.b16 %v248
  %v1212 = vunpack.c.l.b16 %v249
  %v1213 = vunpack.c.l.b16 %v250
  %v1214 = vunpack.c.h.b16 %v250
  %v1215 = vunpack.c.l.b16 %v251
  %v1216 = vunpack.c.l.b16 %v252
  %v1217 = vunpack.c.h.b16 %v252
  %v1218 = vunpack.c.l.b16 %v253
  %v1219 = vunpack.c.l.b16 %v254
  %v1220 = vunpack.c.h.b16 %v254
  %v1221 = vunpack.c.l.b16 %v255
  %v1222 = vunpack.c.l.b16 %v256
  %v1223 = vunpack.c.h.b16 %v256
  %v1224 = vunpack.c.l.b16 %v257
  %v1225 = vunpack.c.l.b16 %v258
  %v1226 = vunpack.c.h.b16 %v258
  %v1227 = vunpack.c.l.b16 %v259
  %v1228 = vunpack.c.l.b16 %v260
  %v1229 = vunpack.c.h.b16 %v260
  %v1230 = vunpack.c.l.b16 %v261
  %v1231 = vunpack.c.l.b16 %v262
  %v1232 = vunpack.c.h.b16 %v262
  %v1233 = vunpack.c.l.b16 %v263
  %v1234 = vunpack.c.l.b16 %v264
  %v1235 = vunpack.c.h.b16 %v264
  %v1236 = vunpack.c.l.b16 %v265
  %v1237 = vunpack.c.l.b16 %v266
  %v1238 = vunpack.c.h.b16 %v266
  %v1239 = vunpack.c.l.b16 %v267
  %v1240 = vunpack.c.l.b16 %v268
  %v1241 = vunpack.c.h.b16 %v268
  %v1242 = vunpack.c.l.b16 %v269
  %v1243 = vunpack.c.l.b16 %v270
  %v1244 = vunpack.c.h.b16 %v270
  %v1245 = vunpack.c.l.b16 %v271
  %v1246 = vunpack.c.l.b16 %v272
  %v1247 = vunpack.c.h.b16 %v272
  %v1248 = vunpack.c.l.b16 %v273
  %v1249 = vunpack.c.l.b16 %v274
  %v1250 = vunpack.c.h.b16 %v274
  %v1251 = vunpack.c.l.b16 %v275
  %v1252 = vunpack.c.l.b16 %v276
  %v1253 = vunpack.c.h.b16 %v276
  %v1254 = vunpack.c.l.b16 %v277
  %v1255 = vunpack.c.l.b16 %v278
  %v1256 = vunpack.c.h.b16 %v278
  %v1257 = vunpack.c.l.b16 %v279
  %v1258 = vunpack.c.l.b16 %v280
  %v1259 = vunpack.c.h.b16 %v280
  %v1260 = vunpack.c.l.b16 %v281
  %v1261 = vunpack.c.l.b16 %v282
  %v1262 = vunpack.c.h.b16 %v282
  %v1263 = vunpack.c.l.b16 %v283
  %v1264 = vunpack.c.l.b16 %v284
  %v1265 = vunpack.c.h.b16 %v284
  %v1266 = vunpack.c.l.b16 %v285
  %v1267 = vunpack.c.l.b16 %v286
  %v1268 = vunpack.c.h.b16 %v286
  %v1269 = vunpack.c.l.b16 %v287
  %v1270 = vunpack.c.l.b16 %v288
  %v1271 = vunpack.c.h.b16 %v288
  %v1272 = vunpack.c.l.b16 %v289
  %v1273 = vunpack.c.l.b16 %v290
  %v1274 = vunpack.c.h.b16 %v290
  %v1275 = vunpack.c.l.b16 %v291
  %v1276 = vunpack.c.l.b16 %v292
  %v1277 = vunpack.c.h.b16 %v292
  %v1278 = vunpack.c.l.b16 %v293
  %v1279 = vunpack.c.l.b16 %v294
  %v1280 = vunpack.c.h.b16 %v294
  %v1281 = vunpack.c.l.b16 %v295
  %v1282 = vunpack.c.l.b16 %v296
  %v1283 = vunpack.c.h.b16 %v296
  %v1284 = vunpack.c.l.b16 %v297
  %v1285 = vunpack.c.l.b16 %v298
  %v1286 = vunpack.c.h.b16 %v298
  %v1287 = vunpack.c.l.b16 %v299
  %v1288 = vunpack.c.l.b16 %v300
  %v1289 = vunpack.c.h.b16 %v300
  %v1290 = vunpack.c.l.b16 %v301
  %v1291 = vunpack.c.l.b16 %v302
  %v1292 = vunpack.c.h.b16 %v302
  %v1293 = vunpack.c.l.b16 %v303
  %v1294 = vunpack.c.l.b16 %v304
  %v1295 = vunpack.c.h.b16 %v304
  %v1296 = vunpack.c.l.b16 %v305
  %v1297 = vunpack.c.l.b16 %v306
  %v1298 = vunpack.c.h.b16 %v306
  %v1299 = vunpack.c.l.b16 %v307
  %v1300 = vunpack.c.l.b16 %v308
  %v1301 = vunpack.c.h.b16 %v308
  %v1302 = vunpack.c.l.b16 %v309
  %v1303 = vunpack.c.l.b16 %v310
  %v1304 = vunpack.c.h.b16 %v310
  %v1305 = vunpack.c.l.b16 %v311
  %v1306 = vunpack.c.l.b16 %v312
  %v1307 = vunpack.c.h.b16 %v312
  %v1308 = vunpack.c.l.b16 %v313
  %v1309 = vunpack.c.l.b16 %v314
  %v1310 = vunpack.c.h.b16 %v314
  %v1311 = vunpack.c.l.b16 %v315
  %v1312 = vunpack.c.l.b16 %v316
  %v1313 = vunpack.c.h.b16 %v316
  %v1314 = vunpack.c.l.b16 %v317
  %v1315 = vunpack.c.l.b16 %v318
  %v1316 = vunpack.c.h.b16 %v318
  %v1317 = vunpack.c.l.b16 %v319
  %v1318 = vunpack.c.l.b16 %v320
  %v1319 = vunpack.c.h.b16 %v320
  %v1320 = vunpack.c.l.b16 %v321
  %v1321 = vunpack.c.l.b16 %v322
  %v1322 = vunpack.c.h.b16 %v322
  %v1323 = vunpack.c.l.b16 %v323
  %v1324 = vunpack.c.l.b16 %v324
  %v1325 = vunpack.c.h.b16 %v324
  %v1326 = vunpack.c.l.b16 %v325
  %v1327 = vunpack.c.l.b16 %v326
  %v1328 = vunpack.c.h.b16 %v326
  %v1329 = vunpack.c.l.b16 %v327
  %v1330 = vunpack.c.l.b16 %v328
  %v1331 = vunpack.c.h.b16 %v328
  %v1332 = vunpack.c.l.b16 %v329
  %v1333 = vunpack.c.l.b16 %v330
  %v1334 = vunpack.c.h.b16 %v330
  %v1335 = vunpack.c.l.b16 %v331
  %v1336 = vunpack.c.l.b16 %v332
  %v1337 = vunpack.c.h.b16 %v332
  %v1338 = vunpack.c.l.b16 %v333
  %v1339 = vunpack.c.l.b16 %v334
  %v1340 = vunpack.c.h.b16 %v334
  %v1341 = vunpack.c.l.b16 %v335
  %v1342 = vunpack.c.l.b16 %v336
  %v1343 = vunpack.c.h.b16 %v336
  %v1344 = vunpack.c.l.b16 %v337
  %v1345 = vunpack.c.l.b16 %v338
  %v1346 = vunpack.c.h.b16 %v338
  %v1347 = vunpack.c.l.b16 %v339
  %v1348 = vunpack.c.l.b16 %v340
  %v1349 = vunpack.c.h.b16 %v340
  %v1350 = vunpack.c.l.b16 %v341
  %v1351 = vunpack.c.l.b16 %v342
  %v1352 = vunpack.c.h.b16 %v342
  %v1353 = vunpack.c.l.b16 %v343
  %v1354 = vunpack.c.l.b16 %v344
  %v1355 = vunpack.c.h.b16 %v344
  %v1356 = vunpack.c.l.b16 %v345
  %v1357 = vunpack.c.l.b16 %v346
  %v1358 = vunpack.c.h.b16 %v346
  %v1359 = vunpack.c.l.b16 %v347
  %v1360 = vunpack.c.l.b16 %v348
  %v1361 = vunpack.c.h.b16 %v348
  %v1362 = vunpack.c.l.b16 %v349
  %v1363 = vunpack.c.l.b16 %v350
  %v1364 = vunpack.c.h.b16 %v350
  %v1365 = vunpack.c.l.b16 %v351
  %v1366 = vunpack.c.l.b16 %v352
  %v1367 = vunpack.c.h.b16 %v352
  %v1368 = vunpack.c.l.b16 %v353
  %v1369 = vunpack.c.l.b16 %v354
  %v1370 = vunpack.c.h.b16 %v354
  %v1371 = vunpack.c.l.b16 %v355
  %v1372 = vunpack.c.l.b16 %v356
  %v1373 = vunpack.c.h.b16 %v356
  %v1374 = vunpack.c.l.b16 %v357
  %v1375 = vunpack.c.l.b16 %v358
  %v1376 = vunpack.c.h.b16 %v358
  %v1377 = vunpack.c.l.b16 %v359
  %v1378 = vunpack.c.l.b16 %v360
  %v1379 = vunpack.c.h.b16 %v360
  %v1380 = vunpack.c.l.b16 %v361
  %v1381 = vunpack.c.l.b16 %v362
  %v1382 = vunpack.c.h.b16 %v362
  %v1383 = vunpack.c.l.b16 %v363
  %v1384 = vunpack.c.l.b16 %v364
  %v1385 = vunpack.c.h.b16 %v364
  %v1386 = vunpack.c.l.b16 %v365
  %v1387 = vunpack.c.l.b16 %v366
  %v1388 = vunpack.c.h.b16 %v366
  %v1389 = vunpack.c.l.b16 %v367
  %v1390 = vunpack.c.l.b16 %v368
  %v1391 = vunpack.c.h.b16 %v368
  %v1392 = vunpack.c.l.b16 %v369
  %v1393 = vunpack.c.l.b16 %v370
  %v1394 = vunpack.c.h.b16 %v370
  %v1395 = vunpack.c.l.b16 %v371
  %v1396 = vunpack.c.l.b16 %v372
  %v1397 = vunpack.c.h.b16 %v372
  %v1398 = vunpack.c.l.b16 %v373
  %v1399 = vunpack.c.l.b16 %v374
  %v1400 = vunpack.c.h.b16 %v374
  %v1401 = vunpack.c.l.b16 %v375
  %v1402 = vunpack.c.l.b16 %v376
  %v1403 = vunpack.c.h.b16 %v376
  %v1404 = vunpack.c.l.b16 %v377
  %v1405 = vunpack.c.l.b16 %v378
  %v1406 = vunpack.c.h.b16 %v378
  %v1407 = vunpack.c.l.b16 %v379
  %v1408 = vunpack.c.l.b16 %v380
  %v1409 = vunpack.c.h.b16 %v380
  %v1410 = vunpack.c.l.b16 %v381
  %v1411 = vunpack.c.l.b16 %v382
  %v1412 = vunpack.c.h.b16 %v382
  %v1413 = vunpack.c.l.b16 %v383
  %v1414 = vunpack.c.l.b16 %v384
  %v1415 = vunpack.c.h.b16 %v384
  %v1416 = vunpack.c.l.b16 %v385
  %v1417 = vunpack.c.l.b16 %v386
  %v1418 = vunpack.c.h.b16 %v386
  %v1419 = vunpack.c.l.b16 %v387
  %v1420 = vunpack.c.l.b16 %v388
  %v1421 = vunpack.c.h.b16 %v388
  %v1422 = vunpack.c.l.b16 %v389
  %v1423 = vunpack.c.l.b16 %v390
  %v1424 = vunpack.c.h.b16 %v390
  %v1425 = vunpack.c.l.b16 %v391
  %v1426 = vunpack.c.l.b16 %v392
  %v1427 = vunpack.c.h.b16 %v392
  %v1428 = vunpack.c.l.b16 %v393
  %v1429 = vunpack.c.l.b16 %v394
  %v1430 = vunpack.c.h.b16 %v394
  %v1431 = vunpack.c.l.b16 %v395
  %v1432 = vunpack.c.l.b16 %v396
  %v1433 = vunpack.c.h.b16 %v396
  %v1434 = vunpack.c.l.b16 %v397
  %v1435 = vunpack.c.l.b16 %v398
  %v1436 = vunpack.c.h.b16 %v398
  %v1437 = vunpack.c.l.b16 %v399
  %v1438 = vunpack.c.l.b16 %v400
  %v1439 = vunpack.c.h.b16 %v400
  %v1440 = vunpack.c.l.b16 %v401
  %v1441 = vunpack.c.l.b16 %v402
  %v1442 = vunpack.c.h.b16 %v402
  %v1443 = vunpack.c.l.b16 %v403
  %v1444 = vunpack.c.l.b16 %v404
  %v1445 = vunpack.c.h.b16 %v404
  %v1446 = vunpack.c.l.b16 %v405
  %v1447 = vunpack.c.l.b16 %v406
  %v1448 = vunpack.c.h.b16 %v406
  %v1449 = vunpack.c.l.b16 %v407
  %v1450 = vunpack.c.l.b16 %v408
  %v1451 = vunpack.c.h.b16 %v408
  %v1452 = vunpack.c.l.b16 %v409
  %v1453 = vunpack.c.l.b16 %v410
  %v1454 = vunpack.c.h.b16 %v410
  %v1455 = vunpack.c.l.b16 %v411
  %v1456 = vunpack.c.l.b16 %v412
  %v1457 = vunpack.c.h.b16 %v412
  %v1458 = vunpack.c.l.b16 %v413
  %v1459 = vunpack.c.l.b16 %v414
  %v1460 = vunpack.c.h.b16 %v414
  %v1461 = vunpack.c.l.b16 %v415
  %v1462 = vunpack.c.l.b16 %v416
  %v1463 = vunpack.c.h.b16 %v416
  %v1464 = vunpack.c.l.b16 %v417
  %v1465 = vunpack.c.l.b16 %v418
  %v1466 = vunpack.c.h.b16 %v418
  %v1467 = vunpack.c.l.b16 %v419
  %v1468 = vunpack.c.l.b16 %v420
  %v1469 = vunpack.c.h.b16 %v420
  %v1470 = vunpack.c.l.b16 %v421
  %v1471 = vunpack.c.l.b16 %v422
  %v1472 = vunpack.c.h.b16 %v422
  %v1473 = vunpack.c.l.b16 %v423
  %v1474 = vunpack.c.l.b16 %v424
  %v1475 = vunpack.c.h.b16 %v424
  %v1476 = vunpack.c.l.b16 %v425
  %v1477 = vunpack.c.l.b16 %v426
  %v1478 = vunpack.c.h.b16 %v426
  %v1479 = vunpack.c.l.b16 %v427
  %v1480 = vunpack.c.l.b16 %v428
  %v1481 = vunpack.c.h.b16 %v428
  %v1482 = vunpack.c.l.b16 %v429
  %v1483 = vunpack.c.l.b16 %v430
  %v1484 = vunpack.c.h.b16 %v430
  %v1485 = vunpack.c.l.b16 %v431
  %v1486 = vunpack.c.l.b16 %v432
  %v1487 = vunpack.c.h.b16 %v432
  %v1488 = vunpack.c.l.b16 %v433
  %v1489 = vunpack.c.l.b16 %v434
  %v1490 = vunpack.c.h.b16 %v434
  %v1491 = vunpack.c.l.b16 %v435
  %v1492 = vunpack.c.l.b16 %v436
  %v1493 = vunpack.c.h.b16 %v436
  %v1494 = vunpack.c.l.b16 %v437
  %v1495 = vunpack.c.l.b16 %v438
  %v1496 = vunpack.c.h.b16 %v438
  %v1497 = vunpack.c.l.b16 %v439
  %v1498 = vunpack.c.l.b16 %v440
  %v1499 = vunpack.c.h.b16 %v440
  %v1500 = vunpack.c.l.b16 %v441
  %v1501 = vunpack.c.l.b16 %v442
  %v1502 = vunpack.c.h.b16 %v442
  %v1503 = vunpack.c.l.b16 %v443
  %v1504 = vunpack.c.l.b16 %v444
  %v1505 = vunpack.c.h.b16 %v444
  %v1506 = vunpack.c.l.b16 %v445
  %v1507 = vunpack.c.l.b16 %v446
  %v1508 = vunpack.c.h.b16 %v446
  %v1509 = vunpack.c.l.b16 %v447
  %v1510 = vunpack.c.l.b16 %v448
  %v1511 = vunpack.c.h.b16 %v448
  %v1512 = vunpack.c.l.b16 %v449
  %v1513 = vunpack.c.l.b16 %v450
  %v1514 = vunpack.c.h.b16 %v450
  %v1515 = vunpack.c.l.b16 %v451
  %v1516 = vunpack.c.l.b16 %v452
  %v1517 = vunpack.c.h.b16 %v452
  %v1518 = vunpack.c.l.b16 %v453
  %v1519 = vunpack.c.l.b16 %v454
  %v1520 = vunpack.c.h.b16 %v454
  %v1521 = vunpack.c.l.b16 %v455
  %v1522 = vunpack.c.l.b16 %v456
  %v1523 = vunpack.c.h.b16 %v456
  %v1524 = vunpack.c.l.b16 %v457
  %v1525 = vunpack.c.l.b16 %v458
  %v1526 = vunpack.c.h.b16 %v458
  %v1527 = vunpack.c.l.b16 %v459
  %v1528 = vunpack.c.l.b16 %v460
  %v1529 = vunpack.c.h.b16 %v460
  %v1530 = vunpack.c.l.b16 %v461
  %v1531 = vunpack.c.l.b16 %v462
  %v1532 = vunpack.c.h.b16 %v462
  %v1533 = vunpack.c.l.b16 %v463
  %v1534 = vunpack.c.l.b16 %v464
  %v1535 = vunpack.c.h.b16 %v464
  %v1536 = vunpack.c.l.b16 %v465
  %v1537 = vunpack.c.l.b16 %v466
  %v1538 = vunpack.c.h.b16 %v466
  %v1539 = vunpack.c.l.b16 %v467
  %v1540 = vunpack.c.l.b16 %v468
  %v1541 = vunpack.c.h.b16 %v468
  %v1542 = vunpack.c.l.b16 %v469
  %v1543 = vunpack.c.l.b16 %v470
  %v1544 = vunpack.c.h.b16 %v470
  %v1545 = vunpack.c.l.b16 %v471
  %v1546 = vunpack.c.l.b16 %v472
  %v1547 = vunpack.c.h.b16 %v472
  %v1548 = vunpack.c.l.b16 %v473
  %v1549 = vunpack.c.l.b16 %v474
  %v1550 = vunpack.c.h.b16 %v474
  %v1551 = vunpack.c.l.b16 %v475
  %v1552 = vunpack.c.l.b16 %v476
  %v1553 = vunpack.c.h.b16 %v476
  %v1554 = vunpack.c.l.b16 %v477
  %v1555 = vunpack.c.l.b16 %v478
  %v1556 = vunpack.c.h.b16 %v478
  %v1557 = vunpack.c.l.b16 %v479
  %v1558 = vunpack.c.l.b16 %v480
  %v1559 = vunpack.c.h.b16 %v480
  %v1560 = vunpack.c.l.b16 %v481
  %v1561 = vunpack.c.l.b16 %v482
  %v1562 = vunpack.c.h.b16 %v482
  %v1563 = vunpack.c.l.b16 %v483
  %v1564 = vunpack.c.l.b16 %v484
  %v1565 = vunpack.c.h.b16 %v484
  %v1566 = vunpack.c.l.b16 %v485
  %v1567 = vunpack.c.l.b16 %v486
  %v1568 = vunpack.c.h.b16 %v486
  %v1569 = vunpack.c.l.b16 %v487
  %v1570 = vunpack.c.l.b16 %v488
  %v1571 = vunpack.c.h.b16 %v488
  %v1572 = vunpack.c.l.b16 %v489
  %v1573 = vunpack.c.l.b16 %v490
  %v1574 = vunpack.c.h.b16 %v490
  %v1575 = vunpack.c.l.b16 %v491
  %v1576 = vunpack.c.l.b16 %v492
  %v1577 = vunpack.c.h.b16 %v492
  %v1578 = vunpack.c.l.b16 %v493
  %v1579 = vunpack.c.l.b16 %v494
  %v1580 = vunpack.c.h.b16 %v494
  %v1581 = vunpack.c.l.b16 %v495
  %v1582 = vunpack.c.l.b16 %v496
  %v1583 = vunpack.c.h.b16 %v496
  %v1584 = vunpack.c.l.b16 %v497
  %v1585 = vunpack.c.l.b16 %v498
  %v1586 = vunpack.c.h.b16 %v498
  %v1587 = vunpack.c.l.b16 %v499
  %v1588 = vunpack.c.l.b16 %v500
  %v1589 = vunpack.c.h.b16 %v500
  %v1590 = vunpack.c.l.b16 %v501
  %v1591 = vunpack.c.l.b16 %v502
  %v1592 = vunpack.c.h.b16 %v502
  %v1593 = vunpack.c.l.b16 %v503
  %v1594 = vunpack.c.l.b16 %v504
  %v1595 = vunpack.c.h.b16 %v504
  %v1596 = vunpack.c.l.b16 %v505
  %v1597 = vunpack.c.l.b16 %v506
  %v1598 = vunpack.c.h.b16 %v506
  %v1599 = vunpack.c.l.b16 %v507
  %v1600 = vunpack.c.l.b16 %v508
  %v1601 = vunpack.c.h.b16 %v508
  %v1602 = vunpack.c.l.b16 %v509
  %v1603 = vunpack.c.l.b16 %v510
  %v1604 = vunpack.c.h.b16 %v510
  %v1605 = vunpack.c.l.b16 %v511
  %v1606 = vunpack.c.l.b16 %v512
  %v1607 = vunpack.c.h.b16 %v512
  %v1608 = vunpack.c.l.b16 %v513
  %v1609 = vunpack.c.l.b16 %v514
  %v1610 = vunpack.c.h.b16 %v514
  %v1611 = vunpack.c.l.b16 %v515
  %v1612 = vunpack.c.l.b16 %v516
  %v1613 = vunpack.c.h.b16 %v516
  %v1614 = vunpack.c.l.b16 %v517
  %v1615 = vunpack.c.l.b16 %v518
  %v1616 = vunpack.c.h.b16 %v518
  %v1617 = vunpack.c.l.b16 %v519
  %v1618 = vunpack.c.l.b16 %v520
  %v1619 = vunpack.c.h.b16 %v520
  %v1620 = vunpack.c.l.b16 %v521
  %v1621 = vunpack.c.l.b16 %v522
  %v1622 = vunpack.c.h.b16 %v522
  %v1623 = vunpack.c.l.b16 %v523
  %v1624 = vunpack.c.l.b16 %v524
  %v1625 = vunpack.c.h.b16 %v524
  %v1626 = vunpack.c.l.b16 %v525
  %v1627 = vunpack.c.l.b16 %v526
  %v1628 = vunpack.c.h.b16 %v526
  %v1629 = vunpack.c.l.b16 %v527
  %v1630 = vunpack.c.l.b16 %v528
  %v1631 = vunpack.c.h.b16 %v528
  %v1632 = vunpack.c.l.b16 %v529
  %v1633 = vunpack.c.l.b16 %v530
  %v1634 = vunpack.c.h.b16 %v530
  %v1635 = vunpack.c.l.b16 %v531
  %v1636 = vunpack.c.l.b16 %v532
  %v1637 = vunpack.c.h.b16 %v532
  %v1638 = vunpack.c.l.b16 %v533
  %v1639 = vunpack.c.l.b16 %v534
  %v1640 = vunpack.c.h.b16 %v534
  %v1641 = vunpack.c.l.b16 %v535
  %v1642 = vunpack.c.l.b16 %v536
  %v1643 = vunpack.c.h.b16 %v536
  %v1644 = vunpack.c.l.b16 %v537
  %v1645 = vunpack.c.l.b16 %v538
  %v1646 = vunpack.c.h.b16 %v538
  %v1647 = vunpack.c.l.b16 %v539
  %v1648 = vunpack.c.l.b16 %v540
  %v1649 = vunpack.c.h.b16 %v540
  %v1650 = vunpack.c.l.b16 %v541
  %v1651 = vunpack.c.l.b16 %v542
  %v1652 = vunpack.c.h.b16 %v542
  %v1653 = vunpack.c.l.b16 %v543
  %v1654 = vunpack.c.l.b16 %v544
  %v1655 = vunpack.c.h.b16 %v544
  %v1656 = vunpack.c.l.b16 %v545
  %v1657 = vunpack.c.l.b16 %v546
  %v1658 = vunpack.c.h.b16 %v546
  %v1659 = vunpack.c.l.b16 %v547
  %v1660 = vunpack.c.l.b16 %v548
  %v1661 = vunpack.c.h.b16 %v548
  %v1662 = vunpack.c.l.b16 %v549
  %v1663 = vunpack.c.l.b16 %v550
  %v1664 = vunpack.c.h.b16 %v550
  %v1665 = vunpack.c.l.b16 %v551
  %v1666 = vunpack.c.l.b16 %v552
  %v1667 = vunpack.c.h.b16 %v552
  %v1668 = vunpack.c.l.b16 %v553
  %v1669 = vunpack.c.l.b16 %v554
  %v1670 = vunpack.c.h.b16 %v554
  %v1671 = vunpack.c.l.b16 %v555
  %v1672 = vunpack.c.l.b16 %v556
  %v1673 = vunpack.c.h.b16 %v556
  %v1674 = vunpack.c.l.b16 %v557
  %v1675 = vunpack.c.l.b16 %v558
  %v1676 = vunpack.c.h.b16 %v558
  %v1677 = vunpack.c.l.b16 %v559
  %v1678 = vunpack.c.l.b16 %v560
  %v1679 = vunpack.c.h.b16 %v560
  %v1680 = vunpack.c.l.b16 %v561
  %v1681 = vunpack.c.l.b16 %v562
  %v1682 = vunpack.c.h.b16 %v562
  %v1683 = vunpack.c.l.b16 %v563
  %v1684 = vunpack.c.l.b16 %v564
  %v1685 = vunpack.c.h.b16 %v564
  %v1686 = vunpack.c.l.b16 %v565
  %v1687 = vunpack.c.l.b16 %v566
  %v1688 = vunpack.c.h.b16 %v566
  %v1689 = vunpack.c.l.b16 %v567
  %v1690 = vunpack.c.l.b16 %v568
  %v1691 = vunpack.c.h.b16 %v568
  %v1692 = vunpack.c.l.b16 %v569
  %v1693 = vunpack.c.l.b16 %v570
  %v1694 = vunpack.c.h.b16 %v570
  %v1695 = vunpack.c.l.b16 %v571
  %v1696 = vunpack.c.l.b16 %v572
  %v1697 = vunpack.c.h.b16 %v572
  %v1698 = vunpack.c.l.b16 %v573
  %v1699 = vunpack.c.l.b16 %v574
  %v1700 = vunpack.c.h.b16 %v574
  %v1701 = vunpack.c.l.b16 %v575
  %v1702 = vunpack.c.l.b16 %v576
  %v1703 = vunpack.c.h.b16 %v576
  %v1704 = vunpack.c.l.b16 %v577
  %v1705 = vunpack.c.l.b16 %v578
  %v1706 = vunpack.c.h.b16 %v578
  %v1707 = vunpack.c.l.b16 %v579
  %v1708 = vunpack.c.l.b16 %v580
  %v1709 = vunpack.c.h.b16 %v580
  %v1710 = vunpack.c.l.b16 %v581
  %v1711 = vunpack.c.l.b16 %v582
  %v1712 = vunpack.c.h.b16 %v582
  %v1713 = vunpack.c.l.b16 %v583
  %v1714 = vunpack.c.l.b16 %v584
  %v1715 = vunpack.c.h.b16 %v584
  %v1716 = vunpack.c.l.b16 %v585
  %v1717 = vunpack.c.l.b16 %v586
  %v1718 = vunpack.c.h.b16 %v586
  %v1719 = vunpack.c.l.b16 %v587
  %v1720 = vunpack.c.l.b16 %v588
  %v1721 = vunpack.c.h.b16 %v588
  %v1722 = vunpack.c.l.b16 %v589
  %v1723 = vunpack.c.l.b16 %v590
  %v1724 = vunpack.c.h.b16 %v590
  %v1725 = vunpack.c.l.b16 %v591
  %v1726 = vunpack.c.l.b16 %v592
  %v1727 = vunpack.c.h.b16 %v592
  %v1728 = vunpack.c.l.b16 %v593
  %v1729 = vunpack.c.l.b16 %v594
  %v1730 = vunpack.c.h.b16 %v594
  %v1731 = vunpack.c.l.b16 %v595
  %v1732 = vunpack.c.l.b16 %v596
  %v1733 = vunpack.c.h.b16 %v596
  %v1734 = vunpack.c.l.b16 %v597
  %v1735 = vunpack.c.l.b16 %v598
  %v1736 = vunpack.c.h.b16 %v598
  %v1737 = vunpack.c.l.b16 %v599
  %v1738 = vunpack.c.l.b16 %v600
  %v1739 = vunpack.c.h.b16 %v600
  %v1740 = vunpack.c.l.b16 %v601
  %v1741 = vunpack.c.l.b16 %v602
  %v1742 = vunpack.c.h.b16 %v602
  %v1743 = vunpack.c.l.b16 %v603
  %v1744 = vpack.c.b16 %v1063, %v1060
  %v1745 = vpack.c.b16 %v1064, %v1061
  %v1746 = vpack.c.b16 %v1065, %v1062
  %v1747 = vpack.c.b16 %v1069, %v1066
  %v1748 = vpack.c.b16 %v1070, %v1067
  %v1749 = vpack.c.b16 %v1071, %v1068
  %v1750 = vpack.c.b16 %v1075, %v1072
  %v1751 = vpack.c.b16 %v1076, %v1073
  %v1752 = vpack.c.b16 %v1077, %v1074
  %v1753 = vpack.c.b16 %v1081, %v1078
  %v1754 = vpack.c.b16 %v1082, %v1079
  %v1755 = vpack.c.b16 %v1083, %v1080
  %v1756 = vpack.c.b16 %v1087, %v1084
  %v1757 = vpack.c.b16 %v1088, %v1085
  %v1758 = vpack.c.b16 %v1089, %v1086
  %v1759 = vpack.c.b16 %v1093, %v1090
  %v1760 = vpack.c.b16 %v1094, %v1091
  %v1761 = vpack.c.b16 %v1095, %v1092
  %v1762 = vpack.c.b16 %v1099, %v1096
  %v1763 = vpack.c.b16 %v1100, %v1097
  %v1764 = vpack.c.b16 %v1101, %v1098
  %v1765 = vpack.c.b16 %v1105, %v1102
  %v1766 = vpack.c.b16 %v1106, %v1103
  %v1767 = vpack.c.b16 %v1107, %v1104
  %v1768 = vpack.c.b16 %v1111, %v1108
  %v1769 = vpack.c.b16 %v1112, %v1109
  %v1770 = vpack.c.b16 %v1113, %v1110
  %v1771 = vpack.c.b16 %v1117, %v1114
  %v1772 = vpack.c.b16 %v1118, %v1115
  %v1773 = vpack.c.b16 %v1119, %v1116
  %v1774 = vpack.c.b16 %v1123, %v1120
  %v1775 = vpack.c.b16 %v1124, %v1121
  %v1776 = vpack.c.b16 %v1125, %v1122
  %v1777 = vpack.c.b16 %v1129, %v1126
  %v1778 = vpack.c.b16 %v1130, %v1127
  %v1779 = vpack.c.b16 %v1131, %v1128
  %v1780 = vpack.c.b16 %v1135, %v1132
  %v1781 = vpack.c.b16 %v1136, %v1133
  %v1782 = vpack.c.b16 %v1137, %v1134
  %v1783 = vpack.c.b16 %v1141, %v1138
  %v1784 = vpack.c.b16 %v1142, %v1139
  %v1785 = vpack.c.b16 %v1143, %v1140
  %v1786 = vpack.c.b16 %v1147, %v1144
  %v1787 = vpack.c.b16 %v1148, %v1145
  %v1788 = vpack.c.b16 %v1149, %v1146
  %v1789 = vpack.c.b16 %v1153, %v1150
  %v1790 = vpack.c.b16 %v1154, %v1151
  %v1791 = vpack.c.b16 %v1155, %v1152
  %v1792 = vpack.c.b16 %v1159, %v1156
  %v1793 = vpack.c.b16 %v1160, %v1157
  %v1794 = vpack.c.b16 %v1161, %v1158
  %v1795 = vpack.c.b16 %v1165, %v1162
  %v1796 = vpack.c.b16 %v1166, %v1163
  %v1797 = vpack.c.b16 %v1167, %v1164
  %v1798 = vpack.c.b16 %v1171, %v1168
  %v1799 = vpack.c.b16 %v1172, %v1169
  %v1800 = vpack.c.b16 %v1173, %v1170
  %v1801 = vpack.c.b16 %v1177, %v1174
  %v1802 = vpack.c.b16 %v1178, %v1175
  %v1803 = vpack.c.b16 %v1179, %v1176
  %v1804 = vpack.c.b16 %v1183, %v1180
  %v1805 = vpack.c.b16 %v1184, %v1181
  %v1806 = vpack.c.b16 %v1185, %v1182
  %v1807 = vpack.c.b16 %v1189, %v1186
  %v1808 = vpack.c.b16 %v1190, %v1187
  %v1809 = vpack.c.b16 %v1191, %v1188
  %v1810 = vpack.c.b16 %v1195, %v1192
  %v1811 = vpack.c.b16 %v1196, %v1193
  %v1812 = vpack.c.b16 %v1197, %v1194
  %v1813 = vpack.c.b16 %v1201, %v1198
  %v1814 = vpack.c.b16 %v1202, %v1199
  %v1815 = vpack.c.b16 %v1203, %v1200
  %v1816 = vpack.c.b16 %v1207, %v1204
  %v1817 = vpack.c.b16 %v1208, %v1205
  %v1818 = vpack.c.b16 %v1209, %v1206
  %v1819 = vpack.c.b16 %v1213, %v1210
  %v1820 = vpack.c.b16 %v1214, %v1211
  %v1821 = vpack.c.b16 %v1215, %v1212
  %v1822 = vpack.c.b16 %v1219, %v1216
  %v1823 = vpack.c.b16 %v1220, %v1217
  %v1824 = vpack.c.b16 %v1221, %v1218
  %v1825 = vpack.c.b16 %v1225, %v1222
  %v1826 = vpack.c.b16 %v1226, %v1223
  %v1827 = vpack.c.b16 %v1227, %v1224
  %v1828 = vpack.c.b16 %v1231, %v1228
  %v1829 = vpack.c.b16 %v1232, %v1229
  %v1830 = vpack.c.b16 %v1233, %v1230
  %v1831 = vpack.c.b16 %v1237, %v1234
  %v1832 = vpack.c.b16 %v1238, %v1235
  %v1833 = vpack.c.b16 %v1239, %v1236
  %v1834 = vpack.c.b16 %v1243, %v1240
  %v1835 = vpack.c.b16 %v1244, %v1241
  %v1836 = vpack.c.b16 %v1245, %v1242
  %v1837 = vpack.c.b16 %v1249, %v1246
  %v1838 = vpack.c.b16 %v1250, %v1247
  %v1839 = vpack.c.b16 %v1251, %v1248
  %v1840 = vpack.c.b16 %v1255, %v1252
  %v1841 = vpack.c.b16 %v1256, %v1253
  %v1842 = vpack.c.b16 %v1257, %v1254
  %v1843 = vpack.c.b16 %v1261, %v1258
  %v1844 = vpack.c.b16 %v1262, %v1259
  %v1845 = vpack.c.b16 %v1263, %v1260
  %v1846 = vpack.c.b16 %v1267, %v1264
  %v1847 = vpack.c.b16 %v1268, %v1265
  %v1848 = vpack.c.b16 %v1269, %v1266
  %v1849 = vpack.c.b16 %v1273, %v1270
  %v1850 = vpack.c.b16 %v1274, %v1271
  %v1851 = vpack.c.b16 %v1275, %v1272
  %v1852 = vpack.c.b16 %v1279, %v1276
  %v1853 = vpack.c.b16 %v1280, %v1277
  %v1854 = vpack.c.b16 %v1281, %v1278
  %v1855 = vpack.c.b16 %v1285, %v1282
  %v1856 = vpack.c.b16 %v1286, %v1283
  %v1857 = vpack.c.b16 %v1287, %v1284
  %v1858 = vpack.c.b16 %v1291, %v1288
  %v1859 = vpack.c.b16 %v1292, %v1289
  %v1860 = vpack.c.b16 %v1293, %v1290
  %v1861 = vpack.c.b16 %v1297, %v1294
  %v1862 = vpack.c.b16 %v1298, %v1295
  %v1863 = vpack.c.b16 %v1299, %v1296
  %v1864 = vpack.c.b16 %v1303, %v1300
  %v1865 = vpack.c.b16 %v1304, %v1301
  %v1866 = vpack.c.b16 %v1305, %v1302
  %v1867 = vpack.c.b16 %v1309, %v1306
  %v1868 = vpack.c.b16 %v1310, %v1307
  %v1869 = vpack.c.b16 %v1311, %v1308
  %v1870 = vpack.c.b16 %v1315, %v1312
  %v1871 = vpack.c.b16 %v1316, %v1313
  %v1872 = vpack.c.b16 %v1317, %v1314
  %v1873 = vpack.c.b16 %v1321, %v1318
  %v1874 = vpack.c.b16 %v1322, %v1319
  %v1875 = vpack.c.b16 %v1323, %v1320
  %v1876 = vpack.c.b16 %v1327, %v1324
  %v1877 = vpack.c.b16 %v1328, %v1325
  %v1878 = vpack.c.b16 %v1329, %v1326
  %v1879 = vpack.c.b16 %v1333, %v1330
  %v1880 = vpack.c.b16 %v1334, %v1331
  %v1881 = vpack.c.b16 %v1335, %v1332
  %v1882 = vpack.c.b16 %v1339, %v1336
  %v1883 = vpack.c.b16 %v1340, %v1337
  %v1884 = vpack.c.b16 %v1341, %v1338
  %v1885 = vpack.c.b16 %v1345, %v1342
  %v1886 = vpack.c.b16 %v1346, %v1343
  %v1887 = vpack.c.b16 %v1347, %v1344
  %v1888 = vpack.c.b16 %v1351, %v1348
  %v1889 = vpack.c.b16 %v1352, %v1349
  %v1890 = vpack.c.b16 %v1353, %v1350
  %v1891 = vpack.c.b16 %v1357, %v1354
  %v1892 = vpack.c.b16 %v1358, %v1355
  %v1893 = vpack.c.b16 %v1359, %v1356
  %v1894 = vpack.c.b16 %v1363, %v1360
  %v1895 = vpack.c.b16 %v1364, %v1361
  %v1896 = vpack.c.b16 %v1365, %v1362
  %v1897 = vpack.c.b16 %v1369, %v1366
  %v1898 = vpack.c.b16 %v1370, %v1367
  %v1899 = vpack.c.b16 %v1371, %v1368
  %v1900 = vpack.c.b16 %v1375, %v1372
  %v1901 = vpack.c.b16 %v1376, %v1373
  %v1902 = vpack.c.b16 %v1377, %v1374
  %v1903 = vpack.c.b16 %v1381, %v1378
  %v1904 = vpack.c.b16 %v1382, %v1379
  %v1905 = vpack.c.b16 %v1383, %v1380
  %v1906 = vpack.c.b16 %v1387, %v1384
  %v1907 = vpack.c.b16 %v1388, %v1385
  %v1908 = vpack.c.b16 %v1389, %v1386
  %v1909 = vpack.c.b16 %v1393, %v1390
  %v1910 = vpack.c.b16 %v1394, %v1391
  %v1911 = vpack.c.b16 %v1395, %v1392
  %v1912 = vpack.c.b16 %v1399, %v1396
  %v1913 = vpack.c.b16 %v1400, %v1397
  %v1914 = vpack.c.b16 %v1401, %v1398
  %v1915 = vpack.c.b16 %v1405, %v1402
  %v1916 = vpack.c.b16 %v1406, %v1403
  %v1917 = vpack.c.b16 %v1407, %v1404
  %v1918 = vpack.c.b16 %v1411, %v1408
  %v1919 = vpack.c.b16 %v1412, %v1409
  %v1920 = vpack.c.b16 %v1413, %v1410
  %v1921 = vpack.c.b16 %v1417, %v1414
  %v1922 = vpack.c.b16 %v1418, %v1415
  %v1923 = vpack.c.b16 %v1419, %v1416
  %v1924 = vpack.c.b16 %v1423, %v1420
  %v1925 = vpack.c.b16 %v1424, %v1421
  %v1926 = vpack.c.b16 %v1425, %v1422
  %v1927 = vpack.c.b16 %v1429, %v1426
  %v1928 = vpack.c.b16 %v1430, %v1427
  %v1929 = vpack.c.b16 %v1431, %v1428
  %v1930 = vpack.c.b16 %v1435, %v1432
  %v1931 = vpack.c.b16 %v1436, %v1433
  %v1932 = vpack.c.b16 %v1437, %v1434
  %v1933 = vpack.c.b16 %v1441, %v1438
  %v1934 = vpack.c.b16 %v1442, %v1439
  %v1935 = vpack.c.b16 %v1443, %v1440
  %v1936 = vpack.c.b16 %v1447, %v1444
  %v1937 = vpack.c.b16 %v1448, %v1445
  %v1938 = vpack.c.b16 %v1449, %v1446
  %v1939 = vpack.c.b16 %v1453, %v1450
  %v1940 = vpack.c.b16 %v1454, %v1451
  %v1941 = vpack.c.b16 %v1455, %v1452
  %v1942 = vpack.c.b16 %v1459, %v1456
  %v1943 = vpack.c.b16 %v1460, %v1457
  %v1944 = vpack.c.b16 %v1461, %v1458
  %v1945 = vpack.c.b16 %v1465, %v1462
  %v1946 = vpack.c.b16 %v1466, %v1463
  %v1947 = vpack.c.b16 %v1467, %v1464
  %v1948 = vpack.c.b16 %v1471, %v1468
  %v1949 = vpack.c.b16 %v1472, %v1469
  %v1950 = vpack.c.b16 %v1473, %v1470
  %v1951 = vpack.c.b16 %v1477, %v1474
  %v1952 = vpack.c.b16 %v1478, %v1475
  %v1953 = vpack.c.b16 %v1479, %v1476
  %v1954 = vpack.c.b16 %v1483, %v1480
  %v1955 = vpack.c.b16 %v1484, %v1481
  %v1956 = vpack.c.b16 %v1485, %v1482
  %v1957 = vpack.c.b16 %v1489, %v1486
  %v1958 = vpack.c.b16 %v1490, %v1487
  %v1959 = vpack.c.b16 %v1491, %v1488
  %v1960 = vpack.c.b16 %v1495, %v1492
  %v1961 = vpack.c.b16 %v1496, %v1493
  %v1962 = vpack.c.b16 %v1497, %v1494
  %v1963 = vpack.c.b16 %v1501, %v1498
  %v1964 = vpack.c.b16 %v1502, %v1499
  %v1965 = vpack.c.b16 %v1503, %v1500
  %v1966 = vpack.c.b16 %v1507, %v1504
  %v1967 = vpack.c.b16 %v1508, %v1505
  %v1968 = vpack.c.b16 %v1509, %v1506
  %v1969 = vpack.c.b16 %v1513, %v1510
  %v1970 = vpack.c.b16 %v1514, %v1511
  %v1971 = vpack.c.b16 %v1515, %v1512
  %v1972 = vpack.c.b16 %v1519, %v1516
  %v1973 = vpack.c.b16 %v1520, %v1517
  %v1974 = vpack.c.b16 %v1521, %v1518
  %v1975 = vpack.c.b16 %v1525, %v1522
  %v1976 = vpack.c.b16 %v1526, %v1523
  %v1977 = vpack.c.b16 %v1527, %v1524
  %v1978 = vpack.c.b16 %v1531, %v1528
  %v1979 = vpack.c.b16 %v1532, %v1529
  %v1980 = vpack.c.b16 %v1533, %v1530
  %v1981 = vpack.c.b16 %v1537, %v1534
  %v1982 = vpack.c.b16 %v1538, %v1535
  %v1983 = vpack.c.b16 %v1539, %v1536
  %v1984 = vpack.c.b16 %v1543, %v1540
  %v1985 = vpack.c.b16 %v1544, %v1541
  %v1986 = vpack.c.b16 %v1545, %v1542
  %v1987 = vpack.c.b16 %v1549, %v1546
  %v1988 = vpack.c.b16 %v1550, %v1547
  %v1989 = vpack.c.b16 %v1551, %v1548
  %v1990 = vpack.c.b16 %v1555, %v1552
  %v1991 = vpack.c.b16 %v1556, %v1553
  %v1992 = vpack.c.b16 %v1557, %v1554
  %v1993 = vpack.c.b16 %v1561, %v1558
  %v1994 = vpack.c.b16 %v1562, %v1559
  %v1995 = vpack.c.b16 %v1563, %v1560
  %v1996 = vpack.c.b16 %v1567, %v1564
  %v1997 = vpack.c.b16 %v1568, %v1565
  %v1998 = vpack.c.b16 %v1569, %v1566
  %v1999 = vpack.c.b16 %v1573, %v1570
  %v2000 = vpack.c.b16 %v1574, %v1571
  %v2001 = vpack.c.b16 %v1575, %v1572
  %v2002 = vpack.c.b16 %v1579, %v1576
  %v2003 = vpack.c.b16 %v1580, %v1577
  %v2004 = vpack.c.b16 %v1581, %v1578
  %v2005 = vpack.c.b16 %v1585, %v1582
  %v2006 = vpack.c.b16 %v1586, %v1583
  %v2007 = vpack.c.b16 %v1587, %v1584
  %v2008 = vpack.c.b16 %v1591, %v1588
  %v2009 = vpack.c.b16 %v1592, %v1589
  %v2010 = vpack.c.b16 %v1593, %v1590
  %v2011 = vpack.c.b16 %v1597, %v1594
  %v2012 = vpack.c.b16 %v1598, %v1595
  %v2013 = vpack.c.b16 %v1599, %v1596
  %v2014 = vpack.c.b16 %v1603, %v1600
  %v2015 = vpack.c.b16 %v1604, %v1601
  %v2016 = vpack.c.b16 %v1605, %v1602
  %v2017 = vpack.c.b16 %v1609, %v1606
  %v2018 = vpack.c.b16 %v1610, %v1607
  %v2019 = vpack.c.b16 %v1611, %v1608
  %v2020 = vpack.c.b16 %v1615, %v1612
  %v2021 = vpack.c.b16 %v1616, %v1613
  %v2022 = vpack.c.b16 %v1617, %v1614
  %v2023 = vpack.c.b16 %v1621, %v1618
  %v2024 = vpack.c.b16 %v1622, %v1619
  %v2025 = vpack.c.b16 %v1623, %v1620
  %v2026 = vpack.c.b16 %v1627, %v1624
  %v2027 = vpack.c.b16 %v1628, %v1625
  %v2028 = vpack.c.b16 %v1629, %v1626
  %v2029 = vpack.c.b16 %v1633, %v1630
  %v2030 = vpack.c.b16 %v1634, %v1631
  %v2031 = vpack.c.b16 %v1635, %v1632
  %v2032 = vpack.c.b16 %v1639, %v1636
  %v2033 = vpack.c.b16 %v1640, %v1637
  %v2034 = vpack.c.b16 %v1641, %v1638
  %v2035 = vpack.c.b16 %v1645, %v1642
  %v2036 = vpack.c.b16 %v1646, %v1643
  %v2037 = vpack.c.b16 %v1647, %v1644
  %v2038 = vpack.c.b16 %v1651, %v1648
  %v2039 = vpack.c.b16 %v1652, %v1649
  %v2040 = vpack.c.b16 %v1653, %v1650
  %v2041 = vpack.c.b16 %v1657, %v1654
  %v2042 = vpack.c.b16 %v1658, %v1655
  %v2043 = vpack.c.b16 %v1659, %v1656
  %v2044 = vpack.c.b16 %v1663, %v1660
  %v2045 = vpack.c.b16 %v1664, %v1661
  %v2046 = vpack.c.b16 %v1665, %v1662
  %v2047 = vpack.c.b16 %v1669, %v1666
  %v2048 = vpack.c.b16 %v1670, %v1667
  %v2049 = vpack.c.b16 %v1671, %v1668
  %v2050 = vpack.c.b16 %v1675, %v1672
  %v2051 = vpack.c.b16 %v1676, %v1673
  %v2052 = vpack.c.b16 %v1677, %v1674
  %v2053 = vpack.c.b16 %v1681, %v1678
  %v2054 = vpack.c.b16 %v1682, %v1679
  %v2055 = vpack.c.b16 %v1683, %v1680
  %v2056 = vpack.c.b16 %v1687, %v1684
  %v2057 = vpack.c.b16 %v1688, %v1685
  %v2058 = vpack.c.b16 %v1689, %v1686
  %v2059 = vpack.c.b16 %v1693, %v1690
  %v2060 = vpack.c.b16 %v1694, %v1691
  %v2061 = vpack.c.b16 %v1695, %v1692
  %v2062 = vpack.c.b16 %v1699, %v1696
  %v2063 = vpack.c.b16 %v1700, %v1697
  %v2064 = vpack.c.b16 %v1701, %v1698
  %v2065 = vpack.c.b16 %v1705, %v1702
  %v2066 = vpack.c.b16 %v1706, %v1703
  %v2067 = vpack.c.b16 %v1707, %v1704
  %v2068 = vpack.c.b16 %v1711, %v1708
  %v2069 = vpack.c.b16 %v1712, %v1709
  %v2070 = vpack.c.b16 %v1713, %v1710
  %v2071 = vpack.c.b16 %v1717, %v1714
  %v2072 = vpack.c.b16 %v1718, %v1715
  %v2073 = vpack.c.b16 %v1719, %v1716
  %v2074 = vpack.c.b16 %v1723, %v1720
  %v2075 = vpack.c.b16 %v1724, %v1721
  %v2076 = vpack.c.b16 %v1725, %v1722
  %v2077 = vpack.c.b16 %v1729, %v1726
  %v2078 = vpack.c.b16 %v1730, %v1727
  %v2079 = vpack.c.b16 %v1731, %v1728
  %v2080 = vpack.c.b16 %v1735, %v1732
  %v2081 = vpack.c.b16 %v1736, %v1733
  %v2082 = vpack.c.b16 %v1737, %v1734
  %v2083 = vpack.c.b16 %v1741, %v1738
  %v2084 = vpack.c.b16 %v1742, %v1739
  %v2085 = vpack.c.b16 %v1743, %v1740
  %vm2314 = vcmask 392192
  %v2316 = vsel %vm2314, %v1746, 0
  %v2319 = vsel %vm2314, %v1749, 0
  %v2322 = vsel %vm2314, %v1752, 0
  %v2325 = vsel %vm2314, %v1755, 0
  %v2328 = vsel %vm2314, %v1758, 0
  %v2331 = vsel %vm2314, %v1761, 0
  %v2334 = vsel %vm2314, %v1764, 0
  %v2337 = vsel %vm2314, %v1767, 0
  %v2340 = vsel %vm2314, %v1770, 0
  %v2343 = vsel %vm2314, %v1773, 0
  %v2346 = vsel %vm2314, %v1776, 0
  %v2349 = vsel %vm2314, %v1779, 0
  %v2352 = vsel %vm2314, %v1782, 0
  %v2355 = vsel %vm2314, %v1785, 0
  %v2358 = vsel %vm2314, %v1788, 0
  %v2361 = vsel %vm2314, %v1791, 0
  %v2364 = vsel %vm2314, %v1794, 0
  %v2367 = vsel %vm2314, %v1797, 0
  %v2370 = vsel %vm2314, %v1800, 0
  %v2373 = vsel %vm2314, %v1803, 0
  %v2376 = vsel %vm2314, %v1806, 0
  %v2379 = vsel %vm2314, %v1809, 0
  %v2382 = vsel %vm2314, %v1812, 0
  %v2385 = vsel %vm2314, %v1815, 0
  %v2388 = vsel %vm2314, %v1818, 0
  %v2391 = vsel %vm2314, %v1821, 0
  %v2394 = vsel %vm2314, %v1824, 0
  %v2397 = vsel %vm2314, %v1827, 0
  %v2400 = vsel %vm2314, %v1830, 0
  %v2403 = vsel %vm2314, %v1833, 0
  %v2406 = vsel %vm2314, %v1836, 0
  %v2409 = vsel %vm2314, %v1839, 0
  %v2412 = vsel %vm2314, %v1842, 0
  %v2415 = vsel %vm2314, %v1845, 0
  %v2418 = vsel %vm2314, %v1848, 0
  %v2421 = vsel %vm2314, %v1851, 0
  %v2424 = vsel %vm2314, %v1854, 0
  %v2427 = vsel %vm2314, %v1857, 0
  %v2430 = vsel %vm2314, %v1860, 0
  %v2433 = vsel %vm2314, %v1863, 0
  %v2436 = vsel %vm2314, %v1866, 0
  %v2439 = vsel %vm2314, %v1869, 0
  %v2442 = vsel %vm2314, %v1872, 0
  %v2445 = vsel %vm2314, %v1875, 0
  %v2448 = vsel %vm2314, %v1878, 0
  %v2451 = vsel %vm2314, %v1881, 0
  %v2454 = vsel %vm2314, %v1884, 0
  %v2457 = vsel %vm2314, %v1887, 0
  %v2460 = vsel %vm2314, %v1890, 0
  %v2463 = vsel %vm2314, %v1893, 0
  %v2466 = vsel %vm2314, %v1896, 0
  %v2469 = vsel %vm2314, %v1899, 0
  %v2472 = vsel %vm2314, %v1902, 0
  %v2475 = vsel %vm2314, %v1905, 0
  %v2478 = vsel %vm2314, %v1908, 0
  %v2481 = vsel %vm2314, %v1911, 0
  %v2484 = vsel %vm2314, %v1914, 0
  %v2487 = vsel %vm2314, %v1917, 0
  %v2490 = vsel %vm2314, %v1920, 0
  %v2493 = vsel %vm2314, %v1923, 0
  %v2496 = vsel %vm2314, %v1926, 0
  %v2499 = vsel %vm2314, %v1929, 0
  %v2502 = vsel %vm2314, %v1932, 0
  %v2505 = vsel %vm2314, %v1935, 0
  %v2508 = vsel %vm2314, %v1938, 0
  %v2511 = vsel %vm2314, %v1941, 0
  %v2514 = vsel %vm2314, %v1944, 0
  %v2517 = vsel %vm2314, %v1947, 0
  %v2520 = vsel %vm2314, %v1950, 0
  %v2523 = vsel %vm2314, %v1953, 0
  %v2526 = vsel %vm2314, %v1956, 0
  %v2529 = vsel %vm2314, %v1959, 0
  %v2532 = vsel %vm2314, %v1962, 0
  %v2535 = vsel %vm2314, %v1965, 0
  %v2538 = vsel %vm2314, %v1968, 0
  %v2541 = vsel %vm2314, %v1971, 0
  %v2544 = vsel %vm2314, %v1974, 0
  %v2547 = vsel %vm2314, %v1977, 0
  %v2550 = vsel %vm2314, %v1980, 0
  %v2553 = vsel %vm2314, %v1983, 0
  %v2556 = vsel %vm2314, %v1986, 0
  %v2559 = vsel %vm2314, %v1989, 0
  %v2562 = vsel %vm2314, %v1992, 0
  %v2565 = vsel %vm2314, %v1995, 0
  %v2568 = vsel %vm2314, %v1998, 0
  %v2571 = vsel %vm2314, %v2001, 0
  %v2574 = vsel %vm2314, %v2004, 0
  %v2577 = vsel %vm2314, %v2007, 0
  %v2580 = vsel %vm2314, %v2010, 0
  %v2583 = vsel %vm2314, %v2013, 0
  %v2586 = vsel %vm2314, %v2016, 0
  %v2589 = vsel %vm2314, %v2019, 0
  %v2592 = vsel %vm2314, %v2022, 0
  %v2595 = vsel %vm2314, %v2025, 0
  %v2598 = vsel %vm2314, %v2028, 0
  %v2601 = vsel %vm2314, %v2031, 0
  %v2604 = vsel %vm2314, %v2034, 0
  %v2607 = vsel %vm2314, %v2037, 0
  %v2610 = vsel %vm2314, %v2040, 0
  %v2613 = vsel %vm2314, %v2043, 0
  %v2616 = vsel %vm2314, %v2046, 0
  %v2619 = vsel %vm2314, %v2049, 0
  %v2622 = vsel %vm2314, %v2052, 0
  %v2625 = vsel %vm2314, %v2055, 0
  %v2628 = vsel %vm2314, %v2058, 0
  %v2631 = vsel %vm2314, %v2061, 0
  %v2634 = vsel %vm2314, %v2064, 0
  %v2637 = vsel %vm2314, %v2067, 0
  %v2640 = vsel %vm2314, %v2070, 0
  %v2643 = vsel %vm2314, %v2073, 0
  %v2646 = vsel %vm2314, %v2076, 0
  %v2649 = vsel %vm2314, %v2079, 0
  %v2652 = vsel %vm2314, %v2082, 0
  %v2655 = vsel %vm2314, %v2085, 0
  %2657 = vmatprep.subr.bf16.mxu0 0
  %2658 = vmatpush1.bf16.msra.mxu0 %v129
  %2659 = vmatprep.subr.bf16.mxu0 0
  %2660 = vmatpush1.bf16.msra.mxu0 %v130
  %2661 = vmatprep.subr.bf16.mxu0 0
  %2662 = vmatpush1.bf16.msra.mxu0 %v131
  %2663 = vmatprep.subr.bf16.mxu0 0
  %2664 = vmatpush1.bf16.msra.mxu0 %v132
  %2665 = vmatprep.subr.bf16.mxu0 0
  %2666 = vmatpush1.bf16.msra.mxu0 %v133
  %2667 = vmatprep.subr.bf16.mxu0 0
  %2668 = vmatpush1.bf16.msra.mxu0 %v134
  %2669 = vmatprep.subr.bf16.mxu0 0
  %2670 = vmatpush1.bf16.msra.mxu0 %v135
  %2671 = vmatprep.subr.bf16.mxu0 0
  %2672 = vmatpush1.bf16.msra.mxu0 %v136
  %2673 = vmatprep.subr.bf16.mxu0 0
  %2674 = vmatpush1.bf16.msra.mxu0 %v137
  %2675 = vmatprep.subr.bf16.mxu0 0
  %2676 = vmatpush1.bf16.msra.mxu0 %v138
  %2677 = vmatprep.subr.bf16.mxu0 0
  %2678 = vmatpush1.bf16.msra.mxu0 %v139
  %2679 = vmatprep.subr.bf16.mxu0 0
  %2680 = vmatpush1.bf16.msra.mxu0 %v140
  %2681 = vmatprep.subr.bf16.mxu0 0
  %2682 = vmatpush1.bf16.msra.mxu0 %v141
  %2683 = vmatprep.subr.bf16.mxu0 0
  %2684 = vmatpush1.bf16.msra.mxu0 %v142
  %2685 = vmatprep.subr.bf16.mxu0 0
  %2686 = vmatpush1.bf16.msra.mxu0 %v143
  %2687 = vmatprep.subr.bf16.mxu0 0
  %2688 = vmatpush1.bf16.msra.mxu0 %v144
  %2689 = vmatprep.mubr.bf16.mxu0 %v1745
  %2690 = vmatmul.mubr.bf16.gmra.mrb[0].mxu0 %v1744
  %v2691 = vpop.f32.mrb[0].mxu0
  %v2692 = vadd.f32 0.0, %v2691
  %v2693 = vpop.f32.mrb[0].mxu0
  %v2694 = vpop.f32.mrb[0].mxu0
  %v2695 = vadd.f32 0.0, %v2694
  %v2696 = vpop.f32.mrb[0].mxu0
  %2697 = vmatprep.mubr.bf16.mxu0 %v1748
  %2698 = vmatmul.mubr.bf16.gmra.mrb[0].mxu0 %v1747
  %v2699 = vpop.f32.mrb[0].mxu0
  %v2700 = vadd.f32 0.0, %v2699
  %v2701 = vpop.f32.mrb[0].mxu0
  %v2702 = vpop.f32.mrb[0].mxu0
  %v2703 = vadd.f32 0.0, %v2702
  %v2704 = vpop.f32.mrb[0].mxu0
  %2705 = vmatprep.mubr.bf16.mxu0 %v1751
  %2706 = vmatmul.mubr.bf16.gmra.mrb[0].mxu0 %v1750
  %v2707 = vpop.f32.mrb[0].mxu0
  %v2708 = vadd.f32 0.0, %v2707
  %v2709 = vpop.f32.mrb[0].mxu0
  %v2710 = vpop.f32.mrb[0].mxu0
  %v2711 = vadd.f32 0.0, %v2710
  %v2712 = vpop.f32.mrb[0].mxu0
  %2713 = vmatprep.mubr.bf16.mxu0 %v1754
  %2714 = vmatmul.mubr.bf16.gmra.mrb[0].mxu0 %v1753
  %v2715 = vpop.f32.mrb[0].mxu0
  %v2716 = vadd.f32 0.0, %v2715
  %v2717 = vpop.f32.mrb[0].mxu0
  %v2718 = vpop.f32.mrb[0].mxu0
  %v2719 = vadd.f32 0.0, %v2718
  %v2720 = vpop.f32.mrb[0].mxu0
  %2721 = vmatprep.mubr.bf16.mxu0 %v1757
  %2722 = vmatmul.mubr.bf16.gmra.mrb[0].mxu0 %v1756
  %v2723 = vpop.f32.mrb[0].mxu0
  %v2724 = vadd.f32 0.0, %v2723
  %v2725 = vpop.f32.mrb[0].mxu0
  %v2726 = vpop.f32.mrb[0].mxu0
  %v2727 = vadd.f32 0.0, %v2726
  %v2728 = vpop.f32.mrb[0].mxu0
  %2729 = vmatprep.mubr.bf16.mxu0 %v1760
  %2730 = vmatmul.mubr.bf16.gmra.mrb[0].mxu0 %v1759
  %v2731 = vpop.f32.mrb[0].mxu0
  %v2732 = vadd.f32 0.0, %v2731
  %v2733 = vpop.f32.mrb[0].mxu0
  %v2734 = vpop.f32.mrb[0].mxu0
  %v2735 = vadd.f32 0.0, %v2734
  %v2736 = vpop.f32.mrb[0].mxu0
  %2737 = vmatprep.mubr.bf16.mxu0 %v1763
  %2738 = vmatmul.mubr.bf16.gmra.mrb[0].mxu0 %v1762
  %v2739 = vpop.f32.mrb[0].mxu0
  %v2740 = vadd.f32 0.0, %v2739
  %v2741 = vpop.f32.mrb[0].mxu0
  %v2742 = vpop.f32.mrb[0].mxu0
  %v2743 = vadd.f32 0.0, %v2742
  %v2744 = vpop.f32.mrb[0].mxu0
  %2745 = vmatprep.mubr.bf16.mxu0 %v1766
  %2746 = vmatmul.mubr.bf16.gmra.mrb[0].mxu0 %v1765
  %v2747 = vpop.f32.mrb[0].mxu0
  %v2748 = vadd.f32 0.0, %v2747
  %v2749 = vpop.f32.mrb[0].mxu0
  %v2750 = vpop.f32.mrb[0].mxu0
  %v2751 = vadd.f32 0.0, %v2750
  %v2752 = vpop.f32.mrb[0].mxu0
  %2753 = vmatprep.mubr.bf16.mxu0 %v1769
  %2754 = vmatmul.mubr.bf16.gmra.mrb[0].mxu0 %v1768
  %v2755 = vpop.f32.mrb[0].mxu0
  %v2756 = vadd.f32 0.0, %v2755
  %v2757 = vpop.f32.mrb[0].mxu0
  %v2758 = vpop.f32.mrb[0].mxu0
  %v2759 = vadd.f32 0.0, %v2758
  %v2760 = vpop.f32.mrb[0].mxu0
  %2761 = vmatprep.mubr.bf16.mxu0 %v1772
  %2762 = vmatmul.mubr.bf16.gmra.mrb[0].mxu0 %v1771
  %v2763 = vpop.f32.mrb[0].mxu0
  %v2764 = vadd.f32 0.0, %v2763
  %v2765 = vpop.f32.mrb[0].mxu0
  %v2766 = vpop.f32.mrb[0].mxu0
  %v2767 = vadd.f32 0.0, %v2766
  %v2768 = vpop.f32.mrb[0].mxu0
  %2769 = vmatprep.mubr.bf16.mxu0 %v1775
  %2770 = vmatmul.mubr.bf16.gmra.mrb[0].mxu0 %v1774
  %v2771 = vpop.f32.mrb[0].mxu0
  %v2772 = vadd.f32 0.0, %v2771
  %v2773 = vpop.f32.mrb[0].mxu0
  %v2774 = vpop.f32.mrb[0].mxu0
  %v2775 = vadd.f32 0.0, %v2774
  %v2776 = vpop.f32.mrb[0].mxu0
  %2777 = vmatprep.mubr.bf16.mxu0 %v1778
  %2778 = vmatmul.mubr.bf16.gmra.mrb[0].mxu0 %v1777
  %v2779 = vpop.f32.mrb[0].mxu0
  %v2780 = vadd.f32 0.0, %v2779
  %v2781 = vpop.f32.mrb[0].mxu0
  %v2782 = vpop.f32.mrb[0].mxu0
  %v2783 = vadd.f32 0.0, %v2782
  %v2784 = vpop.f32.mrb[0].mxu0
  %2785 = vmatprep.mubr.bf16.mxu0 %v1781
  %2786 = vmatmul.mubr.bf16.gmra.mrb[0].mxu0 %v1780
  %v2787 = vpop.f32.mrb[0].mxu0
  %v2788 = vadd.f32 0.0, %v2787
  %v2789 = vpop.f32.mrb[0].mxu0
  %v2790 = vpop.f32.mrb[0].mxu0
  %v2791 = vadd.f32 0.0, %v2790
  %v2792 = vpop.f32.mrb[0].mxu0
  %2793 = vmatprep.mubr.bf16.mxu0 %v1784
  %2794 = vmatmul.mubr.bf16.gmra.mrb[0].mxu0 %v1783
  %v2795 = vpop.f32.mrb[0].mxu0
  %v2796 = vadd.f32 0.0, %v2795
  %v2797 = vpop.f32.mrb[0].mxu0
  %v2798 = vpop.f32.mrb[0].mxu0
  %v2799 = vadd.f32 0.0, %v2798
  %v2800 = vpop.f32.mrb[0].mxu0
  %2801 = vmatprep.mubr.bf16.mxu0 %v1787
  %2802 = vmatmul.mubr.bf16.gmra.mrb[0].mxu0 %v1786
  %v2803 = vpop.f32.mrb[0].mxu0
  %v2804 = vadd.f32 0.0, %v2803
  %v2805 = vpop.f32.mrb[0].mxu0
  %v2806 = vpop.f32.mrb[0].mxu0
  %v2807 = vadd.f32 0.0, %v2806
  %v2808 = vpop.f32.mrb[0].mxu0
  %2809 = vmatprep.mubr.bf16.mxu0 %v1790
  %2810 = vmatmul.mubr.bf16.gmra.mrb[0].mxu0 %v1789
  %v2811 = vpop.f32.mrb[0].mxu0
  %v2812 = vadd.f32 0.0, %v2811
  %v2813 = vpop.f32.mrb[0].mxu0
  %v2814 = vpop.f32.mrb[0].mxu0
  %v2815 = vadd.f32 0.0, %v2814
  %v2816 = vpop.f32.mrb[0].mxu0
  %2817 = vmatprep.mubr.bf16.mxu0 %v1793
  %2818 = vmatmul.mubr.bf16.gmra.mrb[0].mxu0 %v1792
  %v2819 = vpop.f32.mrb[0].mxu0
  %v2820 = vadd.f32 0.0, %v2819
  %v2821 = vpop.f32.mrb[0].mxu0
  %v2822 = vpop.f32.mrb[0].mxu0
  %v2823 = vadd.f32 0.0, %v2822
  %v2824 = vpop.f32.mrb[0].mxu0
  %2825 = vmatprep.mubr.bf16.mxu0 %v1796
  %2826 = vmatmul.mubr.bf16.gmra.mrb[0].mxu0 %v1795
  %v2827 = vpop.f32.mrb[0].mxu0
  %v2828 = vadd.f32 0.0, %v2827
  %v2829 = vpop.f32.mrb[0].mxu0
  %v2830 = vpop.f32.mrb[0].mxu0
  %v2831 = vadd.f32 0.0, %v2830
  %v2832 = vpop.f32.mrb[0].mxu0
  %2833 = vmatprep.mubr.bf16.mxu0 %v1799
  %2834 = vmatmul.mubr.bf16.gmra.mrb[0].mxu0 %v1798
  %v2835 = vpop.f32.mrb[0].mxu0
  %v2836 = vadd.f32 0.0, %v2835
  %v2837 = vpop.f32.mrb[0].mxu0
  %v2838 = vpop.f32.mrb[0].mxu0
  %v2839 = vadd.f32 0.0, %v2838
  %v2840 = vpop.f32.mrb[0].mxu0
  %2841 = vmatprep.mubr.bf16.mxu0 %v1802
  %2842 = vmatmul.mubr.bf16.gmra.mrb[0].mxu0 %v1801
  %v2843 = vpop.f32.mrb[0].mxu0
  %v2844 = vadd.f32 0.0, %v2843
  %v2845 = vpop.f32.mrb[0].mxu0
  %v2846 = vpop.f32.mrb[0].mxu0
  %v2847 = vadd.f32 0.0, %v2846
  %v2848 = vpop.f32.mrb[0].mxu0
  %2849 = vmatprep.mubr.bf16.mxu0 %v1805
  %2850 = vmatmul.mubr.bf16.gmra.mrb[0].mxu0 %v1804
  %v2851 = vpop.f32.mrb[0].mxu0
  %v2852 = vadd.f32 0.0, %v2851
  %v2853 = vpop.f32.mrb[0].mxu0
  %v2854 = vpop.f32.mrb[0].mxu0
  %v2855 = vadd.f32 0.0, %v2854
  %v2856 = vpop.f32.mrb[0].mxu0
  %2857 = vmatprep.mubr.bf16.mxu0 %v1808
  %2858 = vmatmul.mubr.bf16.gmra.mrb[0].mxu0 %v1807
  %v2859 = vpop.f32.mrb[0].mxu0
  %v2860 = vadd.f32 0.0, %v2859
  %v2861 = vpop.f32.mrb[0].mxu0
  %v2862 = vpop.f32.mrb[0].mxu0
  %v2863 = vadd.f32 0.0, %v2862
  %v2864 = vpop.f32.mrb[0].mxu0
  %2865 = vmatprep.mubr.bf16.mxu0 %v1811
  %2866 = vmatmul.mubr.bf16.gmra.mrb[0].mxu0 %v1810
  %v2867 = vpop.f32.mrb[0].mxu0
  %v2868 = vadd.f32 0.0, %v2867
  %v2869 = vpop.f32.mrb[0].mxu0
  %v2870 = vpop.f32.mrb[0].mxu0
  %v2871 = vadd.f32 0.0, %v2870
  %v2872 = vpop.f32.mrb[0].mxu0
  %2873 = vmatprep.mubr.bf16.mxu0 %v1814
  %2874 = vmatmul.mubr.bf16.gmra.mrb[0].mxu0 %v1813
  %v2875 = vpop.f32.mrb[0].mxu0
  %v2876 = vadd.f32 0.0, %v2875
  %v2877 = vpop.f32.mrb[0].mxu0
  %v2878 = vpop.f32.mrb[0].mxu0
  %v2879 = vadd.f32 0.0, %v2878
  %v2880 = vpop.f32.mrb[0].mxu0
  %2881 = vmatprep.mubr.bf16.mxu0 %v1817
  %2882 = vmatmul.mubr.bf16.gmra.mrb[0].mxu0 %v1816
  %v2883 = vpop.f32.mrb[0].mxu0
  %v2884 = vadd.f32 0.0, %v2883
  %v2885 = vpop.f32.mrb[0].mxu0
  %v2886 = vpop.f32.mrb[0].mxu0
  %v2887 = vadd.f32 0.0, %v2886
  %v2888 = vpop.f32.mrb[0].mxu0
  %2889 = vmatprep.mubr.bf16.mxu0 %v1820
  %2890 = vmatmul.mubr.bf16.gmra.mrb[0].mxu0 %v1819
  %v2891 = vpop.f32.mrb[0].mxu0
  %v2892 = vadd.f32 0.0, %v2891
  %v2893 = vpop.f32.mrb[0].mxu0
  %v2894 = vpop.f32.mrb[0].mxu0
  %v2895 = vadd.f32 0.0, %v2894
  %v2896 = vpop.f32.mrb[0].mxu0
  %2897 = vmatprep.mubr.bf16.mxu0 %v1823
  %2898 = vmatmul.mubr.bf16.gmra.mrb[0].mxu0 %v1822
  %v2899 = vpop.f32.mrb[0].mxu0
  %v2900 = vadd.f32 0.0, %v2899
  %v2901 = vpop.f32.mrb[0].mxu0
  %v2902 = vpop.f32.mrb[0].mxu0
  %v2903 = vadd.f32 0.0, %v2902
  %v2904 = vpop.f32.mrb[0].mxu0
  %2905 = vmatprep.mubr.bf16.mxu0 %v1826
  %2906 = vmatmul.mubr.bf16.gmra.mrb[0].mxu0 %v1825
  %v2907 = vpop.f32.mrb[0].mxu0
  %v2908 = vadd.f32 0.0, %v2907
  %v2909 = vpop.f32.mrb[0].mxu0
  %v2910 = vpop.f32.mrb[0].mxu0
  %v2911 = vadd.f32 0.0, %v2910
  %v2912 = vpop.f32.mrb[0].mxu0
  %2913 = vmatprep.mubr.bf16.mxu0 %v1829
  %2914 = vmatmul.mubr.bf16.gmra.mrb[0].mxu0 %v1828
  %v2915 = vpop.f32.mrb[0].mxu0
  %v2916 = vadd.f32 0.0, %v2915
  %v2917 = vpop.f32.mrb[0].mxu0
  %v2918 = vpop.f32.mrb[0].mxu0
  %v2919 = vadd.f32 0.0, %v2918
  %v2920 = vpop.f32.mrb[0].mxu0
  %2921 = vmatprep.mubr.bf16.mxu0 %v1832
  %2922 = vmatmul.mubr.bf16.gmra.mrb[0].mxu0 %v1831
  %v2923 = vpop.f32.mrb[0].mxu0
  %v2924 = vadd.f32 0.0, %v2923
  %v2925 = vpop.f32.mrb[0].mxu0
  %v2926 = vpop.f32.mrb[0].mxu0
  %v2927 = vadd.f32 0.0, %v2926
  %v2928 = vpop.f32.mrb[0].mxu0
  %2929 = vmatprep.mubr.bf16.mxu0 %v1835
  %2930 = vmatmul.mubr.bf16.gmra.mrb[0].mxu0 %v1834
  %v2931 = vpop.f32.mrb[0].mxu0
  %v2932 = vadd.f32 0.0, %v2931
  %v2933 = vpop.f32.mrb[0].mxu0
  %v2934 = vpop.f32.mrb[0].mxu0
  %v2935 = vadd.f32 0.0, %v2934
  %v2936 = vpop.f32.mrb[0].mxu0
  %2937 = vmatprep.mubr.bf16.mxu0 %v1838
  %2938 = vmatmul.mubr.bf16.gmra.mrb[0].mxu0 %v1837
  %v2939 = vpop.f32.mrb[0].mxu0
  %v2940 = vadd.f32 0.0, %v2939
  %v2941 = vpop.f32.mrb[0].mxu0
  %v2942 = vpop.f32.mrb[0].mxu0
  %v2943 = vadd.f32 0.0, %v2942
  %v2944 = vpop.f32.mrb[0].mxu0
  %2945 = vmatprep.mubr.bf16.mxu0 %v1841
  %2946 = vmatmul.mubr.bf16.gmra.mrb[0].mxu0 %v1840
  %v2947 = vpop.f32.mrb[0].mxu0
  %v2948 = vadd.f32 0.0, %v2947
  %v2949 = vpop.f32.mrb[0].mxu0
  %v2950 = vpop.f32.mrb[0].mxu0
  %v2951 = vadd.f32 0.0, %v2950
  %v2952 = vpop.f32.mrb[0].mxu0
  %2953 = vmatprep.mubr.bf16.mxu0 %v1844
  %2954 = vmatmul.mubr.bf16.gmra.mrb[0].mxu0 %v1843
  %v2955 = vpop.f32.mrb[0].mxu0
  %v2956 = vadd.f32 0.0, %v2955
  %v2957 = vpop.f32.mrb[0].mxu0
  %v2958 = vpop.f32.mrb[0].mxu0
  %v2959 = vadd.f32 0.0, %v2958
  %v2960 = vpop.f32.mrb[0].mxu0
  %2961 = vmatprep.mubr.bf16.mxu0 %v1847
  %2962 = vmatmul.mubr.bf16.gmra.mrb[0].mxu0 %v1846
  %v2963 = vpop.f32.mrb[0].mxu0
  %v2964 = vadd.f32 0.0, %v2963
  %v2965 = vpop.f32.mrb[0].mxu0
  %v2966 = vpop.f32.mrb[0].mxu0
  %v2967 = vadd.f32 0.0, %v2966
  %v2968 = vpop.f32.mrb[0].mxu0
  %2969 = vmatprep.mubr.bf16.mxu0 %v1850
  %2970 = vmatmul.mubr.bf16.gmra.mrb[0].mxu0 %v1849
  %v2971 = vpop.f32.mrb[0].mxu0
  %v2972 = vadd.f32 0.0, %v2971
  %v2973 = vpop.f32.mrb[0].mxu0
  %v2974 = vpop.f32.mrb[0].mxu0
  %v2975 = vadd.f32 0.0, %v2974
  %v2976 = vpop.f32.mrb[0].mxu0
  %2977 = vmatprep.mubr.bf16.mxu0 %v1853
  %2978 = vmatmul.mubr.bf16.gmra.mrb[0].mxu0 %v1852
  %v2979 = vpop.f32.mrb[0].mxu0
  %v2980 = vadd.f32 0.0, %v2979
  %v2981 = vpop.f32.mrb[0].mxu0
  %v2982 = vpop.f32.mrb[0].mxu0
  %v2983 = vadd.f32 0.0, %v2982
  %v2984 = vpop.f32.mrb[0].mxu0
  %2985 = vmatprep.mubr.bf16.mxu0 %v1856
  %2986 = vmatmul.mubr.bf16.gmra.mrb[0].mxu0 %v1855
  %v2987 = vpop.f32.mrb[0].mxu0
  %v2988 = vadd.f32 0.0, %v2987
  %v2989 = vpop.f32.mrb[0].mxu0
  %v2990 = vpop.f32.mrb[0].mxu0
  %v2991 = vadd.f32 0.0, %v2990
  %v2992 = vpop.f32.mrb[0].mxu0
  %2993 = vmatprep.mubr.bf16.mxu0 %v1859
  %2994 = vmatmul.mubr.bf16.gmra.mrb[0].mxu0 %v1858
  %v2995 = vpop.f32.mrb[0].mxu0
  %v2996 = vadd.f32 0.0, %v2995
  %v2997 = vpop.f32.mrb[0].mxu0
  %v2998 = vpop.f32.mrb[0].mxu0
  %v2999 = vadd.f32 0.0, %v2998
  %v3000 = vpop.f32.mrb[0].mxu0
  %3001 = vmatprep.mubr.bf16.mxu0 %v1862
  %3002 = vmatmul.mubr.bf16.gmra.mrb[0].mxu0 %v1861
  %v3003 = vpop.f32.mrb[0].mxu0
  %v3004 = vadd.f32 0.0, %v3003
  %v3005 = vpop.f32.mrb[0].mxu0
  %v3006 = vpop.f32.mrb[0].mxu0
  %v3007 = vadd.f32 0.0, %v3006
  %v3008 = vpop.f32.mrb[0].mxu0
  %3009 = vmatprep.mubr.bf16.mxu0 %v1865
  %3010 = vmatmul.mubr.bf16.gmra.mrb[0].mxu0 %v1864
  %v3011 = vpop.f32.mrb[0].mxu0
  %v3012 = vadd.f32 0.0, %v3011
  %v3013 = vpop.f32.mrb[0].mxu0
  %v3014 = vpop.f32.mrb[0].mxu0
  %v3015 = vadd.f32 0.0, %v3014
  %v3016 = vpop.f32.mrb[0].mxu0
  %3017 = vmatprep.mubr.bf16.mxu0 %v1868
  %3018 = vmatmul.mubr.bf16.gmra.mrb[0].mxu0 %v1867
  %v3019 = vpop.f32.mrb[0].mxu0
  %v3020 = vadd.f32 0.0, %v3019
  %v3021 = vpop.f32.mrb[0].mxu0
  %v3022 = vpop.f32.mrb[0].mxu0
  %v3023 = vadd.f32 0.0, %v3022
  %v3024 = vpop.f32.mrb[0].mxu0
  %3025 = vmatprep.mubr.bf16.mxu0 %v1871
  %3026 = vmatmul.mubr.bf16.gmra.mrb[0].mxu0 %v1870
  %v3027 = vpop.f32.mrb[0].mxu0
  %v3028 = vadd.f32 0.0, %v3027
  %v3029 = vpop.f32.mrb[0].mxu0
  %v3030 = vpop.f32.mrb[0].mxu0
  %v3031 = vadd.f32 0.0, %v3030
  %v3032 = vpop.f32.mrb[0].mxu0
  %3033 = vmatprep.mubr.bf16.mxu0 %v1874
  %3034 = vmatmul.mubr.bf16.gmra.mrb[0].mxu0 %v1873
  %v3035 = vpop.f32.mrb[0].mxu0
  %v3036 = vadd.f32 0.0, %v3035
  %v3037 = vpop.f32.mrb[0].mxu0
  %v3038 = vpop.f32.mrb[0].mxu0
  %v3039 = vadd.f32 0.0, %v3038
  %v3040 = vpop.f32.mrb[0].mxu0
  %3041 = vmatprep.mubr.bf16.mxu0 %v1877
  %3042 = vmatmul.mubr.bf16.gmra.mrb[0].mxu0 %v1876
  %v3043 = vpop.f32.mrb[0].mxu0
  %v3044 = vadd.f32 0.0, %v3043
  %v3045 = vpop.f32.mrb[0].mxu0
  %v3046 = vpop.f32.mrb[0].mxu0
  %v3047 = vadd.f32 0.0, %v3046
  %v3048 = vpop.f32.mrb[0].mxu0
  %3049 = vmatprep.mubr.bf16.mxu0 %v1880
  %3050 = vmatmul.mubr.bf16.gmra.mrb[0].mxu0 %v1879
  %v3051 = vpop.f32.mrb[0].mxu0
  %v3052 = vadd.f32 0.0, %v3051
  %v3053 = vpop.f32.mrb[0].mxu0
  %v3054 = vpop.f32.mrb[0].mxu0
  %v3055 = vadd.f32 0.0, %v3054
  %v3056 = vpop.f32.mrb[0].mxu0
  %3057 = vmatprep.mubr.bf16.mxu0 %v1883
  %3058 = vmatmul.mubr.bf16.gmra.mrb[0].mxu0 %v1882
  %v3059 = vpop.f32.mrb[0].mxu0
  %v3060 = vadd.f32 0.0, %v3059
  %v3061 = vpop.f32.mrb[0].mxu0
  %v3062 = vpop.f32.mrb[0].mxu0
  %v3063 = vadd.f32 0.0, %v3062
  %v3064 = vpop.f32.mrb[0].mxu0
  %3065 = vmatprep.mubr.bf16.mxu0 %v1886
  %3066 = vmatmul.mubr.bf16.gmra.mrb[0].mxu0 %v1885
  %v3067 = vpop.f32.mrb[0].mxu0
  %v3068 = vadd.f32 0.0, %v3067
  %v3069 = vpop.f32.mrb[0].mxu0
  %v3070 = vpop.f32.mrb[0].mxu0
  %v3071 = vadd.f32 0.0, %v3070
  %v3072 = vpop.f32.mrb[0].mxu0
  %3073 = vmatprep.mubr.bf16.mxu0 %v1889
  %3074 = vmatmul.mubr.bf16.gmra.mrb[0].mxu0 %v1888
  %v3075 = vpop.f32.mrb[0].mxu0
  %v3076 = vadd.f32 0.0, %v3075
  %v3077 = vpop.f32.mrb[0].mxu0
  %v3078 = vpop.f32.mrb[0].mxu0
  %v3079 = vadd.f32 0.0, %v3078
  %v3080 = vpop.f32.mrb[0].mxu0
  %3081 = vmatprep.mubr.bf16.mxu0 %v1892
  %3082 = vmatmul.mubr.bf16.gmra.mrb[0].mxu0 %v1891
  %v3083 = vpop.f32.mrb[0].mxu0
  %v3084 = vadd.f32 0.0, %v3083
  %v3085 = vpop.f32.mrb[0].mxu0
  %v3086 = vpop.f32.mrb[0].mxu0
  %v3087 = vadd.f32 0.0, %v3086
  %v3088 = vpop.f32.mrb[0].mxu0
  %3089 = vmatprep.mubr.bf16.mxu0 %v1895
  %3090 = vmatmul.mubr.bf16.gmra.mrb[0].mxu0 %v1894
  %v3091 = vpop.f32.mrb[0].mxu0
  %v3092 = vadd.f32 0.0, %v3091
  %v3093 = vpop.f32.mrb[0].mxu0
  %v3094 = vpop.f32.mrb[0].mxu0
  %v3095 = vadd.f32 0.0, %v3094
  %v3096 = vpop.f32.mrb[0].mxu0
  %3097 = vmatprep.mubr.bf16.mxu0 %v1898
  %3098 = vmatmul.mubr.bf16.gmra.mrb[0].mxu0 %v1897
  %v3099 = vpop.f32.mrb[0].mxu0
  %v3100 = vadd.f32 0.0, %v3099
  %v3101 = vpop.f32.mrb[0].mxu0
  %v3102 = vpop.f32.mrb[0].mxu0
  %v3103 = vadd.f32 0.0, %v3102
  %v3104 = vpop.f32.mrb[0].mxu0
  %3105 = vmatprep.mubr.bf16.mxu0 %v1901
  %3106 = vmatmul.mubr.bf16.gmra.mrb[0].mxu0 %v1900
  %v3107 = vpop.f32.mrb[0].mxu0
  %v3108 = vadd.f32 0.0, %v3107
  %v3109 = vpop.f32.mrb[0].mxu0
  %v3110 = vpop.f32.mrb[0].mxu0
  %v3111 = vadd.f32 0.0, %v3110
  %v3112 = vpop.f32.mrb[0].mxu0
  %3113 = vmatprep.mubr.bf16.mxu0 %v1904
  %3114 = vmatmul.mubr.bf16.gmra.mrb[0].mxu0 %v1903
  %v3115 = vpop.f32.mrb[0].mxu0
  %v3116 = vadd.f32 0.0, %v3115
  %v3117 = vpop.f32.mrb[0].mxu0
  %v3118 = vpop.f32.mrb[0].mxu0
  %v3119 = vadd.f32 0.0, %v3118
  %v3120 = vpop.f32.mrb[0].mxu0
  %3121 = vmatprep.mubr.bf16.mxu0 %v1907
  %3122 = vmatmul.mubr.bf16.gmra.mrb[0].mxu0 %v1906
  %v3123 = vpop.f32.mrb[0].mxu0
  %v3124 = vadd.f32 0.0, %v3123
  %v3125 = vpop.f32.mrb[0].mxu0
  %v3126 = vpop.f32.mrb[0].mxu0
  %v3127 = vadd.f32 0.0, %v3126
  %v3128 = vpop.f32.mrb[0].mxu0
  %3129 = vmatprep.mubr.bf16.mxu0 %v1910
  %3130 = vmatmul.mubr.bf16.gmra.mrb[0].mxu0 %v1909
  %v3131 = vpop.f32.mrb[0].mxu0
  %v3132 = vadd.f32 0.0, %v3131
  %v3133 = vpop.f32.mrb[0].mxu0
  %v3134 = vpop.f32.mrb[0].mxu0
  %v3135 = vadd.f32 0.0, %v3134
  %v3136 = vpop.f32.mrb[0].mxu0
  %3137 = vmatprep.mubr.bf16.mxu0 %v1913
  %3138 = vmatmul.mubr.bf16.gmra.mrb[0].mxu0 %v1912
  %v3139 = vpop.f32.mrb[0].mxu0
  %v3140 = vadd.f32 0.0, %v3139
  %v3141 = vpop.f32.mrb[0].mxu0
  %v3142 = vpop.f32.mrb[0].mxu0
  %v3143 = vadd.f32 0.0, %v3142
  %v3144 = vpop.f32.mrb[0].mxu0
  %3145 = vmatprep.mubr.bf16.mxu0 %v1916
  %3146 = vmatmul.mubr.bf16.gmra.mrb[0].mxu0 %v1915
  %v3147 = vpop.f32.mrb[0].mxu0
  %v3148 = vadd.f32 0.0, %v3147
  %v3149 = vpop.f32.mrb[0].mxu0
  %v3150 = vpop.f32.mrb[0].mxu0
  %v3151 = vadd.f32 0.0, %v3150
  %v3152 = vpop.f32.mrb[0].mxu0
  %3153 = vmatprep.mubr.bf16.mxu0 %v1919
  %3154 = vmatmul.mubr.bf16.gmra.mrb[0].mxu0 %v1918
  %v3155 = vpop.f32.mrb[0].mxu0
  %v3156 = vadd.f32 0.0, %v3155
  %v3157 = vpop.f32.mrb[0].mxu0
  %v3158 = vpop.f32.mrb[0].mxu0
  %v3159 = vadd.f32 0.0, %v3158
  %v3160 = vpop.f32.mrb[0].mxu0
  %3161 = vmatprep.mubr.bf16.mxu0 %v1922
  %3162 = vmatmul.mubr.bf16.gmra.mrb[0].mxu0 %v1921
  %v3163 = vpop.f32.mrb[0].mxu0
  %v3164 = vadd.f32 0.0, %v3163
  %v3165 = vpop.f32.mrb[0].mxu0
  %v3166 = vpop.f32.mrb[0].mxu0
  %v3167 = vadd.f32 0.0, %v3166
  %v3168 = vpop.f32.mrb[0].mxu0
  %3169 = vmatprep.mubr.bf16.mxu0 %v1925
  %3170 = vmatmul.mubr.bf16.gmra.mrb[0].mxu0 %v1924
  %v3171 = vpop.f32.mrb[0].mxu0
  %v3172 = vadd.f32 0.0, %v3171
  %v3173 = vpop.f32.mrb[0].mxu0
  %v3174 = vpop.f32.mrb[0].mxu0
  %v3175 = vadd.f32 0.0, %v3174
  %v3176 = vpop.f32.mrb[0].mxu0
  %3177 = vmatprep.mubr.bf16.mxu0 %v1928
  %3178 = vmatmul.mubr.bf16.gmra.mrb[0].mxu0 %v1927
  %v3179 = vpop.f32.mrb[0].mxu0
  %v3180 = vadd.f32 0.0, %v3179
  %v3181 = vpop.f32.mrb[0].mxu0
  %v3182 = vpop.f32.mrb[0].mxu0
  %v3183 = vadd.f32 0.0, %v3182
  %v3184 = vpop.f32.mrb[0].mxu0
  %3185 = vmatprep.mubr.bf16.mxu0 %v1931
  %3186 = vmatmul.mubr.bf16.gmra.mrb[0].mxu0 %v1930
  %v3187 = vpop.f32.mrb[0].mxu0
  %v3188 = vadd.f32 0.0, %v3187
  %v3189 = vpop.f32.mrb[0].mxu0
  %v3190 = vpop.f32.mrb[0].mxu0
  %v3191 = vadd.f32 0.0, %v3190
  %v3192 = vpop.f32.mrb[0].mxu0
  %3193 = vmatprep.mubr.bf16.mxu0 %v1934
  %3194 = vmatmul.mubr.bf16.gmra.mrb[0].mxu0 %v1933
  %v3195 = vpop.f32.mrb[0].mxu0
  %v3196 = vadd.f32 0.0, %v3195
  %v3197 = vpop.f32.mrb[0].mxu0
  %v3198 = vpop.f32.mrb[0].mxu0
  %v3199 = vadd.f32 0.0, %v3198
  %v3200 = vpop.f32.mrb[0].mxu0
  %3201 = vmatprep.mubr.bf16.mxu0 %v1937
  %3202 = vmatmul.mubr.bf16.gmra.mrb[0].mxu0 %v1936
  %v3203 = vpop.f32.mrb[0].mxu0
  %v3204 = vadd.f32 0.0, %v3203
  %v3205 = vpop.f32.mrb[0].mxu0
  %v3206 = vpop.f32.mrb[0].mxu0
  %v3207 = vadd.f32 0.0, %v3206
  %v3208 = vpop.f32.mrb[0].mxu0
  %3209 = vmatprep.mubr.bf16.mxu0 %v1940
  %3210 = vmatmul.mubr.bf16.gmra.mrb[0].mxu0 %v1939
  %v3211 = vpop.f32.mrb[0].mxu0
  %v3212 = vadd.f32 0.0, %v3211
  %v3213 = vpop.f32.mrb[0].mxu0
  %v3214 = vpop.f32.mrb[0].mxu0
  %v3215 = vadd.f32 0.0, %v3214
  %v3216 = vpop.f32.mrb[0].mxu0
  %3217 = vmatprep.mubr.bf16.mxu0 %v1943
  %3218 = vmatmul.mubr.bf16.gmra.mrb[0].mxu0 %v1942
  %v3219 = vpop.f32.mrb[0].mxu0
  %v3220 = vadd.f32 0.0, %v3219
  %v3221 = vpop.f32.mrb[0].mxu0
  %v3222 = vpop.f32.mrb[0].mxu0
  %v3223 = vadd.f32 0.0, %v3222
  %v3224 = vpop.f32.mrb[0].mxu0
  %3225 = vmatprep.mubr.bf16.mxu0 %v1946
  %3226 = vmatmul.mubr.bf16.gmra.mrb[0].mxu0 %v1945
  %v3227 = vpop.f32.mrb[0].mxu0
  %v3228 = vadd.f32 0.0, %v3227
  %v3229 = vpop.f32.mrb[0].mxu0
  %v3230 = vpop.f32.mrb[0].mxu0
  %v3231 = vadd.f32 0.0, %v3230
  %v3232 = vpop.f32.mrb[0].mxu0
  %3233 = vmatprep.mubr.bf16.mxu0 %v1949
  %3234 = vmatmul.mubr.bf16.gmra.mrb[0].mxu0 %v1948
  %v3235 = vpop.f32.mrb[0].mxu0
  %v3236 = vadd.f32 0.0, %v3235
  %v3237 = vpop.f32.mrb[0].mxu0
  %v3238 = vpop.f32.mrb[0].mxu0
  %v3239 = vadd.f32 0.0, %v3238
  %v3240 = vpop.f32.mrb[0].mxu0
  %3241 = vmatprep.mubr.bf16.mxu0 %v1952
  %3242 = vmatmul.mubr.bf16.gmra.mrb[0].mxu0 %v1951
  %v3243 = vpop.f32.mrb[0].mxu0
  %v3244 = vadd.f32 0.0, %v3243
  %v3245 = vpop.f32.mrb[0].mxu0
  %v3246 = vpop.f32.mrb[0].mxu0
  %v3247 = vadd.f32 0.0, %v3246
  %v3248 = vpop.f32.mrb[0].mxu0
  %3249 = vmatprep.mubr.bf16.mxu0 %v1955
  %3250 = vmatmul.mubr.bf16.gmra.mrb[0].mxu0 %v1954
  %v3251 = vpop.f32.mrb[0].mxu0
  %v3252 = vadd.f32 0.0, %v3251
  %v3253 = vpop.f32.mrb[0].mxu0
  %v3254 = vpop.f32.mrb[0].mxu0
  %v3255 = vadd.f32 0.0, %v3254
  %v3256 = vpop.f32.mrb[0].mxu0
  %3257 = vmatprep.mubr.bf16.mxu0 %v1958
  %3258 = vmatmul.mubr.bf16.gmra.mrb[0].mxu0 %v1957
  %v3259 = vpop.f32.mrb[0].mxu0
  %v3260 = vadd.f32 0.0, %v3259
  %v3261 = vpop.f32.mrb[0].mxu0
  %v3262 = vpop.f32.mrb[0].mxu0
  %v3263 = vadd.f32 0.0, %v3262
  %v3264 = vpop.f32.mrb[0].mxu0
  %3265 = vmatprep.mubr.bf16.mxu0 %v1961
  %3266 = vmatmul.mubr.bf16.gmra.mrb[0].mxu0 %v1960
  %v3267 = vpop.f32.mrb[0].mxu0
  %v3268 = vadd.f32 0.0, %v3267
  %v3269 = vpop.f32.mrb[0].mxu0
  %v3270 = vpop.f32.mrb[0].mxu0
  %v3271 = vadd.f32 0.0, %v3270
  %v3272 = vpop.f32.mrb[0].mxu0
  %3273 = vmatprep.mubr.bf16.mxu0 %v1964
  %3274 = vmatmul.mubr.bf16.gmra.mrb[0].mxu0 %v1963
  %v3275 = vpop.f32.mrb[0].mxu0
  %v3276 = vadd.f32 0.0, %v3275
  %v3277 = vpop.f32.mrb[0].mxu0
  %v3278 = vpop.f32.mrb[0].mxu0
  %v3279 = vadd.f32 0.0, %v3278
  %v3280 = vpop.f32.mrb[0].mxu0
  %3281 = vmatprep.mubr.bf16.mxu0 %v1967
  %3282 = vmatmul.mubr.bf16.gmra.mrb[0].mxu0 %v1966
  %v3283 = vpop.f32.mrb[0].mxu0
  %v3284 = vadd.f32 0.0, %v3283
  %v3285 = vpop.f32.mrb[0].mxu0
  %v3286 = vpop.f32.mrb[0].mxu0
  %v3287 = vadd.f32 0.0, %v3286
  %v3288 = vpop.f32.mrb[0].mxu0
  %3289 = vmatprep.mubr.bf16.mxu0 %v1970
  %3290 = vmatmul.mubr.bf16.gmra.mrb[0].mxu0 %v1969
  %v3291 = vpop.f32.mrb[0].mxu0
  %v3292 = vadd.f32 0.0, %v3291
  %v3293 = vpop.f32.mrb[0].mxu0
  %v3294 = vpop.f32.mrb[0].mxu0
  %v3295 = vadd.f32 0.0, %v3294
  %v3296 = vpop.f32.mrb[0].mxu0
  %3297 = vmatprep.mubr.bf16.mxu0 %v1973
  %3298 = vmatmul.mubr.bf16.gmra.mrb[0].mxu0 %v1972
  %v3299 = vpop.f32.mrb[0].mxu0
  %v3300 = vadd.f32 0.0, %v3299
  %v3301 = vpop.f32.mrb[0].mxu0
  %v3302 = vpop.f32.mrb[0].mxu0
  %v3303 = vadd.f32 0.0, %v3302
  %v3304 = vpop.f32.mrb[0].mxu0
  %3305 = vmatprep.mubr.bf16.mxu0 %v1976
  %3306 = vmatmul.mubr.bf16.gmra.mrb[0].mxu0 %v1975
  %v3307 = vpop.f32.mrb[0].mxu0
  %v3308 = vadd.f32 0.0, %v3307
  %v3309 = vpop.f32.mrb[0].mxu0
  %v3310 = vpop.f32.mrb[0].mxu0
  %v3311 = vadd.f32 0.0, %v3310
  %v3312 = vpop.f32.mrb[0].mxu0
  %3313 = vmatprep.mubr.bf16.mxu0 %v1979
  %3314 = vmatmul.mubr.bf16.gmra.mrb[0].mxu0 %v1978
  %v3315 = vpop.f32.mrb[0].mxu0
  %v3316 = vadd.f32 0.0, %v3315
  %v3317 = vpop.f32.mrb[0].mxu0
  %v3318 = vpop.f32.mrb[0].mxu0
  %v3319 = vadd.f32 0.0, %v3318
  %v3320 = vpop.f32.mrb[0].mxu0
  %3321 = vmatprep.mubr.bf16.mxu0 %v1982
  %3322 = vmatmul.mubr.bf16.gmra.mrb[0].mxu0 %v1981
  %v3323 = vpop.f32.mrb[0].mxu0
  %v3324 = vadd.f32 0.0, %v3323
  %v3325 = vpop.f32.mrb[0].mxu0
  %v3326 = vpop.f32.mrb[0].mxu0
  %v3327 = vadd.f32 0.0, %v3326
  %v3328 = vpop.f32.mrb[0].mxu0
  %3329 = vmatprep.mubr.bf16.mxu0 %v1985
  %3330 = vmatmul.mubr.bf16.gmra.mrb[0].mxu0 %v1984
  %v3331 = vpop.f32.mrb[0].mxu0
  %v3332 = vadd.f32 0.0, %v3331
  %v3333 = vpop.f32.mrb[0].mxu0
  %v3334 = vpop.f32.mrb[0].mxu0
  %v3335 = vadd.f32 0.0, %v3334
  %v3336 = vpop.f32.mrb[0].mxu0
  %3337 = vmatprep.mubr.bf16.mxu0 %v1988
  %3338 = vmatmul.mubr.bf16.gmra.mrb[0].mxu0 %v1987
  %v3339 = vpop.f32.mrb[0].mxu0
  %v3340 = vadd.f32 0.0, %v3339
  %v3341 = vpop.f32.mrb[0].mxu0
  %v3342 = vpop.f32.mrb[0].mxu0
  %v3343 = vadd.f32 0.0, %v3342
  %v3344 = vpop.f32.mrb[0].mxu0
  %3345 = vmatprep.mubr.bf16.mxu0 %v1991
  %3346 = vmatmul.mubr.bf16.gmra.mrb[0].mxu0 %v1990
  %v3347 = vpop.f32.mrb[0].mxu0
  %v3348 = vadd.f32 0.0, %v3347
  %v3349 = vpop.f32.mrb[0].mxu0
  %v3350 = vpop.f32.mrb[0].mxu0
  %v3351 = vadd.f32 0.0, %v3350
  %v3352 = vpop.f32.mrb[0].mxu0
  %3353 = vmatprep.mubr.bf16.mxu0 %v1994
  %3354 = vmatmul.mubr.bf16.gmra.mrb[0].mxu0 %v1993
  %v3355 = vpop.f32.mrb[0].mxu0
  %v3356 = vadd.f32 0.0, %v3355
  %v3357 = vpop.f32.mrb[0].mxu0
  %v3358 = vpop.f32.mrb[0].mxu0
  %v3359 = vadd.f32 0.0, %v3358
  %v3360 = vpop.f32.mrb[0].mxu0
  %3361 = vmatprep.mubr.bf16.mxu0 %v1997
  %3362 = vmatmul.mubr.bf16.gmra.mrb[0].mxu0 %v1996
  %v3363 = vpop.f32.mrb[0].mxu0
  %v3364 = vadd.f32 0.0, %v3363
  %v3365 = vpop.f32.mrb[0].mxu0
  %v3366 = vpop.f32.mrb[0].mxu0
  %v3367 = vadd.f32 0.0, %v3366
  %v3368 = vpop.f32.mrb[0].mxu0
  %3369 = vmatprep.mubr.bf16.mxu0 %v2000
  %3370 = vmatmul.mubr.bf16.gmra.mrb[0].mxu0 %v1999
  %v3371 = vpop.f32.mrb[0].mxu0
  %v3372 = vadd.f32 0.0, %v3371
  %v3373 = vpop.f32.mrb[0].mxu0
  %v3374 = vpop.f32.mrb[0].mxu0
  %v3375 = vadd.f32 0.0, %v3374
  %v3376 = vpop.f32.mrb[0].mxu0
  %3377 = vmatprep.mubr.bf16.mxu0 %v2003
  %3378 = vmatmul.mubr.bf16.gmra.mrb[0].mxu0 %v2002
  %v3379 = vpop.f32.mrb[0].mxu0
  %v3380 = vadd.f32 0.0, %v3379
  %v3381 = vpop.f32.mrb[0].mxu0
  %v3382 = vpop.f32.mrb[0].mxu0
  %v3383 = vadd.f32 0.0, %v3382
  %v3384 = vpop.f32.mrb[0].mxu0
  %3385 = vmatprep.mubr.bf16.mxu0 %v2006
  %3386 = vmatmul.mubr.bf16.gmra.mrb[0].mxu0 %v2005
  %v3387 = vpop.f32.mrb[0].mxu0
  %v3388 = vadd.f32 0.0, %v3387
  %v3389 = vpop.f32.mrb[0].mxu0
  %v3390 = vpop.f32.mrb[0].mxu0
  %v3391 = vadd.f32 0.0, %v3390
  %v3392 = vpop.f32.mrb[0].mxu0
  %3393 = vmatprep.mubr.bf16.mxu0 %v2009
  %3394 = vmatmul.mubr.bf16.gmra.mrb[0].mxu0 %v2008
  %v3395 = vpop.f32.mrb[0].mxu0
  %v3396 = vadd.f32 0.0, %v3395
  %v3397 = vpop.f32.mrb[0].mxu0
  %v3398 = vpop.f32.mrb[0].mxu0
  %v3399 = vadd.f32 0.0, %v3398
  %v3400 = vpop.f32.mrb[0].mxu0
  %3401 = vmatprep.mubr.bf16.mxu0 %v2012
  %3402 = vmatmul.mubr.bf16.gmra.mrb[0].mxu0 %v2011
  %v3403 = vpop.f32.mrb[0].mxu0
  %v3404 = vadd.f32 0.0, %v3403
  %v3405 = vpop.f32.mrb[0].mxu0
  %v3406 = vpop.f32.mrb[0].mxu0
  %v3407 = vadd.f32 0.0, %v3406
  %v3408 = vpop.f32.mrb[0].mxu0
  %3409 = vmatprep.mubr.bf16.mxu0 %v2015
  %3410 = vmatmul.mubr.bf16.gmra.mrb[0].mxu0 %v2014
  %v3411 = vpop.f32.mrb[0].mxu0
  %v3412 = vadd.f32 0.0, %v3411
  %v3413 = vpop.f32.mrb[0].mxu0
  %v3414 = vpop.f32.mrb[0].mxu0
  %v3415 = vadd.f32 0.0, %v3414
  %v3416 = vpop.f32.mrb[0].mxu0
  %3417 = vmatprep.mubr.bf16.mxu0 %v2018
  %3418 = vmatmul.mubr.bf16.gmra.mrb[0].mxu0 %v2017
  %v3419 = vpop.f32.mrb[0].mxu0
  %v3420 = vadd.f32 0.0, %v3419
  %v3421 = vpop.f32.mrb[0].mxu0
  %v3422 = vpop.f32.mrb[0].mxu0
  %v3423 = vadd.f32 0.0, %v3422
  %v3424 = vpop.f32.mrb[0].mxu0
  %3425 = vmatprep.mubr.bf16.mxu0 %v2021
  %3426 = vmatmul.mubr.bf16.gmra.mrb[0].mxu0 %v2020
  %v3427 = vpop.f32.mrb[0].mxu0
  %v3428 = vadd.f32 0.0, %v3427
  %v3429 = vpop.f32.mrb[0].mxu0
  %v3430 = vpop.f32.mrb[0].mxu0
  %v3431 = vadd.f32 0.0, %v3430
  %v3432 = vpop.f32.mrb[0].mxu0
  %3433 = vmatprep.mubr.bf16.mxu0 %v2024
  %3434 = vmatmul.mubr.bf16.gmra.mrb[0].mxu0 %v2023
  %v3435 = vpop.f32.mrb[0].mxu0
  %v3436 = vadd.f32 0.0, %v3435
  %v3437 = vpop.f32.mrb[0].mxu0
  %v3438 = vpop.f32.mrb[0].mxu0
  %v3439 = vadd.f32 0.0, %v3438
  %v3440 = vpop.f32.mrb[0].mxu0
  %3441 = vmatprep.mubr.bf16.mxu0 %v2027
  %3442 = vmatmul.mubr.bf16.gmra.mrb[0].mxu0 %v2026
  %v3443 = vpop.f32.mrb[0].mxu0
  %v3444 = vadd.f32 0.0, %v3443
  %v3445 = vpop.f32.mrb[0].mxu0
  %v3446 = vpop.f32.mrb[0].mxu0
  %v3447 = vadd.f32 0.0, %v3446
  %v3448 = vpop.f32.mrb[0].mxu0
  %3449 = vmatprep.mubr.bf16.mxu0 %v2030
  %3450 = vmatmul.mubr.bf16.gmra.mrb[0].mxu0 %v2029
  %v3451 = vpop.f32.mrb[0].mxu0
  %v3452 = vadd.f32 0.0, %v3451
  %v3453 = vpop.f32.mrb[0].mxu0
  %v3454 = vpop.f32.mrb[0].mxu0
  %v3455 = vadd.f32 0.0, %v3454
  %v3456 = vpop.f32.mrb[0].mxu0
  %3457 = vmatprep.mubr.bf16.mxu0 %v2033
  %3458 = vmatmul.mubr.bf16.gmra.mrb[0].mxu0 %v2032
  %v3459 = vpop.f32.mrb[0].mxu0
  %v3460 = vadd.f32 0.0, %v3459
  %v3461 = vpop.f32.mrb[0].mxu0
  %v3462 = vpop.f32.mrb[0].mxu0
  %v3463 = vadd.f32 0.0, %v3462
  %v3464 = vpop.f32.mrb[0].mxu0
  %3465 = vmatprep.mubr.bf16.mxu0 %v2036
  %3466 = vmatmul.mubr.bf16.gmra.mrb[0].mxu0 %v2035
  %v3467 = vpop.f32.mrb[0].mxu0
  %v3468 = vadd.f32 0.0, %v3467
  %v3469 = vpop.f32.mrb[0].mxu0
  %v3470 = vpop.f32.mrb[0].mxu0
  %v3471 = vadd.f32 0.0, %v3470
  %v3472 = vpop.f32.mrb[0].mxu0
  %3473 = vmatprep.mubr.bf16.mxu0 %v2039
  %3474 = vmatmul.mubr.bf16.gmra.mrb[0].mxu0 %v2038
  %v3475 = vpop.f32.mrb[0].mxu0
  %v3476 = vadd.f32 0.0, %v3475
  %v3477 = vpop.f32.mrb[0].mxu0
  %v3478 = vpop.f32.mrb[0].mxu0
  %v3479 = vadd.f32 0.0, %v3478
  %v3480 = vpop.f32.mrb[0].mxu0
  %3481 = vmatprep.mubr.bf16.mxu0 %v2042
  %3482 = vmatmul.mubr.bf16.gmra.mrb[0].mxu0 %v2041
  %v3483 = vpop.f32.mrb[0].mxu0
  %v3484 = vadd.f32 0.0, %v3483
  %v3485 = vpop.f32.mrb[0].mxu0
  %v3486 = vpop.f32.mrb[0].mxu0
  %v3487 = vadd.f32 0.0, %v3486
  %v3488 = vpop.f32.mrb[0].mxu0
  %3489 = vmatprep.mubr.bf16.mxu0 %v2045
  %3490 = vmatmul.mubr.bf16.gmra.mrb[0].mxu0 %v2044
  %v3491 = vpop.f32.mrb[0].mxu0
  %v3492 = vadd.f32 0.0, %v3491
  %v3493 = vpop.f32.mrb[0].mxu0
  %v3494 = vpop.f32.mrb[0].mxu0
  %v3495 = vadd.f32 0.0, %v3494
  %v3496 = vpop.f32.mrb[0].mxu0
  %3497 = vmatprep.mubr.bf16.mxu0 %v2048
  %3498 = vmatmul.mubr.bf16.gmra.mrb[0].mxu0 %v2047
  %v3499 = vpop.f32.mrb[0].mxu0
  %v3500 = vadd.f32 0.0, %v3499
  %v3501 = vpop.f32.mrb[0].mxu0
  %v3502 = vpop.f32.mrb[0].mxu0
  %v3503 = vadd.f32 0.0, %v3502
  %v3504 = vpop.f32.mrb[0].mxu0
  %3505 = vmatprep.mubr.bf16.mxu0 %v2051
  %3506 = vmatmul.mubr.bf16.gmra.mrb[0].mxu0 %v2050
  %v3507 = vpop.f32.mrb[0].mxu0
  %v3508 = vadd.f32 0.0, %v3507
  %v3509 = vpop.f32.mrb[0].mxu0
  %v3510 = vpop.f32.mrb[0].mxu0
  %v3511 = vadd.f32 0.0, %v3510
  %v3512 = vpop.f32.mrb[0].mxu0
  %3513 = vmatprep.mubr.bf16.mxu0 %v2054
  %3514 = vmatmul.mubr.bf16.gmra.mrb[0].mxu0 %v2053
  %v3515 = vpop.f32.mrb[0].mxu0
  %v3516 = vadd.f32 0.0, %v3515
  %v3517 = vpop.f32.mrb[0].mxu0
  %v3518 = vpop.f32.mrb[0].mxu0
  %v3519 = vadd.f32 0.0, %v3518
  %v3520 = vpop.f32.mrb[0].mxu0
  %3521 = vmatprep.mubr.bf16.mxu0 %v2057
  %3522 = vmatmul.mubr.bf16.gmra.mrb[0].mxu0 %v2056
  %v3523 = vpop.f32.mrb[0].mxu0
  %v3524 = vadd.f32 0.0, %v3523
  %v3525 = vpop.f32.mrb[0].mxu0
  %v3526 = vpop.f32.mrb[0].mxu0
  %v3527 = vadd.f32 0.0, %v3526
  %v3528 = vpop.f32.mrb[0].mxu0
  %3529 = vmatprep.mubr.bf16.mxu0 %v2060
  %3530 = vmatmul.mubr.bf16.gmra.mrb[0].mxu0 %v2059
  %v3531 = vpop.f32.mrb[0].mxu0
  %v3532 = vadd.f32 0.0, %v3531
  %v3533 = vpop.f32.mrb[0].mxu0
  %v3534 = vpop.f32.mrb[0].mxu0
  %v3535 = vadd.f32 0.0, %v3534
  %v3536 = vpop.f32.mrb[0].mxu0
  %3537 = vmatprep.mubr.bf16.mxu0 %v2063
  %3538 = vmatmul.mubr.bf16.gmra.mrb[0].mxu0 %v2062
  %v3539 = vpop.f32.mrb[0].mxu0
  %v3540 = vadd.f32 0.0, %v3539
  %v3541 = vpop.f32.mrb[0].mxu0
  %v3542 = vpop.f32.mrb[0].mxu0
  %v3543 = vadd.f32 0.0, %v3542
  %v3544 = vpop.f32.mrb[0].mxu0
  %3545 = vmatprep.mubr.bf16.mxu0 %v2066
  %3546 = vmatmul.mubr.bf16.gmra.mrb[0].mxu0 %v2065
  %v3547 = vpop.f32.mrb[0].mxu0
  %v3548 = vadd.f32 0.0, %v3547
  %v3549 = vpop.f32.mrb[0].mxu0
  %v3550 = vpop.f32.mrb[0].mxu0
  %v3551 = vadd.f32 0.0, %v3550
  %v3552 = vpop.f32.mrb[0].mxu0
  %3553 = vmatprep.mubr.bf16.mxu0 %v2069
  %3554 = vmatmul.mubr.bf16.gmra.mrb[0].mxu0 %v2068
  %v3555 = vpop.f32.mrb[0].mxu0
  %v3556 = vadd.f32 0.0, %v3555
  %v3557 = vpop.f32.mrb[0].mxu0
  %v3558 = vpop.f32.mrb[0].mxu0
  %v3559 = vadd.f32 0.0, %v3558
  %v3560 = vpop.f32.mrb[0].mxu0
  %3561 = vmatprep.mubr.bf16.mxu0 %v2072
  %3562 = vmatmul.mubr.bf16.gmra.mrb[0].mxu0 %v2071
  %v3563 = vpop.f32.mrb[0].mxu0
  %v3564 = vadd.f32 0.0, %v3563
  %v3565 = vpop.f32.mrb[0].mxu0
  %v3566 = vpop.f32.mrb[0].mxu0
  %v3567 = vadd.f32 0.0, %v3566
  %v3568 = vpop.f32.mrb[0].mxu0
  %3569 = vmatprep.mubr.bf16.mxu0 %v2075
  %3570 = vmatmul.mubr.bf16.gmra.mrb[0].mxu0 %v2074
  %v3571 = vpop.f32.mrb[0].mxu0
  %v3572 = vadd.f32 0.0, %v3571
  %v3573 = vpop.f32.mrb[0].mxu0
  %v3574 = vpop.f32.mrb[0].mxu0
  %v3575 = vadd.f32 0.0, %v3574
  %v3576 = vpop.f32.mrb[0].mxu0
  %3577 = vmatprep.mubr.bf16.mxu0 %v2078
  %3578 = vmatmul.mubr.bf16.gmra.mrb[0].mxu0 %v2077
  %v3579 = vpop.f32.mrb[0].mxu0
  %v3580 = vadd.f32 0.0, %v3579
  %v3581 = vpop.f32.mrb[0].mxu0
  %v3582 = vpop.f32.mrb[0].mxu0
  %v3583 = vadd.f32 0.0, %v3582
  %v3584 = vpop.f32.mrb[0].mxu0
  %3585 = vmatprep.mubr.bf16.mxu0 %v2081
  %3586 = vmatmul.mubr.bf16.gmra.mrb[0].mxu0 %v2080
  %v3587 = vpop.f32.mrb[0].mxu0
  %v3588 = vadd.f32 0.0, %v3587
  %v3589 = vpop.f32.mrb[0].mxu0
  %v3590 = vpop.f32.mrb[0].mxu0
  %v3591 = vadd.f32 0.0, %v3590
  %v3592 = vpop.f32.mrb[0].mxu0
  %3593 = vmatprep.mubr.bf16.mxu0 %v2084
  %3594 = vmatmul.mubr.bf16.gmra.mrb[0].mxu0 %v2083
  %v3595 = vpop.f32.mrb[0].mxu0
  %v3596 = vadd.f32 0.0, %v3595
  %v3597 = vpop.f32.mrb[0].mxu0
  %v3598 = vpop.f32.mrb[0].mxu0
  %v3599 = vadd.f32 0.0, %v3598
  %v3600 = vpop.f32.mrb[0].mxu0
  %3601 = vdwg.mxu0
  %3602 = vmatprep.subr.bf16.mxu0 0
  %3603 = vmatpush1.bf16.msra.mxu0 %v145
  %3604 = vmatprep.subr.bf16.mxu0 0
  %3605 = vmatpush1.bf16.msra.mxu0 %v146
  %3606 = vmatprep.subr.bf16.mxu0 0
  %3607 = vmatpush1.bf16.msra.mxu0 %v147
  %3608 = vmatprep.subr.bf16.mxu0 0
  %3609 = vmatpush1.bf16.msra.mxu0 0
  %3610 = vmatprep.subr.bf16.mxu0 0
  %3611 = vmatpush1.bf16.msra.mxu0 0
  %3612 = vmatprep.subr.bf16.mxu0 0
  %3613 = vmatpush1.bf16.msra.mxu0 0
  %3614 = vmatprep.subr.bf16.mxu0 0
  %3615 = vmatpush1.bf16.msra.mxu0 0
  %3616 = vmatprep.subr.bf16.mxu0 0
  %3617 = vmatpush1.bf16.msra.mxu0 0
  %3618 = vmatprep.subr.bf16.mxu0 0
  %3619 = vmatpush1.bf16.msra.mxu0 0
  %3620 = vmatprep.subr.bf16.mxu0 0
  %3621 = vmatpush1.bf16.msra.mxu0 0
  %3622 = vmatprep.subr.bf16.mxu0 0
  %3623 = vmatpush1.bf16.msra.mxu0 0
  %3624 = vmatprep.subr.bf16.mxu0 0
  %3625 = vmatpush1.bf16.msra.mxu0 0
  %3626 = vmatprep.subr.bf16.mxu0 0
  %3627 = vmatpush1.bf16.msra.mxu0 0
  %3628 = vmatprep.subr.bf16.mxu0 0
  %3629 = vmatpush1.bf16.msra.mxu0 0
  %3630 = vmatprep.subr.bf16.mxu0 0
  %3631 = vmatpush1.bf16.msra.mxu0 0
  %3632 = vmatprep.subr.bf16.mxu0 0
  %3633 = vmatpush1.bf16.msra.mxu0 0
  %3634 = vmatprep.mubr.bf16.mxu0 0
  %3635 = vmatmul.mubr.bf16.gmra.mrb[0].mxu0 %v2316
  %v3636 = vpop.f32.mrb[0].mxu0
  %v3637 = vadd.f32 %v2692, %v3636
  %v3638 = vpop.f32.mrb[0].mxu0
  %v3639 = vpop.f32.mrb[0].mxu0
  %v3640 = vadd.f32 %v2695, %v3639
  %v3641 = vpop.f32.mrb[0].mxu0
  %3642 = vmatprep.mubr.bf16.mxu0 0
  %3643 = vmatmul.mubr.bf16.gmra.mrb[0].mxu0 %v2319
  %v3644 = vpop.f32.mrb[0].mxu0
  %v3645 = vadd.f32 %v2700, %v3644
  %v3646 = vpop.f32.mrb[0].mxu0
  %v3647 = vpop.f32.mrb[0].mxu0
  %v3648 = vadd.f32 %v2703, %v3647
  %v3649 = vpop.f32.mrb[0].mxu0
  %3650 = vmatprep.mubr.bf16.mxu0 0
  %3651 = vmatmul.mubr.bf16.gmra.mrb[0].mxu0 %v2322
  %v3652 = vpop.f32.mrb[0].mxu0
  %v3653 = vadd.f32 %v2708, %v3652
  %v3654 = vpop.f32.mrb[0].mxu0
  %v3655 = vpop.f32.mrb[0].mxu0
  %v3656 = vadd.f32 %v2711, %v3655
  %v3657 = vpop.f32.mrb[0].mxu0
  %3658 = vmatprep.mubr.bf16.mxu0 0
  %3659 = vmatmul.mubr.bf16.gmra.mrb[0].mxu0 %v2325
  %v3660 = vpop.f32.mrb[0].mxu0
  %v3661 = vadd.f32 %v2716, %v3660
  %v3662 = vpop.f32.mrb[0].mxu0
  %v3663 = vpop.f32.mrb[0].mxu0
  %v3664 = vadd.f32 %v2719, %v3663
  %v3665 = vpop.f32.mrb[0].mxu0
  %3666 = vmatprep.mubr.bf16.mxu0 0
  %3667 = vmatmul.mubr.bf16.gmra.mrb[0].mxu0 %v2328
  %v3668 = vpop.f32.mrb[0].mxu0
  %v3669 = vadd.f32 %v2724, %v3668
  %v3670 = vpop.f32.mrb[0].mxu0
  %v3671 = vpop.f32.mrb[0].mxu0
  %v3672 = vadd.f32 %v2727, %v3671
  %v3673 = vpop.f32.mrb[0].mxu0
  %3674 = vmatprep.mubr.bf16.mxu0 0
  %3675 = vmatmul.mubr.bf16.gmra.mrb[0].mxu0 %v2331
  %v3676 = vpop.f32.mrb[0].mxu0
  %v3677 = vadd.f32 %v2732, %v3676
  %v3678 = vpop.f32.mrb[0].mxu0
  %v3679 = vpop.f32.mrb[0].mxu0
  %v3680 = vadd.f32 %v2735, %v3679
  %v3681 = vpop.f32.mrb[0].mxu0
  %3682 = vmatprep.mubr.bf16.mxu0 0
  %3683 = vmatmul.mubr.bf16.gmra.mrb[0].mxu0 %v2334
  %v3684 = vpop.f32.mrb[0].mxu0
  %v3685 = vadd.f32 %v2740, %v3684
  %v3686 = vpop.f32.mrb[0].mxu0
  %v3687 = vpop.f32.mrb[0].mxu0
  %v3688 = vadd.f32 %v2743, %v3687
  %v3689 = vpop.f32.mrb[0].mxu0
  %3690 = vmatprep.mubr.bf16.mxu0 0
  %3691 = vmatmul.mubr.bf16.gmra.mrb[0].mxu0 %v2337
  %v3692 = vpop.f32.mrb[0].mxu0
  %v3693 = vadd.f32 %v2748, %v3692
  %v3694 = vpop.f32.mrb[0].mxu0
  %v3695 = vpop.f32.mrb[0].mxu0
  %v3696 = vadd.f32 %v2751, %v3695
  %v3697 = vpop.f32.mrb[0].mxu0
  %3698 = vmatprep.mubr.bf16.mxu0 0
  %3699 = vmatmul.mubr.bf16.gmra.mrb[0].mxu0 %v2340
  %v3700 = vpop.f32.mrb[0].mxu0
  %v3701 = vadd.f32 %v2756, %v3700
  %v3702 = vpop.f32.mrb[0].mxu0
  %v3703 = vpop.f32.mrb[0].mxu0
  %v3704 = vadd.f32 %v2759, %v3703
  %v3705 = vpop.f32.mrb[0].mxu0
  %3706 = vmatprep.mubr.bf16.mxu0 0
  %3707 = vmatmul.mubr.bf16.gmra.mrb[0].mxu0 %v2343
  %v3708 = vpop.f32.mrb[0].mxu0
  %v3709 = vadd.f32 %v2764, %v3708
  %v3710 = vpop.f32.mrb[0].mxu0
  %v3711 = vpop.f32.mrb[0].mxu0
  %v3712 = vadd.f32 %v2767, %v3711
  %v3713 = vpop.f32.mrb[0].mxu0
  %3714 = vmatprep.mubr.bf16.mxu0 0
  %3715 = vmatmul.mubr.bf16.gmra.mrb[0].mxu0 %v2346
  %v3716 = vpop.f32.mrb[0].mxu0
  %v3717 = vadd.f32 %v2772, %v3716
  %v3718 = vpop.f32.mrb[0].mxu0
  %v3719 = vpop.f32.mrb[0].mxu0
  %v3720 = vadd.f32 %v2775, %v3719
  %v3721 = vpop.f32.mrb[0].mxu0
  %3722 = vmatprep.mubr.bf16.mxu0 0
  %3723 = vmatmul.mubr.bf16.gmra.mrb[0].mxu0 %v2349
  %v3724 = vpop.f32.mrb[0].mxu0
  %v3725 = vadd.f32 %v2780, %v3724
  %v3726 = vpop.f32.mrb[0].mxu0
  %v3727 = vpop.f32.mrb[0].mxu0
  %v3728 = vadd.f32 %v2783, %v3727
  %v3729 = vpop.f32.mrb[0].mxu0
  %3730 = vmatprep.mubr.bf16.mxu0 0
  %3731 = vmatmul.mubr.bf16.gmra.mrb[0].mxu0 %v2352
  %v3732 = vpop.f32.mrb[0].mxu0
  %v3733 = vadd.f32 %v2788, %v3732
  %v3734 = vpop.f32.mrb[0].mxu0
  %v3735 = vpop.f32.mrb[0].mxu0
  %v3736 = vadd.f32 %v2791, %v3735
  %v3737 = vpop.f32.mrb[0].mxu0
  %3738 = vmatprep.mubr.bf16.mxu0 0
  %3739 = vmatmul.mubr.bf16.gmra.mrb[0].mxu0 %v2355
  %v3740 = vpop.f32.mrb[0].mxu0
  %v3741 = vadd.f32 %v2796, %v3740
  %v3742 = vpop.f32.mrb[0].mxu0
  %v3743 = vpop.f32.mrb[0].mxu0
  %v3744 = vadd.f32 %v2799, %v3743
  %v3745 = vpop.f32.mrb[0].mxu0
  %3746 = vmatprep.mubr.bf16.mxu0 0
  %3747 = vmatmul.mubr.bf16.gmra.mrb[0].mxu0 %v2358
  %v3748 = vpop.f32.mrb[0].mxu0
  %v3749 = vadd.f32 %v2804, %v3748
  %v3750 = vpop.f32.mrb[0].mxu0
  %v3751 = vpop.f32.mrb[0].mxu0
  %v3752 = vadd.f32 %v2807, %v3751
  %v3753 = vpop.f32.mrb[0].mxu0
  %3754 = vmatprep.mubr.bf16.mxu0 0
  %3755 = vmatmul.mubr.bf16.gmra.mrb[0].mxu0 %v2361
  %v3756 = vpop.f32.mrb[0].mxu0
  %v3757 = vadd.f32 %v2812, %v3756
  %v3758 = vpop.f32.mrb[0].mxu0
  %v3759 = vpop.f32.mrb[0].mxu0
  %v3760 = vadd.f32 %v2815, %v3759
  %v3761 = vpop.f32.mrb[0].mxu0
  %3762 = vmatprep.mubr.bf16.mxu0 0
  %3763 = vmatmul.mubr.bf16.gmra.mrb[0].mxu0 %v2364
  %v3764 = vpop.f32.mrb[0].mxu0
  %v3765 = vadd.f32 %v2820, %v3764
  %v3766 = vpop.f32.mrb[0].mxu0
  %v3767 = vpop.f32.mrb[0].mxu0
  %v3768 = vadd.f32 %v2823, %v3767
  %v3769 = vpop.f32.mrb[0].mxu0
  %3770 = vmatprep.mubr.bf16.mxu0 0
  %3771 = vmatmul.mubr.bf16.gmra.mrb[0].mxu0 %v2367
  %v3772 = vpop.f32.mrb[0].mxu0
  %v3773 = vadd.f32 %v2828, %v3772
  %v3774 = vpop.f32.mrb[0].mxu0
  %v3775 = vpop.f32.mrb[0].mxu0
  %v3776 = vadd.f32 %v2831, %v3775
  %v3777 = vpop.f32.mrb[0].mxu0
  %3778 = vmatprep.mubr.bf16.mxu0 0
  %3779 = vmatmul.mubr.bf16.gmra.mrb[0].mxu0 %v2370
  %v3780 = vpop.f32.mrb[0].mxu0
  %v3781 = vadd.f32 %v2836, %v3780
  %v3782 = vpop.f32.mrb[0].mxu0
  %v3783 = vpop.f32.mrb[0].mxu0
  %v3784 = vadd.f32 %v2839, %v3783
  %v3785 = vpop.f32.mrb[0].mxu0
  %3786 = vmatprep.mubr.bf16.mxu0 0
  %3787 = vmatmul.mubr.bf16.gmra.mrb[0].mxu0 %v2373
  %v3788 = vpop.f32.mrb[0].mxu0
  %v3789 = vadd.f32 %v2844, %v3788
  %v3790 = vpop.f32.mrb[0].mxu0
  %v3791 = vpop.f32.mrb[0].mxu0
  %v3792 = vadd.f32 %v2847, %v3791
  %v3793 = vpop.f32.mrb[0].mxu0
  %3794 = vmatprep.mubr.bf16.mxu0 0
  %3795 = vmatmul.mubr.bf16.gmra.mrb[0].mxu0 %v2376
  %v3796 = vpop.f32.mrb[0].mxu0
  %v3797 = vadd.f32 %v2852, %v3796
  %v3798 = vpop.f32.mrb[0].mxu0
  %v3799 = vpop.f32.mrb[0].mxu0
  %v3800 = vadd.f32 %v2855, %v3799
  %v3801 = vpop.f32.mrb[0].mxu0
  %3802 = vmatprep.mubr.bf16.mxu0 0
  %3803 = vmatmul.mubr.bf16.gmra.mrb[0].mxu0 %v2379
  %v3804 = vpop.f32.mrb[0].mxu0
  %v3805 = vadd.f32 %v2860, %v3804
  %v3806 = vpop.f32.mrb[0].mxu0
  %v3807 = vpop.f32.mrb[0].mxu0
  %v3808 = vadd.f32 %v2863, %v3807
  %v3809 = vpop.f32.mrb[0].mxu0
  %3810 = vmatprep.mubr.bf16.mxu0 0
  %3811 = vmatmul.mubr.bf16.gmra.mrb[0].mxu0 %v2382
  %v3812 = vpop.f32.mrb[0].mxu0
  %v3813 = vadd.f32 %v2868, %v3812
  %v3814 = vpop.f32.mrb[0].mxu0
  %v3815 = vpop.f32.mrb[0].mxu0
  %v3816 = vadd.f32 %v2871, %v3815
  %v3817 = vpop.f32.mrb[0].mxu0
  %3818 = vmatprep.mubr.bf16.mxu0 0
  %3819 = vmatmul.mubr.bf16.gmra.mrb[0].mxu0 %v2385
  %v3820 = vpop.f32.mrb[0].mxu0
  %v3821 = vadd.f32 %v2876, %v3820
  %v3822 = vpop.f32.mrb[0].mxu0
  %v3823 = vpop.f32.mrb[0].mxu0
  %v3824 = vadd.f32 %v2879, %v3823
  %v3825 = vpop.f32.mrb[0].mxu0
  %3826 = vmatprep.mubr.bf16.mxu0 0
  %3827 = vmatmul.mubr.bf16.gmra.mrb[0].mxu0 %v2388
  %v3828 = vpop.f32.mrb[0].mxu0
  %v3829 = vadd.f32 %v2884, %v3828
  %v3830 = vpop.f32.mrb[0].mxu0
  %v3831 = vpop.f32.mrb[0].mxu0
  %v3832 = vadd.f32 %v2887, %v3831
  %v3833 = vpop.f32.mrb[0].mxu0
  %3834 = vmatprep.mubr.bf16.mxu0 0
  %3835 = vmatmul.mubr.bf16.gmra.mrb[0].mxu0 %v2391
  %v3836 = vpop.f32.mrb[0].mxu0
  %v3837 = vadd.f32 %v2892, %v3836
  %v3838 = vpop.f32.mrb[0].mxu0
  %v3839 = vpop.f32.mrb[0].mxu0
  %v3840 = vadd.f32 %v2895, %v3839
  %v3841 = vpop.f32.mrb[0].mxu0
  %3842 = vmatprep.mubr.bf16.mxu0 0
  %3843 = vmatmul.mubr.bf16.gmra.mrb[0].mxu0 %v2394
  %v3844 = vpop.f32.mrb[0].mxu0
  %v3845 = vadd.f32 %v2900, %v3844
  %v3846 = vpop.f32.mrb[0].mxu0
  %v3847 = vpop.f32.mrb[0].mxu0
  %v3848 = vadd.f32 %v2903, %v3847
  %v3849 = vpop.f32.mrb[0].mxu0
  %3850 = vmatprep.mubr.bf16.mxu0 0
  %3851 = vmatmul.mubr.bf16.gmra.mrb[0].mxu0 %v2397
  %v3852 = vpop.f32.mrb[0].mxu0
  %v3853 = vadd.f32 %v2908, %v3852
  %v3854 = vpop.f32.mrb[0].mxu0
  %v3855 = vpop.f32.mrb[0].mxu0
  %v3856 = vadd.f32 %v2911, %v3855
  %v3857 = vpop.f32.mrb[0].mxu0
  %3858 = vmatprep.mubr.bf16.mxu0 0
  %3859 = vmatmul.mubr.bf16.gmra.mrb[0].mxu0 %v2400
  %v3860 = vpop.f32.mrb[0].mxu0
  %v3861 = vadd.f32 %v2916, %v3860
  %v3862 = vpop.f32.mrb[0].mxu0
  %v3863 = vpop.f32.mrb[0].mxu0
  %v3864 = vadd.f32 %v2919, %v3863
  %v3865 = vpop.f32.mrb[0].mxu0
  %3866 = vmatprep.mubr.bf16.mxu0 0
  %3867 = vmatmul.mubr.bf16.gmra.mrb[0].mxu0 %v2403
  %v3868 = vpop.f32.mrb[0].mxu0
  %v3869 = vadd.f32 %v2924, %v3868
  %v3870 = vpop.f32.mrb[0].mxu0
  %v3871 = vpop.f32.mrb[0].mxu0
  %v3872 = vadd.f32 %v2927, %v3871
  %v3873 = vpop.f32.mrb[0].mxu0
  %3874 = vmatprep.mubr.bf16.mxu0 0
  %3875 = vmatmul.mubr.bf16.gmra.mrb[0].mxu0 %v2406
  %v3876 = vpop.f32.mrb[0].mxu0
  %v3877 = vadd.f32 %v2932, %v3876
  %v3878 = vpop.f32.mrb[0].mxu0
  %v3879 = vpop.f32.mrb[0].mxu0
  %v3880 = vadd.f32 %v2935, %v3879
  %v3881 = vpop.f32.mrb[0].mxu0
  %3882 = vmatprep.mubr.bf16.mxu0 0
  %3883 = vmatmul.mubr.bf16.gmra.mrb[0].mxu0 %v2409
  %v3884 = vpop.f32.mrb[0].mxu0
  %v3885 = vadd.f32 %v2940, %v3884
  %v3886 = vpop.f32.mrb[0].mxu0
  %v3887 = vpop.f32.mrb[0].mxu0
  %v3888 = vadd.f32 %v2943, %v3887
  %v3889 = vpop.f32.mrb[0].mxu0
  %3890 = vmatprep.mubr.bf16.mxu0 0
  %3891 = vmatmul.mubr.bf16.gmra.mrb[0].mxu0 %v2412
  %v3892 = vpop.f32.mrb[0].mxu0
  %v3893 = vadd.f32 %v2948, %v3892
  %v3894 = vpop.f32.mrb[0].mxu0
  %v3895 = vpop.f32.mrb[0].mxu0
  %v3896 = vadd.f32 %v2951, %v3895
  %v3897 = vpop.f32.mrb[0].mxu0
  %3898 = vmatprep.mubr.bf16.mxu0 0
  %3899 = vmatmul.mubr.bf16.gmra.mrb[0].mxu0 %v2415
  %v3900 = vpop.f32.mrb[0].mxu0
  %v3901 = vadd.f32 %v2956, %v3900
  %v3902 = vpop.f32.mrb[0].mxu0
  %v3903 = vpop.f32.mrb[0].mxu0
  %v3904 = vadd.f32 %v2959, %v3903
  %v3905 = vpop.f32.mrb[0].mxu0
  %3906 = vmatprep.mubr.bf16.mxu0 0
  %3907 = vmatmul.mubr.bf16.gmra.mrb[0].mxu0 %v2418
  %v3908 = vpop.f32.mrb[0].mxu0
  %v3909 = vadd.f32 %v2964, %v3908
  %v3910 = vpop.f32.mrb[0].mxu0
  %v3911 = vpop.f32.mrb[0].mxu0
  %v3912 = vadd.f32 %v2967, %v3911
  %v3913 = vpop.f32.mrb[0].mxu0
  %3914 = vmatprep.mubr.bf16.mxu0 0
  %3915 = vmatmul.mubr.bf16.gmra.mrb[0].mxu0 %v2421
  %v3916 = vpop.f32.mrb[0].mxu0
  %v3917 = vadd.f32 %v2972, %v3916
  %v3918 = vpop.f32.mrb[0].mxu0
  %v3919 = vpop.f32.mrb[0].mxu0
  %v3920 = vadd.f32 %v2975, %v3919
  %v3921 = vpop.f32.mrb[0].mxu0
  %3922 = vmatprep.mubr.bf16.mxu0 0
  %3923 = vmatmul.mubr.bf16.gmra.mrb[0].mxu0 %v2424
  %v3924 = vpop.f32.mrb[0].mxu0
  %v3925 = vadd.f32 %v2980, %v3924
  %v3926 = vpop.f32.mrb[0].mxu0
  %v3927 = vpop.f32.mrb[0].mxu0
  %v3928 = vadd.f32 %v2983, %v3927
  %v3929 = vpop.f32.mrb[0].mxu0
  %3930 = vmatprep.mubr.bf16.mxu0 0
  %3931 = vmatmul.mubr.bf16.gmra.mrb[0].mxu0 %v2427
  %v3932 = vpop.f32.mrb[0].mxu0
  %v3933 = vadd.f32 %v2988, %v3932
  %v3934 = vpop.f32.mrb[0].mxu0
  %v3935 = vpop.f32.mrb[0].mxu0
  %v3936 = vadd.f32 %v2991, %v3935
  %v3937 = vpop.f32.mrb[0].mxu0
  %3938 = vmatprep.mubr.bf16.mxu0 0
  %3939 = vmatmul.mubr.bf16.gmra.mrb[0].mxu0 %v2430
  %v3940 = vpop.f32.mrb[0].mxu0
  %v3941 = vadd.f32 %v2996, %v3940
  %v3942 = vpop.f32.mrb[0].mxu0
  %v3943 = vpop.f32.mrb[0].mxu0
  %v3944 = vadd.f32 %v2999, %v3943
  %v3945 = vpop.f32.mrb[0].mxu0
  %3946 = vmatprep.mubr.bf16.mxu0 0
  %3947 = vmatmul.mubr.bf16.gmra.mrb[0].mxu0 %v2433
  %v3948 = vpop.f32.mrb[0].mxu0
  %v3949 = vadd.f32 %v3004, %v3948
  %v3950 = vpop.f32.mrb[0].mxu0
  %v3951 = vpop.f32.mrb[0].mxu0
  %v3952 = vadd.f32 %v3007, %v3951
  %v3953 = vpop.f32.mrb[0].mxu0
  %3954 = vmatprep.mubr.bf16.mxu0 0
  %3955 = vmatmul.mubr.bf16.gmra.mrb[0].mxu0 %v2436
  %v3956 = vpop.f32.mrb[0].mxu0
  %v3957 = vadd.f32 %v3012, %v3956
  %v3958 = vpop.f32.mrb[0].mxu0
  %v3959 = vpop.f32.mrb[0].mxu0
  %v3960 = vadd.f32 %v3015, %v3959
  %v3961 = vpop.f32.mrb[0].mxu0
  %3962 = vmatprep.mubr.bf16.mxu0 0
  %3963 = vmatmul.mubr.bf16.gmra.mrb[0].mxu0 %v2439
  %v3964 = vpop.f32.mrb[0].mxu0
  %v3965 = vadd.f32 %v3020, %v3964
  %v3966 = vpop.f32.mrb[0].mxu0
  %v3967 = vpop.f32.mrb[0].mxu0
  %v3968 = vadd.f32 %v3023, %v3967
  %v3969 = vpop.f32.mrb[0].mxu0
  %3970 = vmatprep.mubr.bf16.mxu0 0
  %3971 = vmatmul.mubr.bf16.gmra.mrb[0].mxu0 %v2442
  %v3972 = vpop.f32.mrb[0].mxu0
  %v3973 = vadd.f32 %v3028, %v3972
  %v3974 = vpop.f32.mrb[0].mxu0
  %v3975 = vpop.f32.mrb[0].mxu0
  %v3976 = vadd.f32 %v3031, %v3975
  %v3977 = vpop.f32.mrb[0].mxu0
  %3978 = vmatprep.mubr.bf16.mxu0 0
  %3979 = vmatmul.mubr.bf16.gmra.mrb[0].mxu0 %v2445
  %v3980 = vpop.f32.mrb[0].mxu0
  %v3981 = vadd.f32 %v3036, %v3980
  %v3982 = vpop.f32.mrb[0].mxu0
  %v3983 = vpop.f32.mrb[0].mxu0
  %v3984 = vadd.f32 %v3039, %v3983
  %v3985 = vpop.f32.mrb[0].mxu0
  %3986 = vmatprep.mubr.bf16.mxu0 0
  %3987 = vmatmul.mubr.bf16.gmra.mrb[0].mxu0 %v2448
  %v3988 = vpop.f32.mrb[0].mxu0
  %v3989 = vadd.f32 %v3044, %v3988
  %v3990 = vpop.f32.mrb[0].mxu0
  %v3991 = vpop.f32.mrb[0].mxu0
  %v3992 = vadd.f32 %v3047, %v3991
  %v3993 = vpop.f32.mrb[0].mxu0
  %3994 = vmatprep.mubr.bf16.mxu0 0
  %3995 = vmatmul.mubr.bf16.gmra.mrb[0].mxu0 %v2451
  %v3996 = vpop.f32.mrb[0].mxu0
  %v3997 = vadd.f32 %v3052, %v3996
  %v3998 = vpop.f32.mrb[0].mxu0
  %v3999 = vpop.f32.mrb[0].mxu0
  %v4000 = vadd.f32 %v3055, %v3999
  %v4001 = vpop.f32.mrb[0].mxu0
  %4002 = vmatprep.mubr.bf16.mxu0 0
  %4003 = vmatmul.mubr.bf16.gmra.mrb[0].mxu0 %v2454
  %v4004 = vpop.f32.mrb[0].mxu0
  %v4005 = vadd.f32 %v3060, %v4004
  %v4006 = vpop.f32.mrb[0].mxu0
  %v4007 = vpop.f32.mrb[0].mxu0
  %v4008 = vadd.f32 %v3063, %v4007
  %v4009 = vpop.f32.mrb[0].mxu0
  %4010 = vmatprep.mubr.bf16.mxu0 0
  %4011 = vmatmul.mubr.bf16.gmra.mrb[0].mxu0 %v2457
  %v4012 = vpop.f32.mrb[0].mxu0
  %v4013 = vadd.f32 %v3068, %v4012
  %v4014 = vpop.f32.mrb[0].mxu0
  %v4015 = vpop.f32.mrb[0].mxu0
  %v4016 = vadd.f32 %v3071, %v4015
  %v4017 = vpop.f32.mrb[0].mxu0
  %4018 = vmatprep.mubr.bf16.mxu0 0
  %4019 = vmatmul.mubr.bf16.gmra.mrb[0].mxu0 %v2460
  %v4020 = vpop.f32.mrb[0].mxu0
  %v4021 = vadd.f32 %v3076, %v4020
  %v4022 = vpop.f32.mrb[0].mxu0
  %v4023 = vpop.f32.mrb[0].mxu0
  %v4024 = vadd.f32 %v3079, %v4023
  %v4025 = vpop.f32.mrb[0].mxu0
  %4026 = vmatprep.mubr.bf16.mxu0 0
  %4027 = vmatmul.mubr.bf16.gmra.mrb[0].mxu0 %v2463
  %v4028 = vpop.f32.mrb[0].mxu0
  %v4029 = vadd.f32 %v3084, %v4028
  %v4030 = vpop.f32.mrb[0].mxu0
  %v4031 = vpop.f32.mrb[0].mxu0
  %v4032 = vadd.f32 %v3087, %v4031
  %v4033 = vpop.f32.mrb[0].mxu0
  %4034 = vmatprep.mubr.bf16.mxu0 0
  %4035 = vmatmul.mubr.bf16.gmra.mrb[0].mxu0 %v2466
  %v4036 = vpop.f32.mrb[0].mxu0
  %v4037 = vadd.f32 %v3092, %v4036
  %v4038 = vpop.f32.mrb[0].mxu0
  %v4039 = vpop.f32.mrb[0].mxu0
  %v4040 = vadd.f32 %v3095, %v4039
  %v4041 = vpop.f32.mrb[0].mxu0
  %4042 = vmatprep.mubr.bf16.mxu0 0
  %4043 = vmatmul.mubr.bf16.gmra.mrb[0].mxu0 %v2469
  %v4044 = vpop.f32.mrb[0].mxu0
  %v4045 = vadd.f32 %v3100, %v4044
  %v4046 = vpop.f32.mrb[0].mxu0
  %v4047 = vpop.f32.mrb[0].mxu0
  %v4048 = vadd.f32 %v3103, %v4047
  %v4049 = vpop.f32.mrb[0].mxu0
  %4050 = vmatprep.mubr.bf16.mxu0 0
  %4051 = vmatmul.mubr.bf16.gmra.mrb[0].mxu0 %v2472
  %v4052 = vpop.f32.mrb[0].mxu0
  %v4053 = vadd.f32 %v3108, %v4052
  %v4054 = vpop.f32.mrb[0].mxu0
  %v4055 = vpop.f32.mrb[0].mxu0
  %v4056 = vadd.f32 %v3111, %v4055
  %v4057 = vpop.f32.mrb[0].mxu0
  %4058 = vmatprep.mubr.bf16.mxu0 0
  %4059 = vmatmul.mubr.bf16.gmra.mrb[0].mxu0 %v2475
  %v4060 = vpop.f32.mrb[0].mxu0
  %v4061 = vadd.f32 %v3116, %v4060
  %v4062 = vpop.f32.mrb[0].mxu0
  %v4063 = vpop.f32.mrb[0].mxu0
  %v4064 = vadd.f32 %v3119, %v4063
  %v4065 = vpop.f32.mrb[0].mxu0
  %4066 = vmatprep.mubr.bf16.mxu0 0
  %4067 = vmatmul.mubr.bf16.gmra.mrb[0].mxu0 %v2478
  %v4068 = vpop.f32.mrb[0].mxu0
  %v4069 = vadd.f32 %v3124, %v4068
  %v4070 = vpop.f32.mrb[0].mxu0
  %v4071 = vpop.f32.mrb[0].mxu0
  %v4072 = vadd.f32 %v3127, %v4071
  %v4073 = vpop.f32.mrb[0].mxu0
  %4074 = vmatprep.mubr.bf16.mxu0 0
  %4075 = vmatmul.mubr.bf16.gmra.mrb[0].mxu0 %v2481
  %v4076 = vpop.f32.mrb[0].mxu0
  %v4077 = vadd.f32 %v3132, %v4076
  %v4078 = vpop.f32.mrb[0].mxu0
  %v4079 = vpop.f32.mrb[0].mxu0
  %v4080 = vadd.f32 %v3135, %v4079
  %v4081 = vpop.f32.mrb[0].mxu0
  %4082 = vmatprep.mubr.bf16.mxu0 0
  %4083 = vmatmul.mubr.bf16.gmra.mrb[0].mxu0 %v2484
  %v4084 = vpop.f32.mrb[0].mxu0
  %v4085 = vadd.f32 %v3140, %v4084
  %v4086 = vpop.f32.mrb[0].mxu0
  %v4087 = vpop.f32.mrb[0].mxu0
  %v4088 = vadd.f32 %v3143, %v4087
  %v4089 = vpop.f32.mrb[0].mxu0
  %4090 = vmatprep.mubr.bf16.mxu0 0
  %4091 = vmatmul.mubr.bf16.gmra.mrb[0].mxu0 %v2487
  %v4092 = vpop.f32.mrb[0].mxu0
  %v4093 = vadd.f32 %v3148, %v4092
  %v4094 = vpop.f32.mrb[0].mxu0
  %v4095 = vpop.f32.mrb[0].mxu0
  %v4096 = vadd.f32 %v3151, %v4095
  %v4097 = vpop.f32.mrb[0].mxu0
  %4098 = vmatprep.mubr.bf16.mxu0 0
  %4099 = vmatmul.mubr.bf16.gmra.mrb[0].mxu0 %v2490
  %v4100 = vpop.f32.mrb[0].mxu0
  %v4101 = vadd.f32 %v3156, %v4100
  %v4102 = vpop.f32.mrb[0].mxu0
  %v4103 = vpop.f32.mrb[0].mxu0
  %v4104 = vadd.f32 %v3159, %v4103
  %v4105 = vpop.f32.mrb[0].mxu0
  %4106 = vmatprep.mubr.bf16.mxu0 0
  %4107 = vmatmul.mubr.bf16.gmra.mrb[0].mxu0 %v2493
  %v4108 = vpop.f32.mrb[0].mxu0
  %v4109 = vadd.f32 %v3164, %v4108
  %v4110 = vpop.f32.mrb[0].mxu0
  %v4111 = vpop.f32.mrb[0].mxu0
  %v4112 = vadd.f32 %v3167, %v4111
  %v4113 = vpop.f32.mrb[0].mxu0
  %4114 = vmatprep.mubr.bf16.mxu0 0
  %4115 = vmatmul.mubr.bf16.gmra.mrb[0].mxu0 %v2496
  %v4116 = vpop.f32.mrb[0].mxu0
  %v4117 = vadd.f32 %v3172, %v4116
  %v4118 = vpop.f32.mrb[0].mxu0
  %v4119 = vpop.f32.mrb[0].mxu0
  %v4120 = vadd.f32 %v3175, %v4119
  %v4121 = vpop.f32.mrb[0].mxu0
  %4122 = vmatprep.mubr.bf16.mxu0 0
  %4123 = vmatmul.mubr.bf16.gmra.mrb[0].mxu0 %v2499
  %v4124 = vpop.f32.mrb[0].mxu0
  %v4125 = vadd.f32 %v3180, %v4124
  %v4126 = vpop.f32.mrb[0].mxu0
  %v4127 = vpop.f32.mrb[0].mxu0
  %v4128 = vadd.f32 %v3183, %v4127
  %v4129 = vpop.f32.mrb[0].mxu0
  %4130 = vmatprep.mubr.bf16.mxu0 0
  %4131 = vmatmul.mubr.bf16.gmra.mrb[0].mxu0 %v2502
  %v4132 = vpop.f32.mrb[0].mxu0
  %v4133 = vadd.f32 %v3188, %v4132
  %v4134 = vpop.f32.mrb[0].mxu0
  %v4135 = vpop.f32.mrb[0].mxu0
  %v4136 = vadd.f32 %v3191, %v4135
  %v4137 = vpop.f32.mrb[0].mxu0
  %4138 = vmatprep.mubr.bf16.mxu0 0
  %4139 = vmatmul.mubr.bf16.gmra.mrb[0].mxu0 %v2505
  %v4140 = vpop.f32.mrb[0].mxu0
  %v4141 = vadd.f32 %v3196, %v4140
  %v4142 = vpop.f32.mrb[0].mxu0
  %v4143 = vpop.f32.mrb[0].mxu0
  %v4144 = vadd.f32 %v3199, %v4143
  %v4145 = vpop.f32.mrb[0].mxu0
  %4146 = vmatprep.mubr.bf16.mxu0 0
  %4147 = vmatmul.mubr.bf16.gmra.mrb[0].mxu0 %v2508
  %v4148 = vpop.f32.mrb[0].mxu0
  %v4149 = vadd.f32 %v3204, %v4148
  %v4150 = vpop.f32.mrb[0].mxu0
  %v4151 = vpop.f32.mrb[0].mxu0
  %v4152 = vadd.f32 %v3207, %v4151
  %v4153 = vpop.f32.mrb[0].mxu0
  %4154 = vmatprep.mubr.bf16.mxu0 0
  %4155 = vmatmul.mubr.bf16.gmra.mrb[0].mxu0 %v2511
  %v4156 = vpop.f32.mrb[0].mxu0
  %v4157 = vadd.f32 %v3212, %v4156
  %v4158 = vpop.f32.mrb[0].mxu0
  %v4159 = vpop.f32.mrb[0].mxu0
  %v4160 = vadd.f32 %v3215, %v4159
  %v4161 = vpop.f32.mrb[0].mxu0
  %4162 = vmatprep.mubr.bf16.mxu0 0
  %4163 = vmatmul.mubr.bf16.gmra.mrb[0].mxu0 %v2514
  %v4164 = vpop.f32.mrb[0].mxu0
  %v4165 = vadd.f32 %v3220, %v4164
  %v4166 = vpop.f32.mrb[0].mxu0
  %v4167 = vpop.f32.mrb[0].mxu0
  %v4168 = vadd.f32 %v3223, %v4167
  %v4169 = vpop.f32.mrb[0].mxu0
  %4170 = vmatprep.mubr.bf16.mxu0 0
  %4171 = vmatmul.mubr.bf16.gmra.mrb[0].mxu0 %v2517
  %v4172 = vpop.f32.mrb[0].mxu0
  %v4173 = vadd.f32 %v3228, %v4172
  %v4174 = vpop.f32.mrb[0].mxu0
  %v4175 = vpop.f32.mrb[0].mxu0
  %v4176 = vadd.f32 %v3231, %v4175
  %v4177 = vpop.f32.mrb[0].mxu0
  %4178 = vmatprep.mubr.bf16.mxu0 0
  %4179 = vmatmul.mubr.bf16.gmra.mrb[0].mxu0 %v2520
  %v4180 = vpop.f32.mrb[0].mxu0
  %v4181 = vadd.f32 %v3236, %v4180
  %v4182 = vpop.f32.mrb[0].mxu0
  %v4183 = vpop.f32.mrb[0].mxu0
  %v4184 = vadd.f32 %v3239, %v4183
  %v4185 = vpop.f32.mrb[0].mxu0
  %4186 = vmatprep.mubr.bf16.mxu0 0
  %4187 = vmatmul.mubr.bf16.gmra.mrb[0].mxu0 %v2523
  %v4188 = vpop.f32.mrb[0].mxu0
  %v4189 = vadd.f32 %v3244, %v4188
  %v4190 = vpop.f32.mrb[0].mxu0
  %v4191 = vpop.f32.mrb[0].mxu0
  %v4192 = vadd.f32 %v3247, %v4191
  %v4193 = vpop.f32.mrb[0].mxu0
  %4194 = vmatprep.mubr.bf16.mxu0 0
  %4195 = vmatmul.mubr.bf16.gmra.mrb[0].mxu0 %v2526
  %v4196 = vpop.f32.mrb[0].mxu0
  %v4197 = vadd.f32 %v3252, %v4196
  %v4198 = vpop.f32.mrb[0].mxu0
  %v4199 = vpop.f32.mrb[0].mxu0
  %v4200 = vadd.f32 %v3255, %v4199
  %v4201 = vpop.f32.mrb[0].mxu0
  %4202 = vmatprep.mubr.bf16.mxu0 0
  %4203 = vmatmul.mubr.bf16.gmra.mrb[0].mxu0 %v2529
  %v4204 = vpop.f32.mrb[0].mxu0
  %v4205 = vadd.f32 %v3260, %v4204
  %v4206 = vpop.f32.mrb[0].mxu0
  %v4207 = vpop.f32.mrb[0].mxu0
  %v4208 = vadd.f32 %v3263, %v4207
  %v4209 = vpop.f32.mrb[0].mxu0
  %4210 = vmatprep.mubr.bf16.mxu0 0
  %4211 = vmatmul.mubr.bf16.gmra.mrb[0].mxu0 %v2532
  %v4212 = vpop.f32.mrb[0].mxu0
  %v4213 = vadd.f32 %v3268, %v4212
  %v4214 = vpop.f32.mrb[0].mxu0
  %v4215 = vpop.f32.mrb[0].mxu0
  %v4216 = vadd.f32 %v3271, %v4215
  %v4217 = vpop.f32.mrb[0].mxu0
  %4218 = vmatprep.mubr.bf16.mxu0 0
  %4219 = vmatmul.mubr.bf16.gmra.mrb[0].mxu0 %v2535
  %v4220 = vpop.f32.mrb[0].mxu0
  %v4221 = vadd.f32 %v3276, %v4220
  %v4222 = vpop.f32.mrb[0].mxu0
  %v4223 = vpop.f32.mrb[0].mxu0
  %v4224 = vadd.f32 %v3279, %v4223
  %v4225 = vpop.f32.mrb[0].mxu0
  %4226 = vmatprep.mubr.bf16.mxu0 0
  %4227 = vmatmul.mubr.bf16.gmra.mrb[0].mxu0 %v2538
  %v4228 = vpop.f32.mrb[0].mxu0
  %v4229 = vadd.f32 %v3284, %v4228
  %v4230 = vpop.f32.mrb[0].mxu0
  %v4231 = vpop.f32.mrb[0].mxu0
  %v4232 = vadd.f32 %v3287, %v4231
  %v4233 = vpop.f32.mrb[0].mxu0
  %4234 = vmatprep.mubr.bf16.mxu0 0
  %4235 = vmatmul.mubr.bf16.gmra.mrb[0].mxu0 %v2541
  %v4236 = vpop.f32.mrb[0].mxu0
  %v4237 = vadd.f32 %v3292, %v4236
  %v4238 = vpop.f32.mrb[0].mxu0
  %v4239 = vpop.f32.mrb[0].mxu0
  %v4240 = vadd.f32 %v3295, %v4239
  %v4241 = vpop.f32.mrb[0].mxu0
  %4242 = vmatprep.mubr.bf16.mxu0 0
  %4243 = vmatmul.mubr.bf16.gmra.mrb[0].mxu0 %v2544
  %v4244 = vpop.f32.mrb[0].mxu0
  %v4245 = vadd.f32 %v3300, %v4244
  %v4246 = vpop.f32.mrb[0].mxu0
  %v4247 = vpop.f32.mrb[0].mxu0
  %v4248 = vadd.f32 %v3303, %v4247
  %v4249 = vpop.f32.mrb[0].mxu0
  %4250 = vmatprep.mubr.bf16.mxu0 0
  %4251 = vmatmul.mubr.bf16.gmra.mrb[0].mxu0 %v2547
  %v4252 = vpop.f32.mrb[0].mxu0
  %v4253 = vadd.f32 %v3308, %v4252
  %v4254 = vpop.f32.mrb[0].mxu0
  %v4255 = vpop.f32.mrb[0].mxu0
  %v4256 = vadd.f32 %v3311, %v4255
  %v4257 = vpop.f32.mrb[0].mxu0
  %4258 = vmatprep.mubr.bf16.mxu0 0
  %4259 = vmatmul.mubr.bf16.gmra.mrb[0].mxu0 %v2550
  %v4260 = vpop.f32.mrb[0].mxu0
  %v4261 = vadd.f32 %v3316, %v4260
  %v4262 = vpop.f32.mrb[0].mxu0
  %v4263 = vpop.f32.mrb[0].mxu0
  %v4264 = vadd.f32 %v3319, %v4263
  %v4265 = vpop.f32.mrb[0].mxu0
  %4266 = vmatprep.mubr.bf16.mxu0 0
  %4267 = vmatmul.mubr.bf16.gmra.mrb[0].mxu0 %v2553
  %v4268 = vpop.f32.mrb[0].mxu0
  %v4269 = vadd.f32 %v3324, %v4268
  %v4270 = vpop.f32.mrb[0].mxu0
  %v4271 = vpop.f32.mrb[0].mxu0
  %v4272 = vadd.f32 %v3327, %v4271
  %v4273 = vpop.f32.mrb[0].mxu0
  %4274 = vmatprep.mubr.bf16.mxu0 0
  %4275 = vmatmul.mubr.bf16.gmra.mrb[0].mxu0 %v2556
  %v4276 = vpop.f32.mrb[0].mxu0
  %v4277 = vadd.f32 %v3332, %v4276
  %v4278 = vpop.f32.mrb[0].mxu0
  %v4279 = vpop.f32.mrb[0].mxu0
  %v4280 = vadd.f32 %v3335, %v4279
  %v4281 = vpop.f32.mrb[0].mxu0
  %4282 = vmatprep.mubr.bf16.mxu0 0
  %4283 = vmatmul.mubr.bf16.gmra.mrb[0].mxu0 %v2559
  %v4284 = vpop.f32.mrb[0].mxu0
  %v4285 = vadd.f32 %v3340, %v4284
  %v4286 = vpop.f32.mrb[0].mxu0
  %v4287 = vpop.f32.mrb[0].mxu0
  %v4288 = vadd.f32 %v3343, %v4287
  %v4289 = vpop.f32.mrb[0].mxu0
  %4290 = vmatprep.mubr.bf16.mxu0 0
  %4291 = vmatmul.mubr.bf16.gmra.mrb[0].mxu0 %v2562
  %v4292 = vpop.f32.mrb[0].mxu0
  %v4293 = vadd.f32 %v3348, %v4292
  %v4294 = vpop.f32.mrb[0].mxu0
  %v4295 = vpop.f32.mrb[0].mxu0
  %v4296 = vadd.f32 %v3351, %v4295
  %v4297 = vpop.f32.mrb[0].mxu0
  %4298 = vmatprep.mubr.bf16.mxu0 0
  %4299 = vmatmul.mubr.bf16.gmra.mrb[0].mxu0 %v2565
  %v4300 = vpop.f32.mrb[0].mxu0
  %v4301 = vadd.f32 %v3356, %v4300
  %v4302 = vpop.f32.mrb[0].mxu0
  %v4303 = vpop.f32.mrb[0].mxu0
  %v4304 = vadd.f32 %v3359, %v4303
  %v4305 = vpop.f32.mrb[0].mxu0
  %4306 = vmatprep.mubr.bf16.mxu0 0
  %4307 = vmatmul.mubr.bf16.gmra.mrb[0].mxu0 %v2568
  %v4308 = vpop.f32.mrb[0].mxu0
  %v4309 = vadd.f32 %v3364, %v4308
  %v4310 = vpop.f32.mrb[0].mxu0
  %v4311 = vpop.f32.mrb[0].mxu0
  %v4312 = vadd.f32 %v3367, %v4311
  %v4313 = vpop.f32.mrb[0].mxu0
  %4314 = vmatprep.mubr.bf16.mxu0 0
  %4315 = vmatmul.mubr.bf16.gmra.mrb[0].mxu0 %v2571
  %v4316 = vpop.f32.mrb[0].mxu0
  %v4317 = vadd.f32 %v3372, %v4316
  %v4318 = vpop.f32.mrb[0].mxu0
  %v4319 = vpop.f32.mrb[0].mxu0
  %v4320 = vadd.f32 %v3375, %v4319
  %v4321 = vpop.f32.mrb[0].mxu0
  %4322 = vmatprep.mubr.bf16.mxu0 0
  %4323 = vmatmul.mubr.bf16.gmra.mrb[0].mxu0 %v2574
  %v4324 = vpop.f32.mrb[0].mxu0
  %v4325 = vadd.f32 %v3380, %v4324
  %v4326 = vpop.f32.mrb[0].mxu0
  %v4327 = vpop.f32.mrb[0].mxu0
  %v4328 = vadd.f32 %v3383, %v4327
  %v4329 = vpop.f32.mrb[0].mxu0
  %4330 = vmatprep.mubr.bf16.mxu0 0
  %4331 = vmatmul.mubr.bf16.gmra.mrb[0].mxu0 %v2577
  %v4332 = vpop.f32.mrb[0].mxu0
  %v4333 = vadd.f32 %v3388, %v4332
  %v4334 = vpop.f32.mrb[0].mxu0
  %v4335 = vpop.f32.mrb[0].mxu0
  %v4336 = vadd.f32 %v3391, %v4335
  %v4337 = vpop.f32.mrb[0].mxu0
  %4338 = vmatprep.mubr.bf16.mxu0 0
  %4339 = vmatmul.mubr.bf16.gmra.mrb[0].mxu0 %v2580
  %v4340 = vpop.f32.mrb[0].mxu0
  %v4341 = vadd.f32 %v3396, %v4340
  %v4342 = vpop.f32.mrb[0].mxu0
  %v4343 = vpop.f32.mrb[0].mxu0
  %v4344 = vadd.f32 %v3399, %v4343
  %v4345 = vpop.f32.mrb[0].mxu0
  %4346 = vmatprep.mubr.bf16.mxu0 0
  %4347 = vmatmul.mubr.bf16.gmra.mrb[0].mxu0 %v2583
  %v4348 = vpop.f32.mrb[0].mxu0
  %v4349 = vadd.f32 %v3404, %v4348
  %v4350 = vpop.f32.mrb[0].mxu0
  %v4351 = vpop.f32.mrb[0].mxu0
  %v4352 = vadd.f32 %v3407, %v4351
  %v4353 = vpop.f32.mrb[0].mxu0
  %4354 = vmatprep.mubr.bf16.mxu0 0
  %4355 = vmatmul.mubr.bf16.gmra.mrb[0].mxu0 %v2586
  %v4356 = vpop.f32.mrb[0].mxu0
  %v4357 = vadd.f32 %v3412, %v4356
  %v4358 = vpop.f32.mrb[0].mxu0
  %v4359 = vpop.f32.mrb[0].mxu0
  %v4360 = vadd.f32 %v3415, %v4359
  %v4361 = vpop.f32.mrb[0].mxu0
  %4362 = vmatprep.mubr.bf16.mxu0 0
  %4363 = vmatmul.mubr.bf16.gmra.mrb[0].mxu0 %v2589
  %v4364 = vpop.f32.mrb[0].mxu0
  %v4365 = vadd.f32 %v3420, %v4364
  %v4366 = vpop.f32.mrb[0].mxu0
  %v4367 = vpop.f32.mrb[0].mxu0
  %v4368 = vadd.f32 %v3423, %v4367
  %v4369 = vpop.f32.mrb[0].mxu0
  %4370 = vmatprep.mubr.bf16.mxu0 0
  %4371 = vmatmul.mubr.bf16.gmra.mrb[0].mxu0 %v2592
  %v4372 = vpop.f32.mrb[0].mxu0
  %v4373 = vadd.f32 %v3428, %v4372
  %v4374 = vpop.f32.mrb[0].mxu0
  %v4375 = vpop.f32.mrb[0].mxu0
  %v4376 = vadd.f32 %v3431, %v4375
  %v4377 = vpop.f32.mrb[0].mxu0
  %4378 = vmatprep.mubr.bf16.mxu0 0
  %4379 = vmatmul.mubr.bf16.gmra.mrb[0].mxu0 %v2595
  %v4380 = vpop.f32.mrb[0].mxu0
  %v4381 = vadd.f32 %v3436, %v4380
  %v4382 = vpop.f32.mrb[0].mxu0
  %v4383 = vpop.f32.mrb[0].mxu0
  %v4384 = vadd.f32 %v3439, %v4383
  %v4385 = vpop.f32.mrb[0].mxu0
  %4386 = vmatprep.mubr.bf16.mxu0 0
  %4387 = vmatmul.mubr.bf16.gmra.mrb[0].mxu0 %v2598
  %v4388 = vpop.f32.mrb[0].mxu0
  %v4389 = vadd.f32 %v3444, %v4388
  %v4390 = vpop.f32.mrb[0].mxu0
  %v4391 = vpop.f32.mrb[0].mxu0
  %v4392 = vadd.f32 %v3447, %v4391
  %v4393 = vpop.f32.mrb[0].mxu0
  %4394 = vmatprep.mubr.bf16.mxu0 0
  %4395 = vmatmul.mubr.bf16.gmra.mrb[0].mxu0 %v2601
  %v4396 = vpop.f32.mrb[0].mxu0
  %v4397 = vadd.f32 %v3452, %v4396
  %v4398 = vpop.f32.mrb[0].mxu0
  %v4399 = vpop.f32.mrb[0].mxu0
  %v4400 = vadd.f32 %v3455, %v4399
  %v4401 = vpop.f32.mrb[0].mxu0
  %4402 = vmatprep.mubr.bf16.mxu0 0
  %4403 = vmatmul.mubr.bf16.gmra.mrb[0].mxu0 %v2604
  %v4404 = vpop.f32.mrb[0].mxu0
  %v4405 = vadd.f32 %v3460, %v4404
  %v4406 = vpop.f32.mrb[0].mxu0
  %v4407 = vpop.f32.mrb[0].mxu0
  %v4408 = vadd.f32 %v3463, %v4407
  %v4409 = vpop.f32.mrb[0].mxu0
  %4410 = vmatprep.mubr.bf16.mxu0 0
  %4411 = vmatmul.mubr.bf16.gmra.mrb[0].mxu0 %v2607
  %v4412 = vpop.f32.mrb[0].mxu0
  %v4413 = vadd.f32 %v3468, %v4412
  %v4414 = vpop.f32.mrb[0].mxu0
  %v4415 = vpop.f32.mrb[0].mxu0
  %v4416 = vadd.f32 %v3471, %v4415
  %v4417 = vpop.f32.mrb[0].mxu0
  %4418 = vmatprep.mubr.bf16.mxu0 0
  %4419 = vmatmul.mubr.bf16.gmra.mrb[0].mxu0 %v2610
  %v4420 = vpop.f32.mrb[0].mxu0
  %v4421 = vadd.f32 %v3476, %v4420
  %v4422 = vpop.f32.mrb[0].mxu0
  %v4423 = vpop.f32.mrb[0].mxu0
  %v4424 = vadd.f32 %v3479, %v4423
  %v4425 = vpop.f32.mrb[0].mxu0
  %4426 = vmatprep.mubr.bf16.mxu0 0
  %4427 = vmatmul.mubr.bf16.gmra.mrb[0].mxu0 %v2613
  %v4428 = vpop.f32.mrb[0].mxu0
  %v4429 = vadd.f32 %v3484, %v4428
  %v4430 = vpop.f32.mrb[0].mxu0
  %v4431 = vpop.f32.mrb[0].mxu0
  %v4432 = vadd.f32 %v3487, %v4431
  %v4433 = vpop.f32.mrb[0].mxu0
  %4434 = vmatprep.mubr.bf16.mxu0 0
  %4435 = vmatmul.mubr.bf16.gmra.mrb[0].mxu0 %v2616
  %v4436 = vpop.f32.mrb[0].mxu0
  %v4437 = vadd.f32 %v3492, %v4436
  %v4438 = vpop.f32.mrb[0].mxu0
  %v4439 = vpop.f32.mrb[0].mxu0
  %v4440 = vadd.f32 %v3495, %v4439
  %v4441 = vpop.f32.mrb[0].mxu0
  %4442 = vmatprep.mubr.bf16.mxu0 0
  %4443 = vmatmul.mubr.bf16.gmra.mrb[0].mxu0 %v2619
  %v4444 = vpop.f32.mrb[0].mxu0
  %v4445 = vadd.f32 %v3500, %v4444
  %v4446 = vpop.f32.mrb[0].mxu0
  %v4447 = vpop.f32.mrb[0].mxu0
  %v4448 = vadd.f32 %v3503, %v4447
  %v4449 = vpop.f32.mrb[0].mxu0
  %4450 = vmatprep.mubr.bf16.mxu0 0
  %4451 = vmatmul.mubr.bf16.gmra.mrb[0].mxu0 %v2622
  %v4452 = vpop.f32.mrb[0].mxu0
  %v4453 = vadd.f32 %v3508, %v4452
  %v4454 = vpop.f32.mrb[0].mxu0
  %v4455 = vpop.f32.mrb[0].mxu0
  %v4456 = vadd.f32 %v3511, %v4455
  %v4457 = vpop.f32.mrb[0].mxu0
  %4458 = vmatprep.mubr.bf16.mxu0 0
  %4459 = vmatmul.mubr.bf16.gmra.mrb[0].mxu0 %v2625
  %v4460 = vpop.f32.mrb[0].mxu0
  %v4461 = vadd.f32 %v3516, %v4460
  %v4462 = vpop.f32.mrb[0].mxu0
  %v4463 = vpop.f32.mrb[0].mxu0
  %v4464 = vadd.f32 %v3519, %v4463
  %v4465 = vpop.f32.mrb[0].mxu0
  %4466 = vmatprep.mubr.bf16.mxu0 0
  %4467 = vmatmul.mubr.bf16.gmra.mrb[0].mxu0 %v2628
  %v4468 = vpop.f32.mrb[0].mxu0
  %v4469 = vadd.f32 %v3524, %v4468
  %v4470 = vpop.f32.mrb[0].mxu0
  %v4471 = vpop.f32.mrb[0].mxu0
  %v4472 = vadd.f32 %v3527, %v4471
  %v4473 = vpop.f32.mrb[0].mxu0
  %4474 = vmatprep.mubr.bf16.mxu0 0
  %4475 = vmatmul.mubr.bf16.gmra.mrb[0].mxu0 %v2631
  %v4476 = vpop.f32.mrb[0].mxu0
  %v4477 = vadd.f32 %v3532, %v4476
  %v4478 = vpop.f32.mrb[0].mxu0
  %v4479 = vpop.f32.mrb[0].mxu0
  %v4480 = vadd.f32 %v3535, %v4479
  %v4481 = vpop.f32.mrb[0].mxu0
  %4482 = vmatprep.mubr.bf16.mxu0 0
  %4483 = vmatmul.mubr.bf16.gmra.mrb[0].mxu0 %v2634
  %v4484 = vpop.f32.mrb[0].mxu0
  %v4485 = vadd.f32 %v3540, %v4484
  %v4486 = vpop.f32.mrb[0].mxu0
  %v4487 = vpop.f32.mrb[0].mxu0
  %v4488 = vadd.f32 %v3543, %v4487
  %v4489 = vpop.f32.mrb[0].mxu0
  %4490 = vmatprep.mubr.bf16.mxu0 0
  %4491 = vmatmul.mubr.bf16.gmra.mrb[0].mxu0 %v2637
  %v4492 = vpop.f32.mrb[0].mxu0
  %v4493 = vadd.f32 %v3548, %v4492
  %v4494 = vpop.f32.mrb[0].mxu0
  %v4495 = vpop.f32.mrb[0].mxu0
  %v4496 = vadd.f32 %v3551, %v4495
  %v4497 = vpop.f32.mrb[0].mxu0
  %4498 = vmatprep.mubr.bf16.mxu0 0
  %4499 = vmatmul.mubr.bf16.gmra.mrb[0].mxu0 %v2640
  %v4500 = vpop.f32.mrb[0].mxu0
  %v4501 = vadd.f32 %v3556, %v4500
  %v4502 = vpop.f32.mrb[0].mxu0
  %v4503 = vpop.f32.mrb[0].mxu0
  %v4504 = vadd.f32 %v3559, %v4503
  %v4505 = vpop.f32.mrb[0].mxu0
  %4506 = vmatprep.mubr.bf16.mxu0 0
  %4507 = vmatmul.mubr.bf16.gmra.mrb[0].mxu0 %v2643
  %v4508 = vpop.f32.mrb[0].mxu0
  %v4509 = vadd.f32 %v3564, %v4508
  %v4510 = vpop.f32.mrb[0].mxu0
  %v4511 = vpop.f32.mrb[0].mxu0
  %v4512 = vadd.f32 %v3567, %v4511
  %v4513 = vpop.f32.mrb[0].mxu0
  %4514 = vmatprep.mubr.bf16.mxu0 0
  %4515 = vmatmul.mubr.bf16.gmra.mrb[0].mxu0 %v2646
  %v4516 = vpop.f32.mrb[0].mxu0
  %v4517 = vadd.f32 %v3572, %v4516
  %v4518 = vpop.f32.mrb[0].mxu0
  %v4519 = vpop.f32.mrb[0].mxu0
  %v4520 = vadd.f32 %v3575, %v4519
  %v4521 = vpop.f32.mrb[0].mxu0
  %4522 = vmatprep.mubr.bf16.mxu0 0
  %4523 = vmatmul.mubr.bf16.gmra.mrb[0].mxu0 %v2649
  %v4524 = vpop.f32.mrb[0].mxu0
  %v4525 = vadd.f32 %v3580, %v4524
  %v4526 = vpop.f32.mrb[0].mxu0
  %v4527 = vpop.f32.mrb[0].mxu0
  %v4528 = vadd.f32 %v3583, %v4527
  %v4529 = vpop.f32.mrb[0].mxu0
  %4530 = vmatprep.mubr.bf16.mxu0 0
  %4531 = vmatmul.mubr.bf16.gmra.mrb[0].mxu0 %v2652
  %v4532 = vpop.f32.mrb[0].mxu0
  %v4533 = vadd.f32 %v3588, %v4532
  %v4534 = vpop.f32.mrb[0].mxu0
  %v4535 = vpop.f32.mrb[0].mxu0
  %v4536 = vadd.f32 %v3591, %v4535
  %v4537 = vpop.f32.mrb[0].mxu0
  %4538 = vmatprep.mubr.bf16.mxu0 0
  %4539 = vmatmul.mubr.bf16.gmra.mrb[0].mxu0 %v2655
  %v4540 = vpop.f32.mrb[0].mxu0
  %v4541 = vadd.f32 %v3596, %v4540
  %v4542 = vpop.f32.mrb[0].mxu0
  %v4543 = vpop.f32.mrb[0].mxu0
  %v4544 = vadd.f32 %v3599, %v4543
  %v4545 = vpop.f32.mrb[0].mxu0
  %4546 = vdwg.mxu0
  %vm4547 = vcmask 400384
  %4548 = vst.msk [vmem:[%s3] sm:$0xff] %vm4547, %v3637
  %4549 = vst.msk [vmem:[%s3 + $0x8] sm:$0xff] %vm4547, %v3640
  %4550 = vst.msk [vmem:[%s3 + $0x10] sm:$0xff] %vm4547, %v3645
  %4551 = vst.msk [vmem:[%s3 + $0x18] sm:$0xff] %vm4547, %v3648
  %4552 = vst.msk [vmem:[%s3 + $0x20] sm:$0xff] %vm4547, %v3653
  %4553 = vst.msk [vmem:[%s3 + $0x28] sm:$0xff] %vm4547, %v3656
  %4554 = vst.msk [vmem:[%s3 + $0x30] sm:$0xff] %vm4547, %v3661
  %4555 = vst.msk [vmem:[%s3 + $0x38] sm:$0xff] %vm4547, %v3664
  %4556 = vst.msk [vmem:[%s3 + $0x40] sm:$0xff] %vm4547, %v3669
  %4557 = vst.msk [vmem:[%s3 + $0x48] sm:$0xff] %vm4547, %v3672
  %4558 = vst.msk [vmem:[%s3 + $0x50] sm:$0xff] %vm4547, %v3677
  %4559 = vst.msk [vmem:[%s3 + $0x58] sm:$0xff] %vm4547, %v3680
  %4560 = vst.msk [vmem:[%s3 + $0x60] sm:$0xff] %vm4547, %v3685
  %4561 = vst.msk [vmem:[%s3 + $0x68] sm:$0xff] %vm4547, %v3688
  %4562 = vst.msk [vmem:[%s3 + $0x70] sm:$0xff] %vm4547, %v3693
  %4563 = vst.msk [vmem:[%s3 + $0x78] sm:$0xff] %vm4547, %v3696
  %4564 = vst.msk [vmem:[%s3 + $0x80] sm:$0xff] %vm4547, %v3701
  %4565 = vst.msk [vmem:[%s3 + $0x88] sm:$0xff] %vm4547, %v3704
  %4566 = vst.msk [vmem:[%s3 + $0x90] sm:$0xff] %vm4547, %v3709
  %4567 = vst.msk [vmem:[%s3 + $0x98] sm:$0xff] %vm4547, %v3712
  %4568 = vst.msk [vmem:[%s3 + $0xa0] sm:$0xff] %vm4547, %v3717
  %4569 = vst.msk [vmem:[%s3 + $0xa8] sm:$0xff] %vm4547, %v3720
  %4570 = vst.msk [vmem:[%s3 + $0xb0] sm:$0xff] %vm4547, %v3725
  %4571 = vst.msk [vmem:[%s3 + $0xb8] sm:$0xff] %vm4547, %v3728
  %4572 = vst.msk [vmem:[%s3 + $0xc0] sm:$0xff] %vm4547, %v3733
  %4573 = vst.msk [vmem:[%s3 + $0xc8] sm:$0xff] %vm4547, %v3736
  %4574 = vst.msk [vmem:[%s3 + $0xd0] sm:$0xff] %vm4547, %v3741
  %4575 = vst.msk [vmem:[%s3 + $0xd8] sm:$0xff] %vm4547, %v3744
  %4576 = vst.msk [vmem:[%s3 + $0xe0] sm:$0xff] %vm4547, %v3749
  %4577 = vst.msk [vmem:[%s3 + $0xe8] sm:$0xff] %vm4547, %v3752
  %4578 = vst.msk [vmem:[%s3 + $0xf0] sm:$0xff] %vm4547, %v3757
  %4579 = vst.msk [vmem:[%s3 + $0xf8] sm:$0xff] %vm4547, %v3760
  %4580 = vst.msk [vmem:[%s3 + $0x100] sm:$0xff] %vm4547, %v3765
  %4581 = vst.msk [vmem:[%s3 + $0x108] sm:$0xff] %vm4547, %v3768
  %4582 = vst.msk [vmem:[%s3 + $0x110] sm:$0xff] %vm4547, %v3773
  %4583 = vst.msk [vmem:[%s3 + $0x118] sm:$0xff] %vm4547, %v3776
  %4584 = vst.msk [vmem:[%s3 + $0x120] sm:$0xff] %vm4547, %v3781
  %4585 = vst.msk [vmem:[%s3 + $0x128] sm:$0xff] %vm4547, %v3784
  %4586 = vst.msk [vmem:[%s3 + $0x130] sm:$0xff] %vm4547, %v3789
  %4587 = vst.msk [vmem:[%s3 + $0x138] sm:$0xff] %vm4547, %v3792
  %4588 = vst.msk [vmem:[%s3 + $0x140] sm:$0xff] %vm4547, %v3797
  %4589 = vst.msk [vmem:[%s3 + $0x148] sm:$0xff] %vm4547, %v3800
  %4590 = vst.msk [vmem:[%s3 + $0x150] sm:$0xff] %vm4547, %v3805
  %4591 = vst.msk [vmem:[%s3 + $0x158] sm:$0xff] %vm4547, %v3808
  %4592 = vst.msk [vmem:[%s3 + $0x160] sm:$0xff] %vm4547, %v3813
  %4593 = vst.msk [vmem:[%s3 + $0x168] sm:$0xff] %vm4547, %v3816
  %4594 = vst.msk [vmem:[%s3 + $0x170] sm:$0xff] %vm4547, %v3821
  %4595 = vst.msk [vmem:[%s3 + $0x178] sm:$0xff] %vm4547, %v3824
  %4596 = vst.msk [vmem:[%s3 + $0x180] sm:$0xff] %vm4547, %v3829
  %4597 = vst.msk [vmem:[%s3 + $0x188] sm:$0xff] %vm4547, %v3832
  %4598 = vst.msk [vmem:[%s3 + $0x190] sm:$0xff] %vm4547, %v3837
  %4599 = vst.msk [vmem:[%s3 + $0x198] sm:$0xff] %vm4547, %v3840
  %4600 = vst.msk [vmem:[%s3 + $0x1a0] sm:$0xff] %vm4547, %v3845
  %4601 = vst.msk [vmem:[%s3 + $0x1a8] sm:$0xff] %vm4547, %v3848
  %4602 = vst.msk [vmem:[%s3 + $0x1b0] sm:$0xff] %vm4547, %v3853
  %4603 = vst.msk [vmem:[%s3 + $0x1b8] sm:$0xff] %vm4547, %v3856
  %4604 = vst.msk [vmem:[%s3 + $0x1c0] sm:$0xff] %vm4547, %v3861
  %4605 = vst.msk [vmem:[%s3 + $0x1c8] sm:$0xff] %vm4547, %v3864
  %4606 = vst.msk [vmem:[%s3 + $0x1d0] sm:$0xff] %vm4547, %v3869
  %4607 = vst.msk [vmem:[%s3 + $0x1d8] sm:$0xff] %vm4547, %v3872
  %4608 = vst.msk [vmem:[%s3 + $0x1e0] sm:$0xff] %vm4547, %v3877
  %4609 = vst.msk [vmem:[%s3 + $0x1e8] sm:$0xff] %vm4547, %v3880
  %4610 = vst.msk [vmem:[%s3 + $0x1f0] sm:$0xff] %vm4547, %v3885
  %4611 = vst.msk [vmem:[%s3 + $0x1f8] sm:$0xff] %vm4547, %v3888
  %4612 = vst.msk [vmem:[%s3 + $0x200] sm:$0xff] %vm4547, %v3893
  %4613 = vst.msk [vmem:[%s3 + $0x208] sm:$0xff] %vm4547, %v3896
  %4614 = vst.msk [vmem:[%s3 + $0x210] sm:$0xff] %vm4547, %v3901
  %4615 = vst.msk [vmem:[%s3 + $0x218] sm:$0xff] %vm4547, %v3904
  %4616 = vst.msk [vmem:[%s3 + $0x220] sm:$0xff] %vm4547, %v3909
  %4617 = vst.msk [vmem:[%s3 + $0x228] sm:$0xff] %vm4547, %v3912
  %4618 = vst.msk [vmem:[%s3 + $0x230] sm:$0xff] %vm4547, %v3917
  %4619 = vst.msk [vmem:[%s3 + $0x238] sm:$0xff] %vm4547, %v3920
  %4620 = vst.msk [vmem:[%s3 + $0x240] sm:$0xff] %vm4547, %v3925
  %4621 = vst.msk [vmem:[%s3 + $0x248] sm:$0xff] %vm4547, %v3928
  %4622 = vst.msk [vmem:[%s3 + $0x250] sm:$0xff] %vm4547, %v3933
  %4623 = vst.msk [vmem:[%s3 + $0x258] sm:$0xff] %vm4547, %v3936
  %4624 = vst.msk [vmem:[%s3 + $0x260] sm:$0xff] %vm4547, %v3941
  %4625 = vst.msk [vmem:[%s3 + $0x268] sm:$0xff] %vm4547, %v3944
  %4626 = vst.msk [vmem:[%s3 + $0x270] sm:$0xff] %vm4547, %v3949
  %4627 = vst.msk [vmem:[%s3 + $0x278] sm:$0xff] %vm4547, %v3952
  %4628 = vst.msk [vmem:[%s3 + $0x280] sm:$0xff] %vm4547, %v3957
  %4629 = vst.msk [vmem:[%s3 + $0x288] sm:$0xff] %vm4547, %v3960
  %4630 = vst.msk [vmem:[%s3 + $0x290] sm:$0xff] %vm4547, %v3965
  %4631 = vst.msk [vmem:[%s3 + $0x298] sm:$0xff] %vm4547, %v3968
  %4632 = vst.msk [vmem:[%s3 + $0x2a0] sm:$0xff] %vm4547, %v3973
  %4633 = vst.msk [vmem:[%s3 + $0x2a8] sm:$0xff] %vm4547, %v3976
  %4634 = vst.msk [vmem:[%s3 + $0x2b0] sm:$0xff] %vm4547, %v3981
  %4635 = vst.msk [vmem:[%s3 + $0x2b8] sm:$0xff] %vm4547, %v3984
  %4636 = vst.msk [vmem:[%s3 + $0x2c0] sm:$0xff] %vm4547, %v3989
  %4637 = vst.msk [vmem:[%s3 + $0x2c8] sm:$0xff] %vm4547, %v3992
  %4638 = vst.msk [vmem:[%s3 + $0x2d0] sm:$0xff] %vm4547, %v3997
  %4639 = vst.msk [vmem:[%s3 + $0x2d8] sm:$0xff] %vm4547, %v4000
  %4640 = vst.msk [vmem:[%s3 + $0x2e0] sm:$0xff] %vm4547, %v4005
  %4641 = vst.msk [vmem:[%s3 + $0x2e8] sm:$0xff] %vm4547, %v4008
  %4642 = vst.msk [vmem:[%s3 + $0x2f0] sm:$0xff] %vm4547, %v4013
  %4643 = vst.msk [vmem:[%s3 + $0x2f8] sm:$0xff] %vm4547, %v4016
  %4644 = vst.msk [vmem:[%s3 + $0x300] sm:$0xff] %vm4547, %v4021
  %4645 = vst.msk [vmem:[%s3 + $0x308] sm:$0xff] %vm4547, %v4024
  %4646 = vst.msk [vmem:[%s3 + $0x310] sm:$0xff] %vm4547, %v4029
  %4647 = vst.msk [vmem:[%s3 + $0x318] sm:$0xff] %vm4547, %v4032
  %4648 = vst.msk [vmem:[%s3 + $0x320] sm:$0xff] %vm4547, %v4037
  %4649 = vst.msk [vmem:[%s3 + $0x328] sm:$0xff] %vm4547, %v4040
  %4650 = vst.msk [vmem:[%s3 + $0x330] sm:$0xff] %vm4547, %v4045
  %4651 = vst.msk [vmem:[%s3 + $0x338] sm:$0xff] %vm4547, %v4048
  %4652 = vst.msk [vmem:[%s3 + $0x340] sm:$0xff] %vm4547, %v4053
  %4653 = vst.msk [vmem:[%s3 + $0x348] sm:$0xff] %vm4547, %v4056
  %4654 = vst.msk [vmem:[%s3 + $0x350] sm:$0xff] %vm4547, %v4061
  %4655 = vst.msk [vmem:[%s3 + $0x358] sm:$0xff] %vm4547, %v4064
  %4656 = vst.msk [vmem:[%s3 + $0x360] sm:$0xff] %vm4547, %v4069
  %4657 = vst.msk [vmem:[%s3 + $0x368] sm:$0xff] %vm4547, %v4072
  %4658 = vst.msk [vmem:[%s3 + $0x370] sm:$0xff] %vm4547, %v4077
  %4659 = vst.msk [vmem:[%s3 + $0x378] sm:$0xff] %vm4547, %v4080
  %4660 = vst.msk [vmem:[%s3 + $0x380] sm:$0xff] %vm4547, %v4085
  %4661 = vst.msk [vmem:[%s3 + $0x388] sm:$0xff] %vm4547, %v4088
  %4662 = vst.msk [vmem:[%s3 + $0x390] sm:$0xff] %vm4547, %v4093
  %4663 = vst.msk [vmem:[%s3 + $0x398] sm:$0xff] %vm4547, %v4096
  %4664 = vst.msk [vmem:[%s3 + $0x3a0] sm:$0xff] %vm4547, %v4101
  %4665 = vst.msk [vmem:[%s3 + $0x3a8] sm:$0xff] %vm4547, %v4104
  %4666 = vst.msk [vmem:[%s3 + $0x3b0] sm:$0xff] %vm4547, %v4109
  %4667 = vst.msk [vmem:[%s3 + $0x3b8] sm:$0xff] %vm4547, %v4112
  %4668 = vst.msk [vmem:[%s3 + $0x3c0] sm:$0xff] %vm4547, %v4117
  %4669 = vst.msk [vmem:[%s3 + $0x3c8] sm:$0xff] %vm4547, %v4120
  %4670 = vst.msk [vmem:[%s3 + $0x3d0] sm:$0xff] %vm4547, %v4125
  %4671 = vst.msk [vmem:[%s3 + $0x3d8] sm:$0xff] %vm4547, %v4128
  %4672 = vst.msk [vmem:[%s3 + $0x3e0] sm:$0xff] %vm4547, %v4133
  %4673 = vst.msk [vmem:[%s3 + $0x3e8] sm:$0xff] %vm4547, %v4136
  %4674 = vst.msk [vmem:[%s3 + $0x3f0] sm:$0xff] %vm4547, %v4141
  %4675 = vst.msk [vmem:[%s3 + $0x3f8] sm:$0xff] %vm4547, %v4144
  %4676 = vst.msk [vmem:[%s3 + $0x400] sm:$0xff] %vm4547, %v4149
  %4677 = vst.msk [vmem:[%s3 + $0x408] sm:$0xff] %vm4547, %v4152
  %4678 = vst.msk [vmem:[%s3 + $0x410] sm:$0xff] %vm4547, %v4157
  %4679 = vst.msk [vmem:[%s3 + $0x418] sm:$0xff] %vm4547, %v4160
  %4680 = vst.msk [vmem:[%s3 + $0x420] sm:$0xff] %vm4547, %v4165
  %4681 = vst.msk [vmem:[%s3 + $0x428] sm:$0xff] %vm4547, %v4168
  %4682 = vst.msk [vmem:[%s3 + $0x430] sm:$0xff] %vm4547, %v4173
  %4683 = vst.msk [vmem:[%s3 + $0x438] sm:$0xff] %vm4547, %v4176
  %4684 = vst.msk [vmem:[%s3 + $0x440] sm:$0xff] %vm4547, %v4181
  %4685 = vst.msk [vmem:[%s3 + $0x448] sm:$0xff] %vm4547, %v4184
  %4686 = vst.msk [vmem:[%s3 + $0x450] sm:$0xff] %vm4547, %v4189
  %4687 = vst.msk [vmem:[%s3 + $0x458] sm:$0xff] %vm4547, %v4192
  %4688 = vst.msk [vmem:[%s3 + $0x460] sm:$0xff] %vm4547, %v4197
  %4689 = vst.msk [vmem:[%s3 + $0x468] sm:$0xff] %vm4547, %v4200
  %4690 = vst.msk [vmem:[%s3 + $0x470] sm:$0xff] %vm4547, %v4205
  %4691 = vst.msk [vmem:[%s3 + $0x478] sm:$0xff] %vm4547, %v4208
  %4692 = vst.msk [vmem:[%s3 + $0x480] sm:$0xff] %vm4547, %v4213
  %4693 = vst.msk [vmem:[%s3 + $0x488] sm:$0xff] %vm4547, %v4216
  %4694 = vst.msk [vmem:[%s3 + $0x490] sm:$0xff] %vm4547, %v4221
  %4695 = vst.msk [vmem:[%s3 + $0x498] sm:$0xff] %vm4547, %v4224
  %4696 = vst.msk [vmem:[%s3 + $0x4a0] sm:$0xff] %vm4547, %v4229
  %4697 = vst.msk [vmem:[%s3 + $0x4a8] sm:$0xff] %vm4547, %v4232
  %4698 = vst.msk [vmem:[%s3 + $0x4b0] sm:$0xff] %vm4547, %v4237
  %4699 = vst.msk [vmem:[%s3 + $0x4b8] sm:$0xff] %vm4547, %v4240
  %4700 = vst.msk [vmem:[%s3 + $0x4c0] sm:$0xff] %vm4547, %v4245
  %4701 = vst.msk [vmem:[%s3 + $0x4c8] sm:$0xff] %vm4547, %v4248
  %4702 = vst.msk [vmem:[%s3 + $0x4d0] sm:$0xff] %vm4547, %v4253
  %4703 = vst.msk [vmem:[%s3 + $0x4d8] sm:$0xff] %vm4547, %v4256
  %4704 = vst.msk [vmem:[%s3 + $0x4e0] sm:$0xff] %vm4547, %v4261
  %4705 = vst.msk [vmem:[%s3 + $0x4e8] sm:$0xff] %vm4547, %v4264
  %4706 = vst.msk [vmem:[%s3 + $0x4f0] sm:$0xff] %vm4547, %v4269
  %4707 = vst.msk [vmem:[%s3 + $0x4f8] sm:$0xff] %vm4547, %v4272
  %4708 = vst.msk [vmem:[%s3 + $0x500] sm:$0xff] %vm4547, %v4277
  %4709 = vst.msk [vmem:[%s3 + $0x508] sm:$0xff] %vm4547, %v4280
  %4710 = vst.msk [vmem:[%s3 + $0x510] sm:$0xff] %vm4547, %v4285
  %4711 = vst.msk [vmem:[%s3 + $0x518] sm:$0xff] %vm4547, %v4288
  %4712 = vst.msk [vmem:[%s3 + $0x520] sm:$0xff] %vm4547, %v4293
  %4713 = vst.msk [vmem:[%s3 + $0x528] sm:$0xff] %vm4547, %v4296
  %4714 = vst.msk [vmem:[%s3 + $0x530] sm:$0xff] %vm4547, %v4301
  %4715 = vst.msk [vmem:[%s3 + $0x538] sm:$0xff] %vm4547, %v4304
  %4716 = vst.msk [vmem:[%s3 + $0x540] sm:$0xff] %vm4547, %v4309
  %4717 = vst.msk [vmem:[%s3 + $0x548] sm:$0xff] %vm4547, %v4312
  %4718 = vst.msk [vmem:[%s3 + $0x550] sm:$0xff] %vm4547, %v4317
  %4719 = vst.msk [vmem:[%s3 + $0x558] sm:$0xff] %vm4547, %v4320
  %4720 = vst.msk [vmem:[%s3 + $0x560] sm:$0xff] %vm4547, %v4325
  %4721 = vst.msk [vmem:[%s3 + $0x568] sm:$0xff] %vm4547, %v4328
  %4722 = vst.msk [vmem:[%s3 + $0x570] sm:$0xff] %vm4547, %v4333
  %4723 = vst.msk [vmem:[%s3 + $0x578] sm:$0xff] %vm4547, %v4336
  %4724 = vst.msk [vmem:[%s3 + $0x580] sm:$0xff] %vm4547, %v4341
  %4725 = vst.msk [vmem:[%s3 + $0x588] sm:$0xff] %vm4547, %v4344
  %4726 = vst.msk [vmem:[%s3 + $0x590] sm:$0xff] %vm4547, %v4349
  %4727 = vst.msk [vmem:[%s3 + $0x598] sm:$0xff] %vm4547, %v4352
  %4728 = vst.msk [vmem:[%s3 + $0x5a0] sm:$0xff] %vm4547, %v4357
  %4729 = vst.msk [vmem:[%s3 + $0x5a8] sm:$0xff] %vm4547, %v4360
  %4730 = vst.msk [vmem:[%s3 + $0x5b0] sm:$0xff] %vm4547, %v4365
  %4731 = vst.msk [vmem:[%s3 + $0x5b8] sm:$0xff] %vm4547, %v4368
  %4732 = vst.msk [vmem:[%s3 + $0x5c0] sm:$0xff] %vm4547, %v4373
  %4733 = vst.msk [vmem:[%s3 + $0x5c8] sm:$0xff] %vm4547, %v4376
  %4734 = vst.msk [vmem:[%s3 + $0x5d0] sm:$0xff] %vm4547, %v4381
  %4735 = vst.msk [vmem:[%s3 + $0x5d8] sm:$0xff] %vm4547, %v4384
  %4736 = vst.msk [vmem:[%s3 + $0x5e0] sm:$0xff] %vm4547, %v4389
  %4737 = vst.msk [vmem:[%s3 + $0x5e8] sm:$0xff] %vm4547, %v4392
  %4738 = vst.msk [vmem:[%s3 + $0x5f0] sm:$0xff] %vm4547, %v4397
  %4739 = vst.msk [vmem:[%s3 + $0x5f8] sm:$0xff] %vm4547, %v4400
  %4740 = vst.msk [vmem:[%s3 + $0x600] sm:$0xff] %vm4547, %v4405
  %4741 = vst.msk [vmem:[%s3 + $0x608] sm:$0xff] %vm4547, %v4408
  %4742 = vst.msk [vmem:[%s3 + $0x610] sm:$0xff] %vm4547, %v4413
  %4743 = vst.msk [vmem:[%s3 + $0x618] sm:$0xff] %vm4547, %v4416
  %4744 = vst.msk [vmem:[%s3 + $0x620] sm:$0xff] %vm4547, %v4421
  %4745 = vst.msk [vmem:[%s3 + $0x628] sm:$0xff] %vm4547, %v4424
  %4746 = vst.msk [vmem:[%s3 + $0x630] sm:$0xff] %vm4547, %v4429
  %4747 = vst.msk [vmem:[%s3 + $0x638] sm:$0xff] %vm4547, %v4432
  %4748 = vst.msk [vmem:[%s3 + $0x640] sm:$0xff] %vm4547, %v4437
  %4749 = vst.msk [vmem:[%s3 + $0x648] sm:$0xff] %vm4547, %v4440
  %4750 = vst.msk [vmem:[%s3 + $0x650] sm:$0xff] %vm4547, %v4445
  %4751 = vst.msk [vmem:[%s3 + $0x658] sm:$0xff] %vm4547, %v4448
  %4752 = vst.msk [vmem:[%s3 + $0x660] sm:$0xff] %vm4547, %v4453
  %4753 = vst.msk [vmem:[%s3 + $0x668] sm:$0xff] %vm4547, %v4456
  %4754 = vst.msk [vmem:[%s3 + $0x670] sm:$0xff] %vm4547, %v4461
  %4755 = vst.msk [vmem:[%s3 + $0x678] sm:$0xff] %vm4547, %v4464
  %4756 = vst.msk [vmem:[%s3 + $0x680] sm:$0xff] %vm4547, %v4469
  %4757 = vst.msk [vmem:[%s3 + $0x688] sm:$0xff] %vm4547, %v4472
  %4758 = vst.msk [vmem:[%s3 + $0x690] sm:$0xff] %vm4547, %v4477
  %4759 = vst.msk [vmem:[%s3 + $0x698] sm:$0xff] %vm4547, %v4480
  %4760 = vst.msk [vmem:[%s3 + $0x6a0] sm:$0xff] %vm4547, %v4485
  %4761 = vst.msk [vmem:[%s3 + $0x6a8] sm:$0xff] %vm4547, %v4488
  %4762 = vst.msk [vmem:[%s3 + $0x6b0] sm:$0xff] %vm4547, %v4493
  %4763 = vst.msk [vmem:[%s3 + $0x6b8] sm:$0xff] %vm4547, %v4496
  %4764 = vst.msk [vmem:[%s3 + $0x6c0] sm:$0xff] %vm4547, %v4501
  %4765 = vst.msk [vmem:[%s3 + $0x6c8] sm:$0xff] %vm4547, %v4504
  %4766 = vst.msk [vmem:[%s3 + $0x6d0] sm:$0xff] %vm4547, %v4509
  %4767 = vst.msk [vmem:[%s3 + $0x6d8] sm:$0xff] %vm4547, %v4512
  %4768 = vst.msk [vmem:[%s3 + $0x6e0] sm:$0xff] %vm4547, %v4517
  %4769 = vst.msk [vmem:[%s3 + $0x6e8] sm:$0xff] %vm4547, %v4520
  %4770 = vst.msk [vmem:[%s3 + $0x6f0] sm:$0xff] %vm4547, %v4525
  %4771 = vst.msk [vmem:[%s3 + $0x6f8] sm:$0xff] %vm4547, %v4528
  %4772 = vst.msk [vmem:[%s3 + $0x700] sm:$0xff] %vm4547, %v4533
  %4773 = vst.msk [vmem:[%s3 + $0x708] sm:$0xff] %vm4547, %v4536
  %4774 = vst.msk [vmem:[%s3 + $0x710] sm:$0xff] %vm4547, %v4541
  %4775 = vst.msk [vmem:[%s3 + $0x718] sm:$0xff] %vm4547, %v4544
  // Predicated region
  $region14: #{tpu_custom_call.1} parent=0 // pred_check
    _
  $region15: #{tpu_custom_call.1} parent=0 // pred_check_branch
    %4777 = sbr.rel (0) target = $region17
  $region16: #{tpu_custom_call.1} parent=0 // pred_region
    _
  $region17: #{tpu_custom_call.1} parent=0 // pred_fallthru
    _
  // Predicated region
  $region18: #{tpu_custom_call.1} parent=0 // pred_check
    _
  $region19: #{tpu_custom_call.1} parent=0 // pred_check_branch
    %4779 = sbr.rel (0) target = $region21
  $region20: #{tpu_custom_call.1} parent=0 // pred_region
    _
  $region21: #{tpu_custom_call.1} parent=0 // pred_fallthru
    _

</llo_original>
